<compile_context>
chip_gen: v7x
topology: tpu7x:2x2x1
jax: 0.10.0
libtpu: 0.0.40
codegen_flags: <defaults>
</compile_context>

<pallas_src>
import functools
import numpy as np
import jax
import jax.numpy as jnp
from jax.experimental import pallas as pl
from jax.experimental.pallas import tpu as pltpu

D = 128          # audio / visual embedding dim (LoCoNet contract)
_HEADS_N = 8     # packed head-logit width: cols 0:2 = AV, 2:4 = A, 4:6 = V, 6:8 pad


def _resident_spec(block_shape, index_map):
    """BlockSpec for a constant-index (weight) operand.

    The block index never changes across the grid, so double buffering only wastes
    VMEM; request single buffering when the installed jax supports pipeline_mode.
    """
    try:
        return pl.BlockSpec(block_shape, index_map, pipeline_mode=pl.Buffered(1))
    except Exception:   # pragma: no cover - jax without pipeline_mode support
        return pl.BlockSpec(block_shape, index_map)


# --------------------------------------------------------------------------
# Kernel 1: audio frontend (all b batches) + fused audio QKV + TalkNCE loss
# --------------------------------------------------------------------------
def _frontend_nce_kernel(aud_ref, vis0_ref, act_col_ref, act_row_ref,
                         w_af_ref, b_af_ref, w_vf_ref, b_vf_ref, w_aqkv_ref,
                         aqkv_out_ref, nce_out_ref, *, b, t):
    f32, bf16 = jnp.float32, jnp.bfloat16
    da = aud_ref.shape[-1]

    # audio frontend, computed exactly once for all b batches (no per-s recompute)
    aud = aud_ref[...].reshape(b * t, da)                                    # bf16
    a_emb = jnp.dot(aud, w_af_ref[...], preferred_element_type=f32) + b_af_ref[...]
    # fused audio-side QKV:  [ Wq_a2v*scale | Wk_v2a | Wv_v2a ]
    a_qkv = jnp.dot(a_emb.astype(bf16), w_aqkv_ref[...], preferred_element_type=f32)
    aqkv_out_ref[...] = a_qkv.astype(bf16).reshape(b, t, 3 * D)

    # TalkNCE on sequence 0 (pre-cross-attention embeddings, audio batch 0)
    vis0 = vis0_ref[0]                                                       # (t, hw) bf16
    v_emb0 = jnp.dot(vis0, w_vf_ref[...], preferred_element_type=f32) + b_vf_ref[...]
    a_emb0 = a_emb[0:t, :]

    eps = jnp.float32(1e-24)
    vn = v_emb0 * jax.lax.rsqrt(
        jnp.maximum(jnp.sum(v_emb0 * v_emb0, axis=1, keepdims=True), eps))
    an = a_emb0 * jax.lax.rsqrt(
        jnp.maximum(jnp.sum(a_emb0 * a_emb0, axis=1, keepdims=True), eps))
    inv_temp = jnp.float32(1.0 / 0.07)
    sim = jax.lax.dot_general(vn, an, (((1,), (1,)), ((), ())),
                              preferred_element_type=f32) * inv_temp         # (t, t)
    pos = jnp.sum(vn * an, axis=1, keepdims=True) * inv_temp                 # diag(sim)

    # Masked formulation of the active-frame gather: restricting the similarity
    # matrix to active rows/cols is mathematically identical to the torch.stack
    # gather in the original code, but keeps every shape static (no retraces).
    act_c = act_col_ref[...]                                                 # (1, t)
    act_r = act_row_ref[...]                                                 # (t, 1)
    simm = jnp.where(act_c > 0.5, sim, jnp.float32(-1e30))
    m = jnp.max(simm, axis=1, keepdims=True)
    lse = m + jnp.log(jnp.sum(jnp.exp(simm - m), axis=1, keepdims=True))
    per_row = lse - pos
    count = jnp.sum(act_r)
    nce = jnp.where(count > 0.5,
                    jnp.sum(per_row * act_r) / jnp.maximum(count, 1.0),
                    jnp.float32(0.0))

    # lane-dense (1,128) scalar carrier (single unmasked 128-lane store)
    lane = jax.lax.broadcasted_iota(jnp.int32, (1, 128), 1)
    nce_out_ref[...] = jnp.where(lane == 0, nce, 0.0)


# --------------------------------------------------------------------------
# Kernel 2: visual frontend + cross attention + AV backend + fused CE heads
# --------------------------------------------------------------------------
def _fused_forward_loss_kernel(vis_ref, aqkv_ref, labmask_ref,
                               w_vf_ref, b_vf_ref, w_vqkv_ref,
                               w_av_a_ref, w_av_v_ref, b_av_ref,
                               w_head_av_ref, w_head_cv_ref, b_head_ref,
                               out_ref, acvc_ref, *, tb, t, b):
    f32, bf16 = jnp.float32, jnp.bfloat16
    hw = vis_ref.shape[-1]
    rows = tb * t

    # visual frontend + fused visual-side QKV over all tb*t rows (big-M matmuls)
    vis = vis_ref[...].reshape(rows, hw)                                     # bf16
    v_emb = jnp.dot(vis, w_vf_ref[...], preferred_element_type=f32) + b_vf_ref[...]
    v_qkv = jnp.dot(v_emb.astype(bf16), w_vqkv_ref[...], preferred_element_type=f32)

    if b == 1:
        # common case: one audio batch, hoist the (t, 3D) load out of the loop
        aq_shared = aqkv_ref[0]

    chunk0 = pl.program_id(0) * tb

    def attend(q, k, v):
        # 1/sqrt(D) scale already folded into the packed query weights
        s = jax.lax.dot_general(q, k, (((1,), (1,)), ((), ())),
                                preferred_element_type=f32)                  # (t, t)
        s = s - jnp.max(s, axis=-1, keepdims=True)
        p = jnp.exp(s)
        p = p * pl.reciprocal(jnp.sum(p, axis=-1, keepdims=True), approx=True)
        return jnp.dot(p.astype(bf16), v, preferred_element_type=f32)

    # tiny per-sequence t x t cross attentions (unrolled; tb is small/static)
    for j in range(tb):
        if b == 1:
            aq = aq_shared
        else:
            # audio `.repeat(s,1,1)` replay: output row i uses audio batch i % b
            aq = aqkv_ref[jax.lax.rem(chunk0 + j, b)]
        q_a = aq[:, 0:D]
        k_a = aq[:, D:2 * D]
        v_a = aq[:, 2 * D:3 * D]
        vq = v_qkv[j * t:(j + 1) * t, :]
        q_v = vq[:, 0:D].astype(bf16)
        k_v = vq[:, D:2 * D].astype(bf16)
        v_v = vq[:, 2 * D:3 * D].astype(bf16)

        a_c = attend(q_a, k_v, v_v)        # audio attends to visual
        v_c = attend(q_v, k_a, v_a)        # visual attends to audio
        # pack into one lane-dense (rows, 2D) VMEM buffer
        acvc_ref[j * t:(j + 1) * t, 0:D] = a_c
        acvc_ref[j * t:(j + 1) * t, D:2 * D] = v_c

    acvc = acvc_ref[...]                                                     # (rows, 2D) f32
    acvc_bf = acvc.astype(bf16)

    # AV backend: relu(concat(a_c, v_c) @ W_av + b) via split-weight matmuls
    av = jnp.dot(acvc_bf[:, 0:D], w_av_a_ref[...], preferred_element_type=f32)
    av = av + jnp.dot(acvc_bf[:, D:2 * D], w_av_v_ref[...], preferred_element_type=f32)
    av = jnp.maximum(av + b_av_ref[...], 0.0)                                # (rows, 2D)

    # all three classification heads in one packed (rows, 8) logit projection
    logits = jnp.dot(av.astype(bf16), w_head_av_ref[...], preferred_element_type=f32)
    logits = logits + jnp.dot(acvc_bf, w_head_cv_ref[...], preferred_element_type=f32)
    logits = logits + b_head_ref[...]

    lm = labmask_ref[...].reshape(rows, 2)
    lab = lm[:, 0:1]
    msk = lm[:, 1:2]

    def head_ce(l0, l1):
        m = jnp.maximum(l0, l1)
        lse = m + jnp.log(jnp.exp(l0 - m) + jnp.exp(l1 - m))
        tgt = jnp.where(lab > 0.5, l1, l0)
        num = jnp.sum((lse - tgt) * msk)                 # masked CE numerator
        pred = (l1 > l0).astype(f32)
        corr = jnp.sum((pred == lab).astype(f32) * msk)  # masked correct count
        return num, corr

    nav, corr = head_ce(logits[:, 0:1], logits[:, 1:2])
    na, _ = head_ce(logits[:, 2:3], logits[:, 3:4])
    nv, _ = head_ce(logits[:, 4:5], logits[:, 5:6])
    msum = jnp.sum(msk)

    # lane-dense (1,1,128) partial-sum row: one unmasked 128-lane store per step
    lane = jax.lax.broadcasted_iota(jnp.int32, (1, 1, 128), 2)
    row = jnp.where(lane == 0, nav, 0.0)
    row = jnp.where(lane == 1, na, row)
    row = jnp.where(lane == 2, nv, row)
    row = jnp.where(lane == 3, corr, row)
    row = jnp.where(lane == 4, msum, row)
    out_ref[...] = row


# ----------------------------- model wrapper -----------------------------

def _choose_tb(bs, t, hw):
    """Sequences per grid step: big M for the MXU, bounded VMEM, >=2 grid steps."""
    # keep the double-buffered bf16 visual block under ~6 MiB, and at most 1024 rows
    max_rows = max(t, min(1024, (6 * 1024 * 1024) // max(1, 4 * hw)))
    divs = [d for d in range(1, bs + 1) if bs % d == 0]
    cands = [d for d in divs if d * t <= max_rows] or [1]
    tb = max(cands)
    if tb == bs and bs > 1:
        # keep at least 2 grid steps so v7x megacore can feed both TensorCores
        tb = max(d for d in divs if d < bs)
    return tb


def init_params(key, da, vdim):
    ks = jax.random.split(key, 12)
    sc = 0.05
    w = lambda i, shape: jax.random.normal(ks[i], shape, jnp.float32) * sc
    return {
        "W_af": w(0, (da, D)), "b_af": jnp.zeros((D,), jnp.float32),
        "W_vf": w(1, (vdim, D)), "b_vf": jnp.zeros((D,), jnp.float32),
        "Wq_a2v": w(2, (D, D)), "Wk_a2v": w(3, (D, D)), "Wv_a2v": w(4, (D, D)),
        "Wq_v2a": w(5, (D, D)), "Wk_v2a": w(6, (D, D)), "Wv_v2a": w(7, (D, D)),
        "W_av": w(8, (2 * D, 2 * D)), "b_av": jnp.zeros((2 * D,), jnp.float32),
        "W_fcAV": w(9, (2 * D, 2)), "b_fcAV": jnp.zeros((2,), jnp.float32),
        "W_fcA": w(10, (D, 2)), "b_fcA": jnp.zeros((2,), jnp.float32),
        "W_fcV": w(11, (D, 2)), "b_fcV": jnp.zeros((2,), jnp.float32),
    }


def loconet_forward(params, audioFeature, visualFeature, labels, masks):
    f32, bf16 = jnp.float32, jnp.bfloat16
    b, s, t = visualFeature.shape[:3]
    bs = b * s
    visual = visualFeature.reshape(bs, t, -1).astype(bf16)       # (b*s, t, H*W)
    hw = visual.shape[-1]

    # ---- weight packing (once per trace): bf16 MXU operands, fused QKV with the
    #      softmax scale folded into the query columns, split AV weight, and the
    #      three FC heads packed into one (., 8) logit projection. ----
    scale = jnp.float32(1.0 / np.sqrt(D))
    w_af = params["W_af"].astype(bf16)
    w_vf = params["W_vf"].astype(bf16)
    w_aqkv = jnp.concatenate([params["Wq_a2v"] * scale, params["Wk_v2a"],
                              params["Wv_v2a"]], axis=1).astype(bf16)
    w_vqkv = jnp.concatenate([params["Wq_v2a"] * scale, params["Wk_a2v"],
                              params["Wv_a2v"]], axis=1).astype(bf16)
    w_av_a = params["W_av"][:D].astype(bf16)
    w_av_v = params["W_av"][D:].astype(bf16)
    b_af2 = params["b_af"].reshape(1, D)
    b_vf2 = params["b_vf"].reshape(1, D)
    b_av2 = params["b_av"].reshape(1, 2 * D)
    w_head_av = jnp.zeros((2 * D, _HEADS_N), f32).at[:, 0:2].set(
        params["W_fcAV"]).astype(bf16)
    w_head_cv = (jnp.zeros((2 * D, _HEADS_N), f32)
                 .at[0:D, 2:4].set(params["W_fcA"])
                 .at[D:, 4:6].set(params["W_fcV"])).astype(bf16)
    b_head = (jnp.zeros((1, _HEADS_N), f32)
              .at[0, 0:2].set(params["b_fcAV"])
              .at[0, 2:4].set(params["b_fcA"])
              .at[0, 4:6].set(params["b_fcV"]))

    labels_2d = labels.reshape(bs, t)
    masks_2d = masks.reshape(bs, t).astype(f32)
    labmask = jnp.stack([labels_2d.astype(f32), masks_2d], axis=-1)          # (bs, t, 2)

    # TalkNCE active-frame mask for sequence 0 (static shape -> no retraces)
    act = (labels_2d[0] == 1).astype(f32)                                    # (t,)
    act_col = act.reshape(1, t)
    act_row = act.reshape(t, 1)

    # ---- kernel 1: audio frontend + fused audio QKV + TalkNCE ----
    aqkv_all, nce_row = pl.pallas_call(
        functools.partial(_frontend_nce_kernel, b=b, t=t),
        out_shape=(jax.ShapeDtypeStruct((b, t, 3 * D), bf16),
                   jax.ShapeDtypeStruct((1, 128), f32)),
    )(audioFeature.astype(bf16), visual[0:1], act_col, act_row,
      w_af, b_af2, w_vf, b_vf2, w_aqkv)

    # ---- kernel 2: everything else, fused; only per-chunk partial sums leave VMEM ----
    tb = _choose_tb(bs, t, hw)
    n_chunks = bs // tb
    const = _resident_spec

    partials = pl.pallas_call(
        functools.partial(_fused_forward_loss_kernel, tb=tb, t=t, b=b),
        out_shape=jax.ShapeDtypeStruct((n_chunks, 1, 128), f32),
        grid=(n_chunks,),
        in_specs=[
            pl.BlockSpec((tb, t, hw), lambda c: (c, 0, 0)),          # visual chunk
            const((b, t, 3 * D), lambda c: (0, 0, 0)),               # audio QKV (resident)
            pl.BlockSpec((tb, t, 2), lambda c: (c, 0, 0)),           # labels|masks
            const((hw, D), lambda c: (0, 0)),                        # W_vf
            const((1, D), lambda c: (0, 0)),                         # b_vf
            const((D, 3 * D), lambda c: (0, 0)),                     # W_vqkv
            const((D, 2 * D), lambda c: (0, 0)),                     # W_av (top)
            const((D, 2 * D), lambda c: (0, 0)),                     # W_av (bottom)
            const((1, 2 * D), lambda c: (0, 0)),                     # b_av
            const((2 * D, _HEADS_N), lambda c: (0, 0)),              # packed head W (AV)
            const((2 * D, _HEADS_N), lambda c: (0, 0)),              # packed head W (A|V)
            const((1, _HEADS_N), lambda c: (0, 0)),                  # packed head bias
        ],
        out_specs=pl.BlockSpec((1, 1, 128), lambda c: (c, 0, 0)),
        scratch_shapes=[pltpu.VMEM((tb * t, 2 * D), f32)],
        compiler_params=pltpu.CompilerParams(
            dimension_semantics=("parallel",),
            vmem_limit_bytes=48 * 1024 * 1024),      # explicit; fits v5e/v6e/v7x budgets
    )(visual, aqkv_all, labmask,
      w_vf, b_vf2, w_vqkv, w_av_a, w_av_v, b_av2,
      w_head_av, w_head_cv, b_head)

    sums = jnp.sum(partials[:, 0, :], axis=0)                   # tiny XLA reduction
    num_frames = sums[4]
    denom = jnp.maximum(num_frames, 1.0)   # clamp: all-masked-out batch -> 0, not NaN
    loss_av = sums[0] / denom
    loss_a = sums[1] / denom
    loss_v = sums[2] / denom
    prec = sums[3]                         # masked count of correct AV predictions
    nce = nce_row[0, 0]
    nloss = loss_av + 0.4 * loss_a + 0.4 * loss_v + 0.3 * nce
    return nloss, prec, num_frames


if __name__ == "__main__":
    key = jax.random.PRNGKey(0)
    b, s, t = 1, 4, 8
    HP, WP = 16, 16
    DA = 16

    kA, kV, kP = jax.random.split(key, 3)
    audioFeature = jax.random.normal(kA, (b, t, DA), jnp.float32)
    visualFeature = jax.random.normal(kV, (b, s, t, HP, WP), jnp.float32)
    labels = jnp.asarray((np.arange(b * s * t).reshape(b, s, t) % 3 == 0).astype(np.int32))
    masks = jnp.ones((b, s, t), jnp.float32)

    params = init_params(kP, DA, HP * WP)

    fwd = jax.jit(loconet_forward)
    nloss, prec, num_frames = fwd(params, audioFeature, visualFeature, labels, masks)
    jax.block_until_ready((nloss, prec, num_frames))
    assert np.isfinite(float(nloss)) and np.isfinite(float(prec)) and np.isfinite(float(num_frames))
    print("KERNEL_OK")
</pallas_src>

<mosaic_0001>
module attributes {stable_mosaic.version = 11 : i64} {
  func.func @_frontend_nce_kernel(%arg0: memref<1x8x16xbf16, #tpu.memory_space<vmem>>, %arg1: memref<1x8x256xbf16, #tpu.memory_space<vmem>>, %arg2: memref<1x8xf32, #tpu.memory_space<vmem>>, %arg3: memref<8x1xf32, #tpu.memory_space<vmem>>, %arg4: memref<16x128xbf16, #tpu.memory_space<vmem>>, %arg5: memref<1x128xf32, #tpu.memory_space<vmem>>, %arg6: memref<256x128xbf16, #tpu.memory_space<vmem>>, %arg7: memref<1x128xf32, #tpu.memory_space<vmem>>, %arg8: memref<128x384xbf16, #tpu.memory_space<vmem>>, %arg9: memref<1x8x384xbf16, #tpu.memory_space<vmem>>, %arg10: memref<1x128xf32, #tpu.memory_space<vmem>>) attributes {dimension_semantics = [], scalar_prefetch = 0 : i64, scratch_operands = 0 : i64, tpu.core_type = #tpu.core_type<tc>} {
    %c0 = arith.constant 0 : index
    %c0_0 = arith.constant 0 : index
    %c0_1 = arith.constant 0 : index
    %0 = vector.load %arg0[%c0, %c0_0, %c0_1] : memref<1x8x16xbf16, #tpu.memory_space<vmem>>, vector<1x8x16xbf16>
    %1 = vector.shape_cast %0 : vector<1x8x16xbf16> to vector<8x16xbf16>
    %c0_2 = arith.constant 0 : index
    %c0_3 = arith.constant 0 : index
    %2 = vector.load %arg4[%c0_2, %c0_3] : memref<16x128xbf16, #tpu.memory_space<vmem>>, vector<16x128xbf16>
    %cst = arith.constant dense<0.000000e+00> : vector<8x128xf32>
    %3 = tpu.matmul %1, %2, %cst {dimension_numbers = #tpu.dot_dimension_numbers<[1], [0], [0], [1], [0, 0, 1, 1], [], []>} : vector<8x16xbf16>, vector<16x128xbf16>, vector<8x128xf32> -> vector<8x128xf32>
    %c0_4 = arith.constant 0 : index
    %c0_5 = arith.constant 0 : index
    %4 = vector.load %arg5[%c0_4, %c0_5] : memref<1x128xf32, #tpu.memory_space<vmem>>, vector<1x128xf32>
    %5 = vector.broadcast %4 : vector<1x128xf32> to vector<8x128xf32>
    %6 = arith.addf %3, %5 : vector<8x128xf32>
    %7 = arith.truncf %6 : vector<8x128xf32> to vector<8x128xbf16>
    %c0_6 = arith.constant 0 : index
    %c0_7 = arith.constant 0 : index
    %8 = vector.load %arg8[%c0_6, %c0_7] : memref<128x384xbf16, #tpu.memory_space<vmem>>, vector<128x384xbf16>
    %cst_8 = arith.constant dense<0.000000e+00> : vector<8x384xf32>
    %9 = tpu.matmul %7, %8, %cst_8 {dimension_numbers = #tpu.dot_dimension_numbers<[1], [0], [0], [1], [0, 0, 1, 1], [], []>} : vector<8x128xbf16>, vector<128x384xbf16>, vector<8x384xf32> -> vector<8x384xf32>
    %10 = arith.truncf %9 : vector<8x384xf32> to vector<8x384xbf16>
    %11 = vector.shape_cast %10 : vector<8x384xbf16> to vector<1x8x384xbf16>
    %c0_9 = arith.constant 0 : index
    %c0_10 = arith.constant 0 : index
    %c0_11 = arith.constant 0 : index
    %12 = vector.load %arg9[%c0_9, %c0_10, %c0_11] : memref<1x8x384xbf16, #tpu.memory_space<vmem>>, vector<1x8x384xbf16>
    tpu.vector_store %arg9[%c0_9, %c0_10, %c0_11], %11 {strides = array<i32>} : memref<1x8x384xbf16, #tpu.memory_space<vmem>>, vector<1x8x384xbf16>,
    %c0_12 = arith.constant 0 : index
    %c0_13 = arith.constant 0 : index
    %c0_14 = arith.constant 0 : index
    %13 = vector.load %arg1[%c0_12, %c0_13, %c0_14] : memref<1x8x256xbf16, #tpu.memory_space<vmem>>, vector<1x8x256xbf16>
    %14 = vector.shape_cast %13 : vector<1x8x256xbf16> to vector<8x256xbf16>
    %c0_15 = arith.constant 0 : index
    %c0_16 = arith.constant 0 : index
    %15 = vector.load %arg6[%c0_15, %c0_16] : memref<256x128xbf16, #tpu.memory_space<vmem>>, vector<256x128xbf16>
    %cst_17 = arith.constant dense<0.000000e+00> : vector<8x128xf32>
    %16 = tpu.matmul %14, %15, %cst_17 {dimension_numbers = #tpu.dot_dimension_numbers<[1], [0], [0], [1], [0, 0, 1, 1], [], []>} : vector<8x256xbf16>, vector<256x128xbf16>, vector<8x128xf32> -> vector<8x128xf32>
    %c0_18 = arith.constant 0 : index
    %c0_19 = arith.constant 0 : index
    %17 = vector.load %arg7[%c0_18, %c0_19] : memref<1x128xf32, #tpu.memory_space<vmem>>, vector<1x128xf32>
    %18 = vector.broadcast %17 : vector<1x128xf32> to vector<8x128xf32>
    %19 = arith.addf %16, %18 : vector<8x128xf32>
    %20 = arith.mulf %19, %19 : vector<8x128xf32>
    %cst_20 = arith.constant dense<0.000000e+00> : vector<8xf32>
    %21 = vector.multi_reduction <add>, %20, %cst_20 [1] : vector<8x128xf32> to vector<8xf32>
    %22 = vector.shape_cast %21 : vector<8xf32> to vector<8x1xf32>
    %cst_21 = arith.constant 1.000000e-24 : f32
    %23 = vector.broadcast %cst_21 : f32 to vector<8x1xf32>
    %24 = arith.maximumf %22, %23 : vector<8x1xf32>
    %25 = math.rsqrt %24 : vector<8x1xf32>
    %26 = vector.broadcast %25 : vector<8x1xf32> to vector<8x128xf32>
    %27 = arith.mulf %19, %26 : vector<8x128xf32>
    %28 = arith.mulf %6, %6 : vector<8x128xf32>
    %cst_22 = arith.constant dense<0.000000e+00> : vector<8xf32>
    %29 = vector.multi_reduction <add>, %28, %cst_22 [1] : vector<8x128xf32> to vector<8xf32>
    %30 = vector.shape_cast %29 : vector<8xf32> to vector<8x1xf32>
    %cst_23 = arith.constant 1.000000e-24 : f32
    %31 = vector.broadcast %cst_23 : f32 to vector<8x1xf32>
    %32 = arith.maximumf %30, %31 : vector<8x1xf32>
    %33 = math.rsqrt %32 : vector<8x1xf32>
    %34 = vector.broadcast %33 : vector<8x1xf32> to vector<8x128xf32>
    %35 = arith.mulf %6, %34 : vector<8x128xf32>
    %cst_24 = arith.constant dense<0.000000e+00> : vector<8x8xf32>
    %36 = tpu.matmul %27, %35, %cst_24 {dimension_numbers = #tpu.dot_dimension_numbers<[1], [1], [0], [0], [0, 0, 1, 0], [], []>} : vector<8x128xf32>, vector<8x128xf32>, vector<8x8xf32> -> vector<8x8xf32>
    %cst_25 = arith.constant 14.2857141 : f32
    %37 = vector.broadcast %cst_25 : f32 to vector<8x8xf32>
    %38 = arith.mulf %36, %37 : vector<8x8xf32>
    %39 = arith.mulf %27, %35 : vector<8x128xf32>
    %cst_26 = arith.constant dense<0.000000e+00> : vector<8xf32>
    %40 = vector.multi_reduction <add>, %39, %cst_26 [1] : vector<8x128xf32> to vector<8xf32>
    %41 = vector.shape_cast %40 : vector<8xf32> to vector<8x1xf32>
    %cst_27 = arith.constant 14.2857141 : f32
    %42 = vector.broadcast %cst_27 : f32 to vector<8x1xf32>
    %43 = arith.mulf %41, %42 : vector<8x1xf32>
    %c0_28 = arith.constant 0 : index
    %c0_29 = arith.constant 0 : index
    %44 = vector.load %arg2[%c0_28, %c0_29] : memref<1x8xf32, #tpu.memory_space<vmem>>, vector<1x8xf32>
    %c0_30 = arith.constant 0 : index
    %c0_31 = arith.constant 0 : index
    %45 = vector.load %arg3[%c0_30, %c0_31] : memref<8x1xf32, #tpu.memory_space<vmem>>, vector<8x1xf32>
    %cst_32 = arith.constant 5.000000e-01 : f32
    %46 = vector.broadcast %cst_32 : f32 to vector<1x8xf32>
    %47 = arith.cmpf ogt, %44, %46 : vector<1x8xf32>
    %cst_33 = arith.constant -1.000000e+30 : f32
    %48 = vector.shape_cast %47 : vector<1x8xi1> to vector<1x8xi1>
    %49 = vector.broadcast %48 : vector<1x8xi1> to vector<8x8xi1>
    %50 = vector.broadcast %cst_33 : f32 to vector<8x8xf32>
    %51 = arith.select %49, %38, %50 : vector<8x8xi1>, vector<8x8xf32>
    %cst_34 = arith.constant dense<0xFF800000> : vector<8xf32>
    %52 = vector.multi_reduction <maximumf>, %51, %cst_34 [1] : vector<8x8xf32> to vector<8xf32>
    %53 = vector.shape_cast %52 : vector<8xf32> to vector<8x1xf32>
    %54 = vector.broadcast %53 : vector<8x1xf32> to vector<8x8xf32>
    %55 = arith.subf %51, %54 : vector<8x8xf32>
    %56 = math.exp %55 : vector<8x8xf32>
    %cst_35 = arith.constant dense<0.000000e+00> : vector<8xf32>
    %57 = vector.multi_reduction <add>, %56, %cst_35 [1] : vector<8x8xf32> to vector<8xf32>
    %58 = vector.shape_cast %57 : vector<8xf32> to vector<8x1xf32>
    %59 = math.log %58 : vector<8x1xf32>
    %60 = arith.addf %53, %59 : vector<8x1xf32>
    %61 = arith.subf %60, %43 : vector<8x1xf32>
    %62 = vector.shape_cast %45 : vector<8x1xf32> to vector<1x8x1xf32>
    %cst_36 = arith.constant dense<0.000000e+00> : vector<1xf32>
    %63 = vector.multi_reduction <add>, %62, %cst_36 [1, 2] : vector<1x8x1xf32> to vector<1xf32>
    %64 = vector.shape_cast %63 : vector<1xf32> to vector<1x1x1xf32>
    %65 = vector.extract %64[0, 0, 0] : f32 from vector<1x1x1xf32>
    %cst_37 = arith.constant 5.000000e-01 : f32
    %66 = arith.cmpf ogt, %65, %cst_37 : f32
    %67 = arith.mulf %61, %45 : vector<8x1xf32>
    %68 = vector.shape_cast %67 : vector<8x1xf32> to vector<1x8x1xf32>
    %cst_38 = arith.constant dense<0.000000e+00> : vector<1xf32>
    %69 = vector.multi_reduction <add>, %68, %cst_38 [1, 2] : vector<1x8x1xf32> to vector<1xf32>
    %70 = vector.shape_cast %69 : vector<1xf32> to vector<1x1x1xf32>
    %71 = vector.extract %70[0, 0, 0] : f32 from vector<1x1x1xf32>
    %cst_39 = arith.constant 1.000000e+00 : f32
    %72 = arith.maximumf %65, %cst_39 : f32
    %73 = arith.divf %71, %72 : f32
    %cst_40 = arith.constant 0.000000e+00 : f32
    %74 = arith.select %66, %73, %cst_40 : f32
    %75 = tpu.iota {dimensions = array<i32: 1>} : vector<1x128xi32>
    %c0_i32 = arith.constant 0 : i32
    %76 = vector.broadcast %c0_i32 : i32 to vector<1x128xi32>
    %77 = arith.cmpi eq, %75, %76 : vector<1x128xi32>
    %cst_41 = arith.constant 0.000000e+00 : f32
    %78 = vector.broadcast %74 : f32 to vector<1x128xf32>
    %79 = vector.broadcast %cst_41 : f32 to vector<1x128xf32>
    %80 = arith.select %77, %78, %79 : vector<1x128xi1>, vector<1x128xf32>
    %c0_42 = arith.constant 0 : index
    %c0_43 = arith.constant 0 : index
    %81 = vector.load %arg10[%c0_42, %c0_43] : memref<1x128xf32, #tpu.memory_space<vmem>>, vector<1x128xf32>
    tpu.vector_store %arg10[%c0_42, %c0_43], %80 {strides = array<i32>} : memref<1x128xf32, #tpu.memory_space<vmem>>, vector<1x128xf32>,
    return
  }
}

module attributes {stable_mosaic.version = 11 : i64} {
  func.func @_fused_forward_loss_kernel(%arg0: i32, %arg1: memref<2x8x256xbf16, #tpu.memory_space<vmem>>, %arg2: memref<1x8x384xbf16, #tpu.memory_space<vmem>>, %arg3: memref<2x8x2xf32, #tpu.memory_space<vmem>>, %arg4: memref<256x128xbf16, #tpu.memory_space<vmem>>, %arg5: memref<1x128xf32, #tpu.memory_space<vmem>>, %arg6: memref<128x384xbf16, #tpu.memory_space<vmem>>, %arg7: memref<128x256xbf16, #tpu.memory_space<vmem>>, %arg8: memref<128x256xbf16, #tpu.memory_space<vmem>>, %arg9: memref<1x256xf32, #tpu.memory_space<vmem>>, %arg10: memref<256x8xbf16, #tpu.memory_space<vmem>>, %arg11: memref<256x8xbf16, #tpu.memory_space<vmem>>, %arg12: memref<1x8xf32, #tpu.memory_space<vmem>>, %arg13: memref<1x1x128xf32, #tpu.memory_space<vmem>>, %arg14: memref<16x256xf32, #tpu.memory_space<vmem>>) attributes {dimension_semantics = [#tpu.dimension_semantics<parallel>], iteration_bounds = array<i64: 2>, scalar_prefetch = 0 : i64, scratch_operands = 1 : i64, tpu.core_type = #tpu.core_type<tc>, window_params = [{transform_indices = @transform_0, window_bounds = array<i64: 2, 8, 256>}, {pipeline_mode = #tpu.pipeline_mode<synchronous>, transform_indices = @transform_1, window_bounds = array<i64: 1, 8, 384>}, {transform_indices = @transform_2, window_bounds = array<i64: 2, 8, 2>}, {pipeline_mode = #tpu.pipeline_mode<synchronous>, transform_indices = @transform_3, window_bounds = array<i64: 256, 128>}, {pipeline_mode = #tpu.pipeline_mode<synchronous>, transform_indices = @transform_4, window_bounds = array<i64: 1, 128>}, {pipeline_mode = #tpu.pipeline_mode<synchronous>, transform_indices = @transform_5, window_bounds = array<i64: 128, 384>}, {pipeline_mode = #tpu.pipeline_mode<synchronous>, transform_indices = @transform_6, window_bounds = array<i64: 128, 256>}, {pipeline_mode = #tpu.pipeline_mode<synchronous>, transform_indices = @transform_7, window_bounds = array<i64: 128, 256>}, {pipeline_mode = #tpu.pipeline_mode<synchronous>, transform_indices = @transform_8, window_bounds = array<i64: 1, 256>}, {pipeline_mode = #tpu.pipeline_mode<synchronous>, transform_indices = @transform_9, window_bounds = array<i64: 256, 8>}, {pipeline_mode = #tpu.pipeline_mode<synchronous>, transform_indices = @transform_10, window_bounds = array<i64: 256, 8>}, {pipeline_mode = #tpu.pipeline_mode<synchronous>, transform_indices = @transform_11, window_bounds = array<i64: 1, 8>}, {transform_indices = @transform_12, window_bounds = array<i64: 1, 1, 128>}]} {
    %c0 = arith.constant 0 : index
    %c0_0 = arith.constant 0 : index
    %c0_1 = arith.constant 0 : index
    %0 = vector.load %arg1[%c0, %c0_0, %c0_1] : memref<2x8x256xbf16, #tpu.memory_space<vmem>>, vector<2x8x256xbf16>
    %1 = vector.shape_cast %0 : vector<2x8x256xbf16> to vector<16x256xbf16>
    %c0_2 = arith.constant 0 : index
    %c0_3 = arith.constant 0 : index
    %2 = vector.load %arg4[%c0_2, %c0_3] : memref<256x128xbf16, #tpu.memory_space<vmem>>, vector<256x128xbf16>
    %cst = arith.constant dense<0.000000e+00> : vector<16x128xf32>
    %3 = tpu.matmul %1, %2, %cst {dimension_numbers = #tpu.dot_dimension_numbers<[1], [0], [0], [1], [0, 0, 1, 1], [], []>} : vector<16x256xbf16>, vector<256x128xbf16>, vector<16x128xf32> -> vector<16x128xf32>
    %c0_4 = arith.constant 0 : index
    %c0_5 = arith.constant 0 : index
    %4 = vector.load %arg5[%c0_4, %c0_5] : memref<1x128xf32, #tpu.memory_space<vmem>>, vector<1x128xf32>
    %5 = vector.broadcast %4 : vector<1x128xf32> to vector<16x128xf32>
    %6 = arith.addf %3, %5 : vector<16x128xf32>
    %7 = arith.truncf %6 : vector<16x128xf32> to vector<16x128xbf16>
    %c0_6 = arith.constant 0 : index
    %c0_7 = arith.constant 0 : index
    %8 = vector.load %arg6[%c0_6, %c0_7] : memref<128x384xbf16, #tpu.memory_space<vmem>>, vector<128x384xbf16>
    %cst_8 = arith.constant dense<0.000000e+00> : vector<16x384xf32>
    %9 = tpu.matmul %7, %8, %cst_8 {dimension_numbers = #tpu.dot_dimension_numbers<[1], [0], [0], [1], [0, 0, 1, 1], [], []>} : vector<16x128xbf16>, vector<128x384xbf16>, vector<16x384xf32> -> vector<16x384xf32>
    %c0_9 = arith.constant 0 : index
    %c0_10 = arith.constant 0 : index
    %c0_11 = arith.constant 0 : index
    %10 = vector.load %arg2[%c0_9, %c0_10, %c0_11] : memref<1x8x384xbf16, #tpu.memory_space<vmem>>, vector<1x8x384xbf16>
    %11 = vector.shape_cast %10 : vector<1x8x384xbf16> to vector<8x384xbf16>
    %12 = vector.extract_strided_slice %11 {offsets = [0, 0], sizes = [8, 128], strides = [1, 1]} : vector<8x384xbf16> to vector<8x128xbf16>
    %13 = vector.extract_strided_slice %11 {offsets = [0, 128], sizes = [8, 128], strides = [1, 1]} : vector<8x384xbf16> to vector<8x128xbf16>
    %14 = vector.extract_strided_slice %11 {offsets = [0, 256], sizes = [8, 128], strides = [1, 1]} : vector<8x384xbf16> to vector<8x128xbf16>
    %15 = vector.extract_strided_slice %9 {offsets = [0, 0], sizes = [8, 384], strides = [1, 1]} : vector<16x384xf32> to vector<8x384xf32>
    %16 = vector.extract_strided_slice %15 {offsets = [0, 0], sizes = [8, 128], strides = [1, 1]} : vector<8x384xf32> to vector<8x128xf32>
    %17 = arith.truncf %16 : vector<8x128xf32> to vector<8x128xbf16>
    %18 = vector.extract_strided_slice %15 {offsets = [0, 128], sizes = [8, 128], strides = [1, 1]} : vector<8x384xf32> to vector<8x128xf32>
    %19 = arith.truncf %18 : vector<8x128xf32> to vector<8x128xbf16>
    %20 = vector.extract_strided_slice %15 {offsets = [0, 256], sizes = [8, 128], strides = [1, 1]} : vector<8x384xf32> to vector<8x128xf32>
    %21 = arith.truncf %20 : vector<8x128xf32> to vector<8x128xbf16>
    %cst_12 = arith.constant dense<0.000000e+00> : vector<8x8xf32>
    %22 = tpu.matmul %12, %19, %cst_12 {dimension_numbers = #tpu.dot_dimension_numbers<[1], [1], [0], [0], [0, 0, 1, 0], [], []>} : vector<8x128xbf16>, vector<8x128xbf16>, vector<8x8xf32> -> vector<8x8xf32>
    %cst_13 = arith.constant dense<0xFF800000> : vector<8xf32>
    %23 = vector.multi_reduction <maximumf>, %22, %cst_13 [1] : vector<8x8xf32> to vector<8xf32>
    %24 = vector.shape_cast %23 : vector<8xf32> to vector<8x1xf32>
    %25 = vector.broadcast %24 : vector<8x1xf32> to vector<8x8xf32>
    %26 = arith.subf %22, %25 : vector<8x8xf32>
    %27 = math.exp %26 : vector<8x8xf32>
    %cst_14 = arith.constant dense<0.000000e+00> : vector<8xf32>
    %28 = vector.multi_reduction <add>, %27, %cst_14 [1] : vector<8x8xf32> to vector<8xf32>
    %29 = vector.shape_cast %28 : vector<8xf32> to vector<8x1xf32>
    %30 = tpu.reciprocal %29 {approx = true} : vector<8x1xf32> -> vector<8x1xf32>
    %31 = vector.broadcast %30 : vector<8x1xf32> to vector<8x8xf32>
    %32 = arith.mulf %27, %31 : vector<8x8xf32>
    %33 = arith.truncf %32 : vector<8x8xf32> to vector<8x8xbf16>
    %cst_15 = arith.constant dense<0.000000e+00> : vector<8x128xf32>
    %34 = tpu.matmul %33, %21, %cst_15 {dimension_numbers = #tpu.dot_dimension_numbers<[1], [0], [0], [1], [0, 0, 1, 1], [], []>} : vector<8x8xbf16>, vector<8x128xbf16>, vector<8x128xf32> -> vector<8x128xf32>
    %cst_16 = arith.constant dense<0.000000e+00> : vector<8x8xf32>
    %35 = tpu.matmul %17, %13, %cst_16 {dimension_numbers = #tpu.dot_dimension_numbers<[1], [1], [0], [0], [0, 0, 1, 0], [], []>} : vector<8x128xbf16>, vector<8x128xbf16>, vector<8x8xf32> -> vector<8x8xf32>
    %cst_17 = arith.constant dense<0xFF800000> : vector<8xf32>
    %36 = vector.multi_reduction <maximumf>, %35, %cst_17 [1] : vector<8x8xf32> to vector<8xf32>
    %37 = vector.shape_cast %36 : vector<8xf32> to vector<8x1xf32>
    %38 = vector.broadcast %37 : vector<8x1xf32> to vector<8x8xf32>
    %39 = arith.subf %35, %38 : vector<8x8xf32>
    %40 = math.exp %39 : vector<8x8xf32>
    %cst_18 = arith.constant dense<0.000000e+00> : vector<8xf32>
    %41 = vector.multi_reduction <add>, %40, %cst_18 [1] : vector<8x8xf32> to vector<8xf32>
    %42 = vector.shape_cast %41 : vector<8xf32> to vector<8x1xf32>
    %43 = tpu.reciprocal %42 {approx = true} : vector<8x1xf32> -> vector<8x1xf32>
    %44 = vector.broadcast %43 : vector<8x1xf32> to vector<8x8xf32>
    %45 = arith.mulf %40, %44 : vector<8x8xf32>
    %46 = arith.truncf %45 : vector<8x8xf32> to vector<8x8xbf16>
    %cst_19 = arith.constant dense<0.000000e+00> : vector<8x128xf32>
    %47 = tpu.matmul %46, %14, %cst_19 {dimension_numbers = #tpu.dot_dimension_numbers<[1], [0], [0], [1], [0, 0, 1, 1], [], []>} : vector<8x8xbf16>, vector<8x128xbf16>, vector<8x128xf32> -> vector<8x128xf32>
    %c0_20 = arith.constant 0 : index
    %c0_21 = arith.constant 0 : index
    %48 = vector.load %arg14[%c0_20, %c0_21] : memref<16x256xf32, #tpu.memory_space<vmem>>, vector<8x128xf32>
    tpu.vector_store %arg14[%c0_20, %c0_21], %34 {strides = array<i32>} : memref<16x256xf32, #tpu.memory_space<vmem>>, vector<8x128xf32>,
    %c0_22 = arith.constant 0 : index
    %c128 = arith.constant 128 : index
    %49 = vector.load %arg14[%c0_22, %c128] : memref<16x256xf32, #tpu.memory_space<vmem>>, vector<8x128xf32>
    tpu.vector_store %arg14[%c0_22, %c128], %47 {strides = array<i32>} : memref<16x256xf32, #tpu.memory_space<vmem>>, vector<8x128xf32>,
    %50 = vector.extract_strided_slice %11 {offsets = [0, 0], sizes = [8, 128], strides = [1, 1]} : vector<8x384xbf16> to vector<8x128xbf16>
    %51 = vector.extract_strided_slice %11 {offsets = [0, 128], sizes = [8, 128], strides = [1, 1]} : vector<8x384xbf16> to vector<8x128xbf16>
    %52 = vector.extract_strided_slice %11 {offsets = [0, 256], sizes = [8, 128], strides = [1, 1]} : vector<8x384xbf16> to vector<8x128xbf16>
    %53 = vector.extract_strided_slice %9 {offsets = [8, 0], sizes = [8, 384], strides = [1, 1]} : vector<16x384xf32> to vector<8x384xf32>
    %54 = vector.extract_strided_slice %53 {offsets = [0, 0], sizes = [8, 128], strides = [1, 1]} : vector<8x384xf32> to vector<8x128xf32>
    %55 = arith.truncf %54 : vector<8x128xf32> to vector<8x128xbf16>
    %56 = vector.extract_strided_slice %53 {offsets = [0, 128], sizes = [8, 128], strides = [1, 1]} : vector<8x384xf32> to vector<8x128xf32>
    %57 = arith.truncf %56 : vector<8x128xf32> to vector<8x128xbf16>
    %58 = vector.extract_strided_slice %53 {offsets = [0, 256], sizes = [8, 128], strides = [1, 1]} : vector<8x384xf32> to vector<8x128xf32>
    %59 = arith.truncf %58 : vector<8x128xf32> to vector<8x128xbf16>
    %cst_23 = arith.constant dense<0.000000e+00> : vector<8x8xf32>
    %60 = tpu.matmul %50, %57, %cst_23 {dimension_numbers = #tpu.dot_dimension_numbers<[1], [1], [0], [0], [0, 0, 1, 0], [], []>} : vector<8x128xbf16>, vector<8x128xbf16>, vector<8x8xf32> -> vector<8x8xf32>
    %cst_24 = arith.constant dense<0xFF800000> : vector<8xf32>
    %61 = vector.multi_reduction <maximumf>, %60, %cst_24 [1] : vector<8x8xf32> to vector<8xf32>
    %62 = vector.shape_cast %61 : vector<8xf32> to vector<8x1xf32>
    %63 = vector.broadcast %62 : vector<8x1xf32> to vector<8x8xf32>
    %64 = arith.subf %60, %63 : vector<8x8xf32>
    %65 = math.exp %64 : vector<8x8xf32>
    %cst_25 = arith.constant dense<0.000000e+00> : vector<8xf32>
    %66 = vector.multi_reduction <add>, %65, %cst_25 [1] : vector<8x8xf32> to vector<8xf32>
    %67 = vector.shape_cast %66 : vector<8xf32> to vector<8x1xf32>
    %68 = tpu.reciprocal %67 {approx = true} : vector<8x1xf32> -> vector<8x1xf32>
    %69 = vector.broadcast %68 : vector<8x1xf32> to vector<8x8xf32>
    %70 = arith.mulf %65, %69 : vector<8x8xf32>
    %71 = arith.truncf %70 : vector<8x8xf32> to vector<8x8xbf16>
    %cst_26 = arith.constant dense<0.000000e+00> : vector<8x128xf32>
    %72 = tpu.matmul %71, %59, %cst_26 {dimension_numbers = #tpu.dot_dimension_numbers<[1], [0], [0], [1], [0, 0, 1, 1], [], []>} : vector<8x8xbf16>, vector<8x128xbf16>, vector<8x128xf32> -> vector<8x128xf32>
    %cst_27 = arith.constant dense<0.000000e+00> : vector<8x8xf32>
    %73 = tpu.matmul %55, %51, %cst_27 {dimension_numbers = #tpu.dot_dimension_numbers<[1], [1], [0], [0], [0, 0, 1, 0], [], []>} : vector<8x128xbf16>, vector<8x128xbf16>, vector<8x8xf32> -> vector<8x8xf32>
    %cst_28 = arith.constant dense<0xFF800000> : vector<8xf32>
    %74 = vector.multi_reduction <maximumf>, %73, %cst_28 [1] : vector<8x8xf32> to vector<8xf32>
    %75 = vector.shape_cast %74 : vector<8xf32> to vector<8x1xf32>
    %76 = vector.broadcast %75 : vector<8x1xf32> to vector<8x8xf32>
    %77 = arith.subf %73, %76 : vector<8x8xf32>
    %78 = math.exp %77 : vector<8x8xf32>
    %cst_29 = arith.constant dense<0.000000e+00> : vector<8xf32>
    %79 = vector.multi_reduction <add>, %78, %cst_29 [1] : vector<8x8xf32> to vector<8xf32>
    %80 = vector.shape_cast %79 : vector<8xf32> to vector<8x1xf32>
    %81 = tpu.reciprocal %80 {approx = true} : vector<8x1xf32> -> vector<8x1xf32>
    %82 = vector.broadcast %81 : vector<8x1xf32> to vector<8x8xf32>
    %83 = arith.mulf %78, %82 : vector<8x8xf32>
    %84 = arith.truncf %83 : vector<8x8xf32> to vector<8x8xbf16>
    %cst_30 = arith.constant dense<0.000000e+00> : vector<8x128xf32>
    %85 = tpu.matmul %84, %52, %cst_30 {dimension_numbers = #tpu.dot_dimension_numbers<[1], [0], [0], [1], [0, 0, 1, 1], [], []>} : vector<8x8xbf16>, vector<8x128xbf16>, vector<8x128xf32> -> vector<8x128xf32>
    %c8 = arith.constant 8 : index
    %c0_31 = arith.constant 0 : index
    %86 = vector.load %arg14[%c8, %c0_31] : memref<16x256xf32, #tpu.memory_space<vmem>>, vector<8x128xf32>
    tpu.vector_store %arg14[%c8, %c0_31], %72 {strides = array<i32>} : memref<16x256xf32, #tpu.memory_space<vmem>>, vector<8x128xf32>,
    %c8_32 = arith.constant 8 : index
    %c128_33 = arith.constant 128 : index
    %87 = vector.load %arg14[%c8_32, %c128_33] : memref<16x256xf32, #tpu.memory_space<vmem>>, vector<8x128xf32>
    tpu.vector_store %arg14[%c8_32, %c128_33], %85 {strides = array<i32>} : memref<16x256xf32, #tpu.memory_space<vmem>>, vector<8x128xf32>,
    %c0_34 = arith.constant 0 : index
    %c0_35 = arith.constant 0 : index
    %88 = vector.load %arg14[%c0_34, %c0_35] : memref<16x256xf32, #tpu.memory_space<vmem>>, vector<16x256xf32>
    %89 = arith.truncf %88 : vector<16x256xf32> to vector<16x256xbf16>
    %90 = vector.extract_strided_slice %89 {offsets = [0, 0], sizes = [16, 128], strides = [1, 1]} : vector<16x256xbf16> to vector<16x128xbf16>
    %c0_36 = arith.constant 0 : index
    %c0_37 = arith.constant 0 : index
    %91 = vector.load %arg7[%c0_36, %c0_37] : memref<128x256xbf16, #tpu.memory_space<vmem>>, vector<128x256xbf16>
    %cst_38 = arith.constant dense<0.000000e+00> : vector<16x256xf32>
    %92 = tpu.matmul %90, %91, %cst_38 {dimension_numbers = #tpu.dot_dimension_numbers<[1], [0], [0], [1], [0, 0, 1, 1], [], []>} : vector<16x128xbf16>, vector<128x256xbf16>, vector<16x256xf32> -> vector<16x256xf32>
    %93 = vector.extract_strided_slice %89 {offsets = [0, 128], sizes = [16, 128], strides = [1, 1]} : vector<16x256xbf16> to vector<16x128xbf16>
    %c0_39 = arith.constant 0 : index
    %c0_40 = arith.constant 0 : index
    %94 = vector.load %arg8[%c0_39, %c0_40] : memref<128x256xbf16, #tpu.memory_space<vmem>>, vector<128x256xbf16>
    %cst_41 = arith.constant dense<0.000000e+00> : vector<16x256xf32>
    %95 = tpu.matmul %93, %94, %cst_41 {dimension_numbers = #tpu.dot_dimension_numbers<[1], [0], [0], [1], [0, 0, 1, 1], [], []>} : vector<16x128xbf16>, vector<128x256xbf16>, vector<16x256xf32> -> vector<16x256xf32>
    %96 = arith.addf %92, %95 : vector<16x256xf32>
    %c0_42 = arith.constant 0 : index
    %c0_43 = arith.constant 0 : index
    %97 = vector.load %arg9[%c0_42, %c0_43] : memref<1x256xf32, #tpu.memory_space<vmem>>, vector<1x256xf32>
    %98 = vector.broadcast %97 : vector<1x256xf32> to vector<16x256xf32>
    %99 = arith.addf %96, %98 : vector<16x256xf32>
    %cst_44 = arith.constant 0.000000e+00 : f32
    %100 = vector.broadcast %cst_44 : f32 to vector<16x256xf32>
    %101 = arith.maximumf %99, %100 : vector<16x256xf32>
    %102 = arith.truncf %101 : vector<16x256xf32> to vector<16x256xbf16>
    %c0_45 = arith.constant 0 : index
    %c0_46 = arith.constant 0 : index
    %103 = vector.load %arg10[%c0_45, %c0_46] : memref<256x8xbf16, #tpu.memory_space<vmem>>, vector<256x8xbf16>
    %cst_47 = arith.constant dense<0.000000e+00> : vector<16x8xf32>
    %104 = tpu.matmul %102, %103, %cst_47 {dimension_numbers = #tpu.dot_dimension_numbers<[1], [0], [0], [1], [0, 0, 1, 1], [], []>} : vector<16x256xbf16>, vector<256x8xbf16>, vector<16x8xf32> -> vector<16x8xf32>
    %c0_48 = arith.constant 0 : index
    %c0_49 = arith.constant 0 : index
    %105 = vector.load %arg11[%c0_48, %c0_49] : memref<256x8xbf16, #tpu.memory_space<vmem>>, vector<256x8xbf16>
    %cst_50 = arith.constant dense<0.000000e+00> : vector<16x8xf32>
    %106 = tpu.matmul %89, %105, %cst_50 {dimension_numbers = #tpu.dot_dimension_numbers<[1], [0], [0], [1], [0, 0, 1, 1], [], []>} : vector<16x256xbf16>, vector<256x8xbf16>, vector<16x8xf32> -> vector<16x8xf32>
    %107 = arith.addf %104, %106 : vector<16x8xf32>
    %c0_51 = arith.constant 0 : index
    %c0_52 = arith.constant 0 : index
    %108 = vector.load %arg12[%c0_51, %c0_52] : memref<1x8xf32, #tpu.memory_space<vmem>>, vector<1x8xf32>
    %109 = vector.broadcast %108 : vector<1x8xf32> to vector<16x8xf32>
    %110 = arith.addf %107, %109 : vector<16x8xf32>
    %c0_53 = arith.constant 0 : index
    %c0_54 = arith.constant 0 : index
    %c0_55 = arith.constant 0 : index
    %111 = vector.load %arg3[%c0_53, %c0_54, %c0_55] : memref<2x8x2xf32, #tpu.memory_space<vmem>>, vector<2x8x2xf32>
    %112 = vector.shape_cast %111 : vector<2x8x2xf32> to vector<16x2xf32>
    %113 = vector.extract_strided_slice %112 {offsets = [0, 0], sizes = [16, 1], strides = [1, 1]} : vector<16x2xf32> to vector<16x1xf32>
    %114 = vector.extract_strided_slice %112 {offsets = [0, 1], sizes = [16, 1], strides = [1, 1]} : vector<16x2xf32> to vector<16x1xf32>
    %115 = vector.extract_strided_slice %110 {offsets = [0, 0], sizes = [16, 1], strides = [1, 1]} : vector<16x8xf32> to vector<16x1xf32>
    %116 = vector.extract_strided_slice %110 {offsets = [0, 1], sizes = [16, 1], strides = [1, 1]} : vector<16x8xf32> to vector<16x1xf32>
    %117 = arith.maximumf %115, %116 : vector<16x1xf32>
    %118 = arith.subf %115, %117 : vector<16x1xf32>
    %119 = math.exp %118 : vector<16x1xf32>
    %120 = arith.subf %116, %117 : vector<16x1xf32>
    %121 = math.exp %120 : vector<16x1xf32>
    %122 = arith.addf %119, %121 : vector<16x1xf32>
    %123 = math.log %122 : vector<16x1xf32>
    %124 = arith.addf %117, %123 : vector<16x1xf32>
    %cst_56 = arith.constant 5.000000e-01 : f32
    %125 = vector.broadcast %cst_56 : f32 to vector<16x1xf32>
    %126 = arith.cmpf ogt, %113, %125 : vector<16x1xf32>
    %127 = arith.select %126, %116, %115 : vector<16x1xi1>, vector<16x1xf32>
    %128 = arith.subf %124, %127 : vector<16x1xf32>
    %129 = arith.mulf %128, %114 : vector<16x1xf32>
    %130 = vector.shape_cast %129 : vector<16x1xf32> to vector<1x16x1xf32>
    %cst_57 = arith.constant dense<0.000000e+00> : vector<1xf32>
    %131 = vector.multi_reduction <add>, %130, %cst_57 [1, 2] : vector<1x16x1xf32> to vector<1xf32>
    %132 = vector.shape_cast %131 : vector<1xf32> to vector<1x1x1xf32>
    %133 = vector.extract %132[0, 0, 0] : f32 from vector<1x1x1xf32>
    %134 = arith.cmpf ogt, %116, %115 : vector<16x1xf32>
    %135 = arith.extui %134 : vector<16x1xi1> to vector<16x1xi32>
    %136 = arith.sitofp %135 : vector<16x1xi32> to vector<16x1xf32>
    %137 = arith.cmpf oeq, %136, %113 : vector<16x1xf32>
    %138 = arith.extui %137 : vector<16x1xi1> to vector<16x1xi32>
    %139 = arith.sitofp %138 : vector<16x1xi32> to vector<16x1xf32>
    %140 = arith.mulf %139, %114 : vector<16x1xf32>
    %141 = vector.shape_cast %140 : vector<16x1xf32> to vector<1x16x1xf32>
    %cst_58 = arith.constant dense<0.000000e+00> : vector<1xf32>
    %142 = vector.multi_reduction <add>, %141, %cst_58 [1, 2] : vector<1x16x1xf32> to vector<1xf32>
    %143 = vector.shape_cast %142 : vector<1xf32> to vector<1x1x1xf32>
    %144 = vector.extract %143[0, 0, 0] : f32 from vector<1x1x1xf32>
    %145 = vector.extract_strided_slice %110 {offsets = [0, 2], sizes = [16, 1], strides = [1, 1]} : vector<16x8xf32> to vector<16x1xf32>
    %146 = vector.extract_strided_slice %110 {offsets = [0, 3], sizes = [16, 1], strides = [1, 1]} : vector<16x8xf32> to vector<16x1xf32>
    %147 = arith.maximumf %145, %146 : vector<16x1xf32>
    %148 = arith.subf %145, %147 : vector<16x1xf32>
    %149 = math.exp %148 : vector<16x1xf32>
    %150 = arith.subf %146, %147 : vector<16x1xf32>
    %151 = math.exp %150 : vector<16x1xf32>
    %152 = arith.addf %149, %151 : vector<16x1xf32>
    %153 = math.log %152 : vector<16x1xf32>
    %154 = arith.addf %147, %153 : vector<16x1xf32>
    %cst_59 = arith.constant 5.000000e-01 : f32
    %155 = vector.broadcast %cst_59 : f32 to vector<16x1xf32>
    %156 = arith.cmpf ogt, %113, %155 : vector<16x1xf32>
    %157 = arith.select %156, %146, %145 : vector<16x1xi1>, vector<16x1xf32>
    %158 = arith.subf %154, %157 : vector<16x1xf32>
    %159 = arith.mulf %158, %114 : vector<16x1xf32>
    %160 = vector.shape_cast %159 : vector<16x1xf32> to vector<1x16x1xf32>
    %cst_60 = arith.constant dense<0.000000e+00> : vector<1xf32>
    %161 = vector.multi_reduction <add>, %160, %cst_60 [1, 2] : vector<1x16x1xf32> to vector<1xf32>
    %162 = vector.shape_cast %161 : vector<1xf32> to vector<1x1x1xf32>
    %163 = vector.extract %162[0, 0, 0] : f32 from vector<1x1x1xf32>
    %164 = vector.extract_strided_slice %110 {offsets = [0, 4], sizes = [16, 1], strides = [1, 1]} : vector<16x8xf32> to vector<16x1xf32>
    %165 = vector.extract_strided_slice %110 {offsets = [0, 5], sizes = [16, 1], strides = [1, 1]} : vector<16x8xf32> to vector<16x1xf32>
    %166 = arith.maximumf %164, %165 : vector<16x1xf32>
    %167 = arith.subf %164, %166 : vector<16x1xf32>
    %168 = math.exp %167 : vector<16x1xf32>
    %169 = arith.subf %165, %166 : vector<16x1xf32>
    %170 = math.exp %169 : vector<16x1xf32>
    %171 = arith.addf %168, %170 : vector<16x1xf32>
    %172 = math.log %171 : vector<16x1xf32>
    %173 = arith.addf %166, %172 : vector<16x1xf32>
    %cst_61 = arith.constant 5.000000e-01 : f32
    %174 = vector.broadcast %cst_61 : f32 to vector<16x1xf32>
    %175 = arith.cmpf ogt, %113, %174 : vector<16x1xf32>
    %176 = arith.select %175, %165, %164 : vector<16x1xi1>, vector<16x1xf32>
    %177 = arith.subf %173, %176 : vector<16x1xf32>
    %178 = arith.mulf %177, %114 : vector<16x1xf32>
    %179 = vector.shape_cast %178 : vector<16x1xf32> to vector<1x16x1xf32>
    %cst_62 = arith.constant dense<0.000000e+00> : vector<1xf32>
    %180 = vector.multi_reduction <add>, %179, %cst_62 [1, 2] : vector<1x16x1xf32> to vector<1xf32>
    %181 = vector.shape_cast %180 : vector<1xf32> to vector<1x1x1xf32>
    %182 = vector.extract %181[0, 0, 0] : f32 from vector<1x1x1xf32>
    %183 = vector.shape_cast %114 : vector<16x1xf32> to vector<1x16x1xf32>
    %cst_63 = arith.constant dense<0.000000e+00> : vector<1xf32>
    %184 = vector.multi_reduction <add>, %183, %cst_63 [1, 2] : vector<1x16x1xf32> to vector<1xf32>
    %185 = vector.shape_cast %184 : vector<1xf32> to vector<1x1x1xf32>
    %186 = vector.extract %185[0, 0, 0] : f32 from vector<1x1x1xf32>
    %187 = tpu.iota {dimensions = array<i32: 2>} : vector<1x1x128xi32>
    %c0_i32 = arith.constant 0 : i32
    %188 = vector.broadcast %c0_i32 : i32 to vector<1x1x128xi32>
    %189 = arith.cmpi eq, %187, %188 : vector<1x1x128xi32>
    %cst_64 = arith.constant 0.000000e+00 : f32
    %190 = vector.broadcast %133 : f32 to vector<1x1x128xf32>
    %191 = vector.broadcast %cst_64 : f32 to vector<1x1x128xf32>
    %192 = arith.select %189, %190, %191 : vector<1x1x128xi1>, vector<1x1x128xf32>
    %c1_i32 = arith.constant 1 : i32
    %193 = vector.broadcast %c1_i32 : i32 to vector<1x1x128xi32>
    %194 = arith.cmpi eq, %187, %193 : vector<1x1x128xi32>
    %195 = vector.broadcast %163 : f32 to vector<1x1x128xf32>
    %196 = arith.select %194, %195, %192 : vector<1x1x128xi1>, vector<1x1x128xf32>
    %c2_i32 = arith.constant 2 : i32
    %197 = vector.broadcast %c2_i32 : i32 to vector<1x1x128xi32>
    %198 = arith.cmpi eq, %187, %197 : vector<1x1x128xi32>
    %199 = vector.broadcast %182 : f32 to vector<1x1x128xf32>
    %200 = arith.select %198, %199, %196 : vector<1x1x128xi1>, vector<1x1x128xf32>
    %c3_i32 = arith.constant 3 : i32
    %201 = vector.broadcast %c3_i32 : i32 to vector<1x1x128xi32>
    %202 = arith.cmpi eq, %187, %201 : vector<1x1x128xi32>
    %203 = vector.broadcast %144 : f32 to vector<1x1x128xf32>
    %204 = arith.select %202, %203, %200 : vector<1x1x128xi1>, vector<1x1x128xf32>
    %c4_i32 = arith.constant 4 : i32
    %205 = vector.broadcast %c4_i32 : i32 to vector<1x1x128xi32>
    %206 = arith.cmpi eq, %187, %205 : vector<1x1x128xi32>
    %207 = vector.broadcast %186 : f32 to vector<1x1x128xf32>
    %208 = arith.select %206, %207, %204 : vector<1x1x128xi1>, vector<1x1x128xf32>
    %c0_65 = arith.constant 0 : index
    %c0_66 = arith.constant 0 : index
    %c0_67 = arith.constant 0 : index
    %209 = vector.load %arg13[%c0_65, %c0_66, %c0_67] : memref<1x1x128xf32, #tpu.memory_space<vmem>>, vector<1x1x128xf32>
    tpu.vector_store %arg13[%c0_65, %c0_66, %c0_67], %208 {strides = array<i32>} : memref<1x1x128xf32, #tpu.memory_space<vmem>>, vector<1x1x128xf32>,
    return
  }
  func.func @transform_0(%arg0: i32) -> (i32, i32, i32) {
    %c0_i32 = arith.constant 0 : i32
    %c0_i32_0 = arith.constant 0 : i32
    %c0_i32_1 = arith.constant 0 : i32
    return %arg0, %c0_i32, %c0_i32_0 : i32, i32, i32
  }
  func.func @transform_1(%arg0: i32) -> (i32, i32, i32) {
    %c0_i32 = arith.constant 0 : i32
    %c0_i32_0 = arith.constant 0 : i32
    %c0_i32_1 = arith.constant 0 : i32
    %c0_i32_2 = arith.constant 0 : i32
    return %c0_i32, %c0_i32_0, %c0_i32_1 : i32, i32, i32
  }
  func.func @transform_2(%arg0: i32) -> (i32, i32, i32) {
    %c0_i32 = arith.constant 0 : i32
    %c0_i32_0 = arith.constant 0 : i32
    %c0_i32_1 = arith.constant 0 : i32
    return %arg0, %c0_i32, %c0_i32_0 : i32, i32, i32
  }
  func.func @transform_3(%arg0: i32) -> (i32, i32) {
    %c0_i32 = arith.constant 0 : i32
    %c0_i32_0 = arith.constant 0 : i32
    %c0_i32_1 = arith.constant 0 : i32
    return %c0_i32, %c0_i32_0 : i32, i32
  }
  func.func @transform_4(%arg0: i32) -> (i32, i32) {
    %c0_i32 = arith.constant 0 : i32
    %c0_i32_0 = arith.constant 0 : i32
    %c0_i32_1 = arith.constant 0 : i32
    return %c0_i32, %c0_i32_0 : i32, i32
  }
  func.func @transform_5(%arg0: i32) -> (i32, i32) {
    %c0_i32 = arith.constant 0 : i32
    %c0_i32_0 = arith.constant 0 : i32
    %c0_i32_1 = arith.constant 0 : i32
    return %c0_i32, %c0_i32_0 : i32, i32
  }
  func.func @transform_6(%arg0: i32) -> (i32, i32) {
    %c0_i32 = arith.constant 0 : i32
    %c0_i32_0 = arith.constant 0 : i32
    %c0_i32_1 = arith.constant 0 : i32
    return %c0_i32, %c0_i32_0 : i32, i32
  }
  func.func @transform_7(%arg0: i32) -> (i32, i32) {
    %c0_i32 = arith.constant 0 : i32
    %c0_i32_0 = arith.constant 0 : i32
    %c0_i32_1 = arith.constant 0 : i32
    return %c0_i32, %c0_i32_0 : i32, i32
  }
  func.func @transform_8(%arg0: i32) -> (i32, i32) {
    %c0_i32 = arith.constant 0 : i32
    %c0_i32_0 = arith.constant 0 : i32
    %c0_i32_1 = arith.constant 0 : i32
    return %c0_i32, %c0_i32_0 : i32, i32
  }
  func.func @transform_9(%arg0: i32) -> (i32, i32) {
    %c0_i32 = arith.constant 0 : i32
    %c0_i32_0 = arith.constant 0 : i32
    %c0_i32_1 = arith.constant 0 : i32
    return %c0_i32, %c0_i32_0 : i32, i32
  }
  func.func @transform_10(%arg0: i32) -> (i32, i32) {
    %c0_i32 = arith.constant 0 : i32
    %c0_i32_0 = arith.constant 0 : i32
    %c0_i32_1 = arith.constant 0 : i32
    return %c0_i32, %c0_i32_0 : i32, i32
  }
  func.func @transform_11(%arg0: i32) -> (i32, i32) {
    %c0_i32 = arith.constant 0 : i32
    %c0_i32_0 = arith.constant 0 : i32
    %c0_i32_1 = arith.constant 0 : i32
    return %c0_i32, %c0_i32_0 : i32, i32
  }
  func.func @transform_12(%arg0: i32) -> (i32, i32, i32) {
    %c0_i32 = arith.constant 0 : i32
    %c0_i32_0 = arith.constant 0 : i32
    %c0_i32_1 = arith.constant 0 : i32
    return %arg0, %c0_i32, %c0_i32_0 : i32, i32, i32
  }
}

</mosaic_0001>

<llo_original>
// kernel: loconet_forward.2
$region0: #{loconet_forward.2}
  #allocation0 [shape = 'u32[]', space=smem, size = 0x4, offset = 0x4, fixed_abs, tag = 'smem constant byte address 0x4 - core index']
  #allocation1 [shape = 'u32[144,128]{1,0:T(1,128)}', space=vmem, size = 0x12000, scoped, tag = 'internal scratch']
  %s0 = inlined_call_operand.vmem [shape: bf16[1,8,16], index: 0, kind: input, shape index: {}]
  %s1 = inlined_call_operand.vmem [shape: bf16[1,8,256], index: 1, kind: input, shape index: {}]
  %s2 = inlined_call_operand.vmem [shape: f32[1,8], index: 2, kind: input, shape index: {}]
  %s3 = inlined_call_operand.vmem [shape: f32[8,1], index: 3, kind: input, shape index: {}]
  %s4 = inlined_call_operand.vmem [shape: bf16[16,128], index: 4, kind: input, shape index: {}]
  %s5 = inlined_call_operand.vmem [shape: f32[1,128], index: 5, kind: input, shape index: {}]
  %s6 = inlined_call_operand.vmem [shape: bf16[256,128], index: 6, kind: input, shape index: {}]
  %s7 = inlined_call_operand.vmem [shape: f32[1,128], index: 7, kind: input, shape index: {}]
  %s8 = inlined_call_operand.vmem [shape: bf16[128,384], index: 8, kind: input, shape index: {}]
  %s9 = inlined_call_operand.vmem [shape: bf16[1,8,384], index: 9, kind: output, shape index: {0}]
  %s10 = inlined_call_operand.vmem [shape: f32[1,128], index: 10, kind: output, shape index: {1}]
  %11 = xla_tuple %s9, %s10
  %s12 = sld [smem:[#allocation0]]
  $region54: #{loconet_forward.2} parent=0
    _
  %s14 = ssub.s32 1, %s12
  %s15 = scalar_select 0, %s14, %s12
  // Predicated region
  $region2: #{loconet_forward.2} parent=0 // pred_check
    _
  $region3: #{loconet_forward.2} parent=0 // pred_check_branch
    %17 = sbr.rel (0) target = $region5
  $region4: #{loconet_forward.2} parent=0 // pred_region
    _
  $region5: #{loconet_forward.2} parent=0 // pred_fallthru
    _
  // Predicated region
  $region6: #{loconet_forward.2} parent=0 // pred_check
    _
  $region7: #{loconet_forward.2} parent=0 // pred_check_branch
    %19 = sbr.rel (0) target = $region9
  $region8: #{loconet_forward.2} parent=0 // pred_region
    _
  $region9: #{loconet_forward.2} parent=0 // pred_fallthru
    _
  // Predicated region
  $region10: #{loconet_forward.2} parent=0 // pred_check
    _
  $region11: #{loconet_forward.2} parent=0 // pred_check_branch
    %21 = sbr.rel (0) target = $region13
  $region12: #{loconet_forward.2} parent=0 // pred_region
    _
  $region13: #{loconet_forward.2} parent=0 // pred_fallthru
    _
  // Predicated region
  $region14: #{loconet_forward.2} parent=0 // pred_check
    _
  $region15: #{loconet_forward.2} parent=0 // pred_check_branch
    %23 = sbr.rel (0) target = $region17
  $region16: #{loconet_forward.2} parent=0 // pred_region
    _
  $region17: #{loconet_forward.2} parent=0 // pred_fallthru
    _
  // Predicated region
  $region18: #{loconet_forward.2} parent=0 // pred_check
    _
  $region19: #{loconet_forward.2} parent=0 // pred_check_branch
    %25 = sbr.rel (0) target = $region21
  $region20: #{loconet_forward.2} parent=0 // pred_region
    _
  $region21: #{loconet_forward.2} parent=0 // pred_fallthru
    _
  // Predicated region
  $region22: #{loconet_forward.2} parent=0 // pred_check
    _
  $region23: #{loconet_forward.2} parent=0 // pred_check_branch
    %27 = sbr.rel (0) target = $region25
  $region24: #{loconet_forward.2} parent=0 // pred_region
    _
  $region25: #{loconet_forward.2} parent=0 // pred_fallthru
    _
  // Predicated region
  $region26: #{loconet_forward.2} parent=0 // pred_check
    _
  $region27: #{loconet_forward.2} parent=0 // pred_check_branch
    %29 = sbr.rel (0) target = $region29
  $region28: #{loconet_forward.2} parent=0 // pred_region
    _
  $region29: #{loconet_forward.2} parent=0 // pred_fallthru
    _
  // Predicated region
  $region30: #{loconet_forward.2} parent=0 // pred_check
    _
  $region31: #{loconet_forward.2} parent=0 // pred_check_branch
    %31 = sbr.rel (0) target = $region33
  $region32: #{loconet_forward.2} parent=0 // pred_region
    _
  $region33: #{loconet_forward.2} parent=0 // pred_fallthru
    _
  // Predicated region
  $region34: #{loconet_forward.2} parent=0 // pred_check
    _
  $region35: #{loconet_forward.2} parent=0 // pred_check_branch
    %33 = sbr.rel (0) target = $region37
  $region36: #{loconet_forward.2} parent=0 // pred_region
    _
  $region37: #{loconet_forward.2} parent=0 // pred_fallthru
    _
  %v35 = vld [vmem:[%s0] sm:$0xf]
  %v36 = vld [vmem:[%s4] sm:$0xf]
  %v37 = vld [vmem:[%s4 + $0x4] sm:$0xf]
  %v38 = vld [vmem:[%s5] sm:$0x1]
  %v40 = vlaneseq
  %v41 = vshrl.u32 %v40, 7
  %v42 = vsub.s32 0, %v41
  %v43 = vrot.slane %v38, %v42
  %v47 = vunpack.c.l.b16 %v36
  %v48 = vunpack.c.l.b16 %v37
  %v49 = vpack.c.b16 %v48, %v47
  %vm51 = vcmask 130048
  %v53 = vsel %vm51, %v35, 0
  %55 = vmatprep.subr.bf16.mxu0 0
  %56 = vmatpush1.bf16.msra.mxu0 %v49
  %57 = vmatprep.subr.bf16.mxu0 0
  %58 = vmatpush1.bf16.msra.mxu0 0
  %59 = vmatprep.subr.bf16.mxu0 0
  %60 = vmatpush1.bf16.msra.mxu0 0
  %61 = vmatprep.subr.bf16.mxu0 0
  %62 = vmatpush1.bf16.msra.mxu0 0
  %63 = vmatprep.subr.bf16.mxu0 0
  %64 = vmatpush1.bf16.msra.mxu0 0
  %65 = vmatprep.subr.bf16.mxu0 0
  %66 = vmatpush1.bf16.msra.mxu0 0
  %67 = vmatprep.subr.bf16.mxu0 0
  %68 = vmatpush1.bf16.msra.mxu0 0
  %69 = vmatprep.subr.bf16.mxu0 0
  %70 = vmatpush1.bf16.msra.mxu0 0
  %71 = vmatprep.subr.bf16.mxu0 0
  %72 = vmatpush1.bf16.msra.mxu0 0
  %73 = vmatprep.subr.bf16.mxu0 0
  %74 = vmatpush1.bf16.msra.mxu0 0
  %75 = vmatprep.subr.bf16.mxu0 0
  %76 = vmatpush1.bf16.msra.mxu0 0
  %77 = vmatprep.subr.bf16.mxu0 0
  %78 = vmatpush1.bf16.msra.mxu0 0
  %79 = vmatprep.subr.bf16.mxu0 0
  %80 = vmatpush1.bf16.msra.mxu0 0
  %81 = vmatprep.subr.bf16.mxu0 0
  %82 = vmatpush1.bf16.msra.mxu0 0
  %83 = vmatprep.subr.bf16.mxu0 0
  %84 = vmatpush1.bf16.msra.mxu0 0
  %85 = vmatprep.subr.bf16.mxu0 0
  %86 = vmatpush1.bf16.msra.mxu0 0
  %87 = vmatprep.mubr.bf16.mxu0 0
  %88 = vmatmul.mubr.bf16.gmra.mrb[0].mxu0 %v53
  %v89 = vpop.f32.mrb[0].mxu0
  %v90 = vadd.f32 %v43, %v89
  %v91 = vpop.f32.mrb[0].mxu0
  %v92 = vpop.f32.mrb[0].mxu0
  %v93 = vpop.f32.mrb[0].mxu0
  %94 = vdwg.mxu0
  %v95 = vpack.c.bf16 %v90, %v90
  %v96 = vld [vmem:[%s8] sm:$0xff]
  %v97 = vld [vmem:[%s8 + $0x8] sm:$0xf]
  %v98 = vld [vmem:[%s8 + $0xc] sm:$0xff]
  %v99 = vld [vmem:[%s8 + $0x14] sm:$0xf]
  %v100 = vld [vmem:[%s8 + $0x18] sm:$0xff]
  %v101 = vld [vmem:[%s8 + $0x20] sm:$0xf]
  %v102 = vld [vmem:[%s8 + $0x24] sm:$0xff]
  %v103 = vld [vmem:[%s8 + $0x2c] sm:$0xf]
  %v104 = vld [vmem:[%s8 + $0x30] sm:$0xff]
  %v105 = vld [vmem:[%s8 + $0x38] sm:$0xf]
  %v106 = vld [vmem:[%s8 + $0x3c] sm:$0xff]
  %v107 = vld [vmem:[%s8 + $0x44] sm:$0xf]
  %v108 = vld [vmem:[%s8 + $0x48] sm:$0xff]
  %v109 = vld [vmem:[%s8 + $0x50] sm:$0xf]
  %v110 = vld [vmem:[%s8 + $0x54] sm:$0xff]
  %v111 = vld [vmem:[%s8 + $0x5c] sm:$0xf]
  %v112 = vld [vmem:[%s8 + $0x60] sm:$0xff]
  %v113 = vld [vmem:[%s8 + $0x68] sm:$0xf]
  %v114 = vld [vmem:[%s8 + $0x6c] sm:$0xff]
  %v115 = vld [vmem:[%s8 + $0x74] sm:$0xf]
  %v116 = vld [vmem:[%s8 + $0x78] sm:$0xff]
  %v117 = vld [vmem:[%s8 + $0x80] sm:$0xf]
  %v118 = vld [vmem:[%s8 + $0x84] sm:$0xff]
  %v119 = vld [vmem:[%s8 + $0x8c] sm:$0xf]
  %v120 = vld [vmem:[%s8 + $0x90] sm:$0xff]
  %v121 = vld [vmem:[%s8 + $0x98] sm:$0xf]
  %v122 = vld [vmem:[%s8 + $0x9c] sm:$0xff]
  %v123 = vld [vmem:[%s8 + $0xa4] sm:$0xf]
  %v124 = vld [vmem:[%s8 + $0xa8] sm:$0xff]
  %v125 = vld [vmem:[%s8 + $0xb0] sm:$0xf]
  %v126 = vld [vmem:[%s8 + $0xb4] sm:$0xff]
  %v127 = vld [vmem:[%s8 + $0xbc] sm:$0xf]
  %v160 = vunpack.c.l.b16 %v96
  %v161 = vunpack.c.h.b16 %v96
  %v162 = vunpack.c.l.b16 %v97
  %v163 = vunpack.c.l.b16 %v98
  %v164 = vunpack.c.h.b16 %v98
  %v165 = vunpack.c.l.b16 %v99
  %v166 = vunpack.c.l.b16 %v100
  %v167 = vunpack.c.h.b16 %v100
  %v168 = vunpack.c.l.b16 %v101
  %v169 = vunpack.c.l.b16 %v102
  %v170 = vunpack.c.h.b16 %v102
  %v171 = vunpack.c.l.b16 %v103
  %v172 = vunpack.c.l.b16 %v104
  %v173 = vunpack.c.h.b16 %v104
  %v174 = vunpack.c.l.b16 %v105
  %v175 = vunpack.c.l.b16 %v106
  %v176 = vunpack.c.h.b16 %v106
  %v177 = vunpack.c.l.b16 %v107
  %v178 = vunpack.c.l.b16 %v108
  %v179 = vunpack.c.h.b16 %v108
  %v180 = vunpack.c.l.b16 %v109
  %v181 = vunpack.c.l.b16 %v110
  %v182 = vunpack.c.h.b16 %v110
  %v183 = vunpack.c.l.b16 %v111
  %v184 = vunpack.c.l.b16 %v112
  %v185 = vunpack.c.h.b16 %v112
  %v186 = vunpack.c.l.b16 %v113
  %v187 = vunpack.c.l.b16 %v114
  %v188 = vunpack.c.h.b16 %v114
  %v189 = vunpack.c.l.b16 %v115
  %v190 = vunpack.c.l.b16 %v116
  %v191 = vunpack.c.h.b16 %v116
  %v192 = vunpack.c.l.b16 %v117
  %v193 = vunpack.c.l.b16 %v118
  %v194 = vunpack.c.h.b16 %v118
  %v195 = vunpack.c.l.b16 %v119
  %v196 = vunpack.c.l.b16 %v120
  %v197 = vunpack.c.h.b16 %v120
  %v198 = vunpack.c.l.b16 %v121
  %v199 = vunpack.c.l.b16 %v122
  %v200 = vunpack.c.h.b16 %v122
  %v201 = vunpack.c.l.b16 %v123
  %v202 = vunpack.c.l.b16 %v124
  %v203 = vunpack.c.h.b16 %v124
  %v204 = vunpack.c.l.b16 %v125
  %v205 = vunpack.c.l.b16 %v126
  %v206 = vunpack.c.h.b16 %v126
  %v207 = vunpack.c.l.b16 %v127
  %v208 = vpack.c.b16 %v163, %v160
  %v209 = vpack.c.b16 %v164, %v161
  %v210 = vpack.c.b16 %v165, %v162
  %v211 = vpack.c.b16 %v169, %v166
  %v212 = vpack.c.b16 %v170, %v167
  %v213 = vpack.c.b16 %v171, %v168
  %v214 = vpack.c.b16 %v175, %v172
  %v215 = vpack.c.b16 %v176, %v173
  %v216 = vpack.c.b16 %v177, %v174
  %v217 = vpack.c.b16 %v181, %v178
  %v218 = vpack.c.b16 %v182, %v179
  %v219 = vpack.c.b16 %v183, %v180
  %v220 = vpack.c.b16 %v187, %v184
  %v221 = vpack.c.b16 %v188, %v185
  %v222 = vpack.c.b16 %v189, %v186
  %v223 = vpack.c.b16 %v193, %v190
  %v224 = vpack.c.b16 %v194, %v191
  %v225 = vpack.c.b16 %v195, %v192
  %v226 = vpack.c.b16 %v199, %v196
  %v227 = vpack.c.b16 %v200, %v197
  %v228 = vpack.c.b16 %v201, %v198
  %v229 = vpack.c.b16 %v205, %v202
  %v230 = vpack.c.b16 %v206, %v203
  %v231 = vpack.c.b16 %v207, %v204
  %256 = vmatprep.subr.bf16.mxu0 %v209
  %257 = vmatpush1.bf16.msra.mxu0 %v208
  %258 = vmatprep.subr.bf16.mxu0 %v212
  %259 = vmatpush1.bf16.msra.mxu0 %v211
  %260 = vmatprep.subr.bf16.mxu0 %v215
  %261 = vmatpush1.bf16.msra.mxu0 %v214
  %262 = vmatprep.subr.bf16.mxu0 %v218
  %263 = vmatpush1.bf16.msra.mxu0 %v217
  %264 = vmatprep.subr.bf16.mxu0 %v221
  %265 = vmatpush1.bf16.msra.mxu0 %v220
  %266 = vmatprep.subr.bf16.mxu0 %v224
  %267 = vmatpush1.bf16.msra.mxu0 %v223
  %268 = vmatprep.subr.bf16.mxu0 %v227
  %269 = vmatpush1.bf16.msra.mxu0 %v226
  %270 = vmatprep.subr.bf16.mxu0 %v230
  %271 = vmatpush1.bf16.msra.mxu0 %v229
  %272 = vmatprep.subr.bf16.mxu0 0
  %273 = vmatpush1.bf16.msra.mxu0 0
  %274 = vmatprep.subr.bf16.mxu0 0
  %275 = vmatpush1.bf16.msra.mxu0 0
  %276 = vmatprep.subr.bf16.mxu0 0
  %277 = vmatpush1.bf16.msra.mxu0 0
  %278 = vmatprep.subr.bf16.mxu0 0
  %279 = vmatpush1.bf16.msra.mxu0 0
  %280 = vmatprep.subr.bf16.mxu0 0
  %281 = vmatpush1.bf16.msra.mxu0 0
  %282 = vmatprep.subr.bf16.mxu0 0
  %283 = vmatpush1.bf16.msra.mxu0 0
  %284 = vmatprep.subr.bf16.mxu0 0
  %285 = vmatpush1.bf16.msra.mxu0 0
  %286 = vmatprep.subr.bf16.mxu0 0
  %287 = vmatpush1.bf16.msra.mxu0 0
  %288 = vmatprep.mubr.bf16.mxu0 0
  %289 = vmatmul.mubr.bf16.gmra.mrb[0].mxu0 %v95
  %v290 = vpop.f32.mrb[0].mxu0
  %v291 = vadd.f32 0.0, %v290
  %v292 = vpop.f32.mrb[0].mxu0
  %v293 = vadd.f32 0.0, %v292
  %v294 = vpop.f32.mrb[0].mxu0
  %v295 = vpop.f32.mrb[0].mxu0
  %296 = vdwg.mxu0
  %297 = vmatprep.subr.bf16.mxu0 0
  %298 = vmatpush1.bf16.msra.mxu0 %v210
  %299 = vmatprep.subr.bf16.mxu0 0
  %300 = vmatpush1.bf16.msra.mxu0 %v213
  %301 = vmatprep.subr.bf16.mxu0 0
  %302 = vmatpush1.bf16.msra.mxu0 %v216
  %303 = vmatprep.subr.bf16.mxu0 0
  %304 = vmatpush1.bf16.msra.mxu0 %v219
  %305 = vmatprep.subr.bf16.mxu0 0
  %306 = vmatpush1.bf16.msra.mxu0 %v222
  %307 = vmatprep.subr.bf16.mxu0 0
  %308 = vmatpush1.bf16.msra.mxu0 %v225
  %309 = vmatprep.subr.bf16.mxu0 0
  %310 = vmatpush1.bf16.msra.mxu0 %v228
  %311 = vmatprep.subr.bf16.mxu0 0
  %312 = vmatpush1.bf16.msra.mxu0 %v231
  %313 = vmatprep.subr.bf16.mxu0 0
  %314 = vmatpush1.bf16.msra.mxu0 0
  %315 = vmatprep.subr.bf16.mxu0 0
  %316 = vmatpush1.bf16.msra.mxu0 0
  %317 = vmatprep.subr.bf16.mxu0 0
  %318 = vmatpush1.bf16.msra.mxu0 0
  %319 = vmatprep.subr.bf16.mxu0 0
  %320 = vmatpush1.bf16.msra.mxu0 0
  %321 = vmatprep.subr.bf16.mxu0 0
  %322 = vmatpush1.bf16.msra.mxu0 0
  %323 = vmatprep.subr.bf16.mxu0 0
  %324 = vmatpush1.bf16.msra.mxu0 0
  %325 = vmatprep.subr.bf16.mxu0 0
  %326 = vmatpush1.bf16.msra.mxu0 0
  %327 = vmatprep.subr.bf16.mxu0 0
  %328 = vmatpush1.bf16.msra.mxu0 0
  %329 = vmatprep.mubr.bf16.mxu0 0
  %330 = vmatmul.mubr.bf16.gmra.mrb[0].mxu0 %v95
  %v331 = vpop.f32.mrb[0].mxu0
  %v332 = vadd.f32 0.0, %v331
  %v333 = vpop.f32.mrb[0].mxu0
  %v334 = vpop.f32.mrb[0].mxu0
  %v335 = vpop.f32.mrb[0].mxu0
  %336 = vdwg.mxu0
  %v337 = vpack.c.bf16 %v291, %v291
  %v338 = vpack.c.bf16 %v293, %v293
  %v339 = vpack.c.bf16 %v332, %v332
  %v343 = vunpack.c.l.b16 %v337
  %v344 = vunpack.c.l.b16 %v338
  %v345 = vunpack.c.l.b16 %v339
  %v346 = vpack.c.b16 %v344, %v343
  %v347 = vpack.c.b16 %v345, %v345
  %350 = vst [vmem:[%s9] sm:$0xff] %v346
  %351 = vst [vmem:[%s9 + $0x8] sm:$0xf] %v347
  %v352 = vld [vmem:[%s1] sm:$0xff]
  %v353 = vld [vmem:[%s6] sm:$0xf]
  %v354 = vld [vmem:[%s6 + $0x4] sm:$0xf]
  %v355 = vld [vmem:[%s6 + $0x8] sm:$0xf]
  %v356 = vld [vmem:[%s6 + $0xc] sm:$0xf]
  %v357 = vld [vmem:[%s6 + $0x10] sm:$0xf]
  %v358 = vld [vmem:[%s6 + $0x14] sm:$0xf]
  %v359 = vld [vmem:[%s6 + $0x18] sm:$0xf]
  %v360 = vld [vmem:[%s6 + $0x1c] sm:$0xf]
  %v361 = vld [vmem:[%s6 + $0x20] sm:$0xf]
  %v362 = vld [vmem:[%s6 + $0x24] sm:$0xf]
  %v363 = vld [vmem:[%s6 + $0x28] sm:$0xf]
  %v364 = vld [vmem:[%s6 + $0x2c] sm:$0xf]
  %v365 = vld [vmem:[%s6 + $0x30] sm:$0xf]
  %v366 = vld [vmem:[%s6 + $0x34] sm:$0xf]
  %v367 = vld [vmem:[%s6 + $0x38] sm:$0xf]
  %v368 = vld [vmem:[%s6 + $0x3c] sm:$0xf]
  %v369 = vld [vmem:[%s6 + $0x40] sm:$0xf]
  %v370 = vld [vmem:[%s6 + $0x44] sm:$0xf]
  %v371 = vld [vmem:[%s6 + $0x48] sm:$0xf]
  %v372 = vld [vmem:[%s6 + $0x4c] sm:$0xf]
  %v373 = vld [vmem:[%s6 + $0x50] sm:$0xf]
  %v374 = vld [vmem:[%s6 + $0x54] sm:$0xf]
  %v375 = vld [vmem:[%s6 + $0x58] sm:$0xf]
  %v376 = vld [vmem:[%s6 + $0x5c] sm:$0xf]
  %v377 = vld [vmem:[%s6 + $0x60] sm:$0xf]
  %v378 = vld [vmem:[%s6 + $0x64] sm:$0xf]
  %v379 = vld [vmem:[%s6 + $0x68] sm:$0xf]
  %v380 = vld [vmem:[%s6 + $0x6c] sm:$0xf]
  %v381 = vld [vmem:[%s6 + $0x70] sm:$0xf]
  %v382 = vld [vmem:[%s6 + $0x74] sm:$0xf]
  %v383 = vld [vmem:[%s6 + $0x78] sm:$0xf]
  %v384 = vld [vmem:[%s6 + $0x7c] sm:$0xf]
  %v385 = vld [vmem:[%s7] sm:$0x1]
  %v387 = vlaneseq
  %v388 = vshrl.u32 %v387, 7
  %v389 = vsub.s32 0, %v388
  %v390 = vrot.slane %v385, %v389
  %v393 = vunpack.c.l.b16 %v352
  %v394 = vunpack.c.h.b16 %v352
  %v395 = vpack.c.b16 %v393, %v393
  %v396 = vpack.c.b16 %v394, %v394
  %v431 = vunpack.c.l.b16 %v353
  %v432 = vunpack.c.l.b16 %v354
  %v433 = vunpack.c.l.b16 %v355
  %v434 = vunpack.c.l.b16 %v356
  %v435 = vunpack.c.l.b16 %v357
  %v436 = vunpack.c.l.b16 %v358
  %v437 = vunpack.c.l.b16 %v359
  %v438 = vunpack.c.l.b16 %v360
  %v439 = vunpack.c.l.b16 %v361
  %v440 = vunpack.c.l.b16 %v362
  %v441 = vunpack.c.l.b16 %v363
  %v442 = vunpack.c.l.b16 %v364
  %v443 = vunpack.c.l.b16 %v365
  %v444 = vunpack.c.l.b16 %v366
  %v445 = vunpack.c.l.b16 %v367
  %v446 = vunpack.c.l.b16 %v368
  %v447 = vunpack.c.l.b16 %v369
  %v448 = vunpack.c.l.b16 %v370
  %v449 = vunpack.c.l.b16 %v371
  %v450 = vunpack.c.l.b16 %v372
  %v451 = vunpack.c.l.b16 %v373
  %v452 = vunpack.c.l.b16 %v374
  %v453 = vunpack.c.l.b16 %v375
  %v454 = vunpack.c.l.b16 %v376
  %v455 = vunpack.c.l.b16 %v377
  %v456 = vunpack.c.l.b16 %v378
  %v457 = vunpack.c.l.b16 %v379
  %v458 = vunpack.c.l.b16 %v380
  %v459 = vunpack.c.l.b16 %v381
  %v460 = vunpack.c.l.b16 %v382
  %v461 = vunpack.c.l.b16 %v383
  %v462 = vunpack.c.l.b16 %v384
  %v463 = vpack.c.b16 %v432, %v431
  %v464 = vpack.c.b16 %v434, %v433
  %v465 = vpack.c.b16 %v436, %v435
  %v466 = vpack.c.b16 %v438, %v437
  %v467 = vpack.c.b16 %v440, %v439
  %v468 = vpack.c.b16 %v442, %v441
  %v469 = vpack.c.b16 %v444, %v443
  %v470 = vpack.c.b16 %v446, %v445
  %v471 = vpack.c.b16 %v448, %v447
  %v472 = vpack.c.b16 %v450, %v449
  %v473 = vpack.c.b16 %v452, %v451
  %v474 = vpack.c.b16 %v454, %v453
  %v475 = vpack.c.b16 %v456, %v455
  %v476 = vpack.c.b16 %v458, %v457
  %v477 = vpack.c.b16 %v460, %v459
  %v478 = vpack.c.b16 %v462, %v461
  %495 = vmatprep.subr.bf16.mxu0 0
  %496 = vmatpush1.bf16.msra.mxu0 %v463
  %497 = vmatprep.subr.bf16.mxu0 0
  %498 = vmatpush1.bf16.msra.mxu0 %v464
  %499 = vmatprep.subr.bf16.mxu0 0
  %500 = vmatpush1.bf16.msra.mxu0 %v465
  %501 = vmatprep.subr.bf16.mxu0 0
  %502 = vmatpush1.bf16.msra.mxu0 %v466
  %503 = vmatprep.subr.bf16.mxu0 0
  %504 = vmatpush1.bf16.msra.mxu0 %v467
  %505 = vmatprep.subr.bf16.mxu0 0
  %506 = vmatpush1.bf16.msra.mxu0 %v468
  %507 = vmatprep.subr.bf16.mxu0 0
  %508 = vmatpush1.bf16.msra.mxu0 %v469
  %509 = vmatprep.subr.bf16.mxu0 0
  %510 = vmatpush1.bf16.msra.mxu0 %v470
  %511 = vmatprep.subr.bf16.mxu0 0
  %512 = vmatpush1.bf16.msra.mxu0 %v471
  %513 = vmatprep.subr.bf16.mxu0 0
  %514 = vmatpush1.bf16.msra.mxu0 %v472
  %515 = vmatprep.subr.bf16.mxu0 0
  %516 = vmatpush1.bf16.msra.mxu0 %v473
  %517 = vmatprep.subr.bf16.mxu0 0
  %518 = vmatpush1.bf16.msra.mxu0 %v474
  %519 = vmatprep.subr.bf16.mxu0 0
  %520 = vmatpush1.bf16.msra.mxu0 %v475
  %521 = vmatprep.subr.bf16.mxu0 0
  %522 = vmatpush1.bf16.msra.mxu0 %v476
  %523 = vmatprep.subr.bf16.mxu0 0
  %524 = vmatpush1.bf16.msra.mxu0 %v477
  %525 = vmatprep.subr.bf16.mxu0 0
  %526 = vmatpush1.bf16.msra.mxu0 %v478
  %527 = vmatprep.mubr.bf16.mxu0 %v396
  %528 = vmatmul.mubr.bf16.gmra.mrb[0].mxu0 %v395
  %v529 = vpop.f32.mrb[0].mxu0
  %v530 = vadd.f32 %v390, %v529
  %v531 = vpop.f32.mrb[0].mxu0
  %v532 = vpop.f32.mrb[0].mxu0
  %v533 = vpop.f32.mrb[0].mxu0
  %534 = vdwg.mxu0
  %v535 = vmul.f32 %v530, %v530
  %536 = vadd.xlane.f32.xlu0 %v535
  %v537 = vpop.xlane.xlu0 %536
  %v538 = vmax.f32 %v537, 1e-24
  %v539 = vrsqrt.pop %v538
  %v540 = vmul.f32 %v530, %v539
  %v541 = vmul.f32 %v90, %v90
  %542 = vadd.xlane.f32.xlu0 %v541
  %v543 = vpop.xlane.xlu0 %542
  %v544 = vmax.f32 %v543, 1e-24
  %v545 = vrsqrt.pop %v544
  %v546 = vmul.f32 %v90, %v545
  %547 = vmatprep.subr.mxu0 0.0
  %548 = vmatpush1.xpose.msra.mxu0 %v546
  %549 = vmatprep.subr.mxu0 0.0
  %550 = vmatpush1.xpose.msra.mxu0 0.0
  %551 = vmatprep.subr.mxu0 0.0
  %552 = vmatpush1.xpose.msra.mxu0 0.0
  %553 = vmatprep.subr.mxu0 0.0
  %554 = vmatpush1.xpose.msra.mxu0 0.0
  %555 = vmatprep.subr.mxu0 0.0
  %556 = vmatpush1.xpose.msra.mxu0 0.0
  %557 = vmatprep.subr.mxu0 0.0
  %558 = vmatpush1.xpose.msra.mxu0 0.0
  %559 = vmatprep.subr.mxu0 0.0
  %560 = vmatpush1.xpose.msra.mxu0 0.0
  %561 = vmatprep.subr.mxu0 0.0
  %562 = vmatpush1.xpose.msra.mxu0 0.0
  %563 = vmatprep.subr.mxu0 0.0
  %564 = vmatpush1.xpose.msra.mxu0 0.0
  %565 = vmatprep.subr.mxu0 0.0
  %566 = vmatpush1.xpose.msra.mxu0 0.0
  %567 = vmatprep.subr.mxu0 0.0
  %568 = vmatpush1.xpose.msra.mxu0 0.0
  %569 = vmatprep.subr.mxu0 0.0
  %570 = vmatpush1.xpose.msra.mxu0 0.0
  %571 = vmatprep.subr.mxu0 0.0
  %572 = vmatpush1.xpose.msra.mxu0 0.0
  %573 = vmatprep.subr.mxu0 0.0
  %574 = vmatpush1.xpose.msra.mxu0 0.0
  %575 = vmatprep.subr.mxu0 0.0
  %576 = vmatpush1.xpose.msra.mxu0 0.0
  %577 = vmatprep.subr.mxu0 0.0
  %578 = vmatpush1.xpose.msra.mxu0 0.0
  %579 = vmatprep.subr.mxu0 0.0
  %580 = vmatpush1.xpose.msra.mxu0 0.0
  %581 = vmatprep.subr.mxu0 0.0
  %582 = vmatpush1.xpose.msra.mxu0 0.0
  %583 = vmatprep.subr.mxu0 0.0
  %584 = vmatpush1.xpose.msra.mxu0 0.0
  %585 = vmatprep.subr.mxu0 0.0
  %586 = vmatpush1.xpose.msra.mxu0 0.0
  %587 = vmatprep.subr.mxu0 0.0
  %588 = vmatpush1.xpose.msra.mxu0 0.0
  %589 = vmatprep.subr.mxu0 0.0
  %590 = vmatpush1.xpose.msra.mxu0 0.0
  %591 = vmatprep.subr.mxu0 0.0
  %592 = vmatpush1.xpose.msra.mxu0 0.0
  %593 = vmatprep.subr.mxu0 0.0
  %594 = vmatpush1.xpose.msra.mxu0 0.0
  %595 = vmatprep.subr.mxu0 0.0
  %596 = vmatpush1.xpose.msra.mxu0 0.0
  %597 = vmatprep.subr.mxu0 0.0
  %598 = vmatpush1.xpose.msra.mxu0 0.0
  %599 = vmatprep.subr.mxu0 0.0
  %600 = vmatpush1.xpose.msra.mxu0 0.0
  %601 = vmatprep.subr.mxu0 0.0
  %602 = vmatpush1.xpose.msra.mxu0 0.0
  %603 = vmatprep.subr.mxu0 0.0
  %604 = vmatpush1.xpose.msra.mxu0 0.0
  %605 = vmatprep.subr.mxu0 0.0
  %606 = vmatpush1.xpose.msra.mxu0 0.0
  %607 = vmatprep.subr.mxu0 0.0
  %608 = vmatpush1.xpose.msra.mxu0 0.0
  %609 = vmatprep.subr.mxu0 0.0
  %610 = vmatpush1.xpose.msra.mxu0 0.0
  %611 = vmatprep.mubr.f32.mxu0 0.0
  %612 = vmatmul.mubr.f32.gmra.mrb[0].mxu0 %v540
  %v613 = vpop.f32.mrb[0].mxu0
  %v614 = vadd.f32 0.0, %v613
  %v615 = vpop.f32.mrb[0].mxu0
  %616 = vdwg.mxu0
  %v617 = vmul.f32 %v614, 14.285714
  %v618 = vmul.f32 %v540, %v546
  %619 = vadd.xlane.f32.xlu0 %v618
  %v620 = vpop.xlane.xlu0 %619
  %v621 = vmul.f32 %v620, 14.285714
  %v622 = vld [vmem:[%s2] sm:$0x1]
  %v623 = vld [vmem:[%s3] sm:$0xff]
  %vm624 = vcmp.gt.f32.partialorder %v622, 0.5
  %v625 = vsel %vm624, 1, 0
  %v626 = vlaneseq
  %v627 = vshrl.u32 %v626, 7
  %v628 = vsub.s32 0, %v627
  %v629 = vrot.slane %v625, %v628
  %vm630 = vcmp.eq.s32.totalorder %v629, 1
  %v631 = vsel %vm630, %v617, -1e+30
  %vm632 = vcmask 64512
  %v633 = vsel %vm632, %v631, -inf
  %634 = vmax.xlane.f32.xlu0 %v633
  %v635 = vpop.xlane.xlu0 %634
  %v636 = vsub.f32 %v631, %v635
  %v637 = vmul.f32 %v636, 1.442695
  %v638 = vpow.pop %v637
  %v639 = vsel %vm632, %v638, 0.0
  %640 = vadd.xlane.f32.xlu0 %v639
  %v641 = vpop.xlane.xlu0 %640
  %v642 = vlog2.pop %v641
  %v643 = vmul.f32 %v642, 0.6931472
  %v644 = vadd.f32 %v635, %v643
  %v645 = vsub.f32 %v644, %v621
  %vm646 = vcmask 7168
  %v647 = vsel %vm646, %v623, 0.0
  %648 = vadd.xlane.f32.xlu0 %v647
  %v649 = vpop.xlane.xlu0 %648
  %v650 = vrot.slane %v649, 4
  %v651 = vadd.f32 %v649, %v650
  %v652 = vrot.slane %v651, 2
  %v653 = vadd.f32 %v651, %v652
  %v654 = vrot.slane %v653, 1
  %v655 = vadd.f32 %v653, %v654
  %s656 = vtos %v655
  %p657 = scmp.gt.f32.partialorder %s656, 0.5
  %v658 = vmul.f32 %v645, %v623
  %v659 = vsel %vm646, %v658, 0.0
  %660 = vadd.xlane.f32.xlu0 %v659
  %v661 = vpop.xlane.xlu0 %660
  %v662 = vrot.slane %v661, 4
  %v663 = vadd.f32 %v661, %v662
  %v664 = vrot.slane %v663, 2
  %v665 = vadd.f32 %v663, %v664
  %v666 = vrot.slane %v665, 1
  %v667 = vadd.f32 %v665, %v666
  %s668 = vtos %v667
  %s669 = smax.f32 %s656, 1.0
  %v670 = vstv %s669
  %v671 = vrcp.pop %v670
  %s672 = vtos %v671
  %s673 = smul.f32 %s668, %s672
  %s674 = scalar_select %p657, %s673, 0.0
  %v675 = vlaneseq
  %v676 = vand.u32 %v675, 127
  %vm677 = vcmp.eq.s32.totalorder %v676, 0
  %v678 = vstv %s674
  %v679 = vsel %vm677, %v678, 0.0
  %680 = vst [vmem:[%s10] sm:$0x1] %v679
  // Predicated region
  $region38: #{loconet_forward.2} parent=0 // pred_check
    _
  $region39: #{loconet_forward.2} parent=0 // pred_check_branch
    %682 = sbr.rel (0) target = $region41
  $region40: #{loconet_forward.2} parent=0 // pred_region
    _
  $region41: #{loconet_forward.2} parent=0 // pred_fallthru
    _
  // Predicated region
  $region42: #{loconet_forward.2} parent=0 // pred_check
    _
  $region43: #{loconet_forward.2} parent=0 // pred_check_branch
    %684 = sbr.rel (0) target = $region45
  $region44: #{loconet_forward.2} parent=0 // pred_region
    _
  $region45: #{loconet_forward.2} parent=0 // pred_fallthru
    _
  // Predicated region
  $region46: #{loconet_forward.2} parent=0 // pred_check
    _
  $region47: #{loconet_forward.2} parent=0 // pred_check_branch
    %686 = sbr.rel (0) target = $region49
  $region48: #{loconet_forward.2} parent=0 // pred_region
    _
  $region49: #{loconet_forward.2} parent=0 // pred_fallthru
    _
  // Predicated region
  $region50: #{loconet_forward.2} parent=0 // pred_check
    _
  $region51: #{loconet_forward.2} parent=0 // pred_check_branch
    %688 = sbr.rel (0) target = $region53
  $region52: #{loconet_forward.2} parent=0 // pred_region
    _
  $region53: #{loconet_forward.2} parent=0 // pred_fallthru
    _

// kernel: loconet_forward.3
$region0: #{loconet_forward.3}
  #allocation0 [shape = 'u32[]', space=smem, size = 0x4, offset = 0x4, fixed_abs, tag = 'smem constant byte address 0x4 - core index']
  #allocation1 [shape = 'u32[144,128]{1,0:T(1,128)}', space=vmem, size = 0x12000, scoped, tag = 'internal scratch']
  #allocation2 [shape = 'f32[16,256]{1,0:T(8,128)}', space=vmem, size = 0x4000, scoped, tag = 'scratch operand']
  %s0 = inlined_call_operand.vmem [shape: bf16[4,8,256], index: 0, kind: input, shape index: {}]
  %s1 = inlined_call_operand.vmem [shape: bf16[1,8,384], index: 1, kind: input, shape index: {}]
  %s2 = inlined_call_operand.vmem [shape: f32[4,8,2], index: 2, kind: input, shape index: {}]
  %s3 = inlined_call_operand.vmem [shape: bf16[256,128], index: 3, kind: input, shape index: {}]
  %s4 = inlined_call_operand.vmem [shape: f32[1,128], index: 4, kind: input, shape index: {}]
  %s5 = inlined_call_operand.vmem [shape: bf16[128,384], index: 5, kind: input, shape index: {}]
  %s6 = inlined_call_operand.vmem [shape: bf16[128,256], index: 6, kind: input, shape index: {}]
  %s7 = inlined_call_operand.vmem [shape: bf16[128,256], index: 7, kind: input, shape index: {}]
  %s8 = inlined_call_operand.vmem [shape: f32[1,256], index: 8, kind: input, shape index: {}]
  %s9 = inlined_call_operand.vmem [shape: bf16[256,8], index: 9, kind: input, shape index: {}]
  %s10 = inlined_call_operand.vmem [shape: bf16[256,8], index: 10, kind: input, shape index: {}]
  %s11 = inlined_call_operand.vmem [shape: f32[1,8], index: 11, kind: input, shape index: {}]
  %s12 = inlined_call_operand.vmem [shape: f32[2,1,128], index: 12, kind: output, shape index: {}]
  %s13 = sld [smem:[#allocation0]]
  $region81: #{loconet_forward.3} parent=0
    _
  %s15 = ssub.s32 1, %s13
  %s16 = scalar_select 0, %s15, %s13
  loop: start=0, step=1, limit=4
  $region2: #{loconet_forward.3} parent=0 // loop_pre_header
    _
  $region3: #{loconet_forward.3} parent=0 // loop_header
    %s18 = sphi 0, %s22
    %p19 = scmp.ge.s32.totalorder %s18, 4
    %s28 = sphi 0, %s30
    %s31 = sphi 0, %s28
    %s32 = sphi 0, %s31
    %s48 = sphi 0, %s32
    %s52 = sphi 0, %s52
    %s54 = sphi 0, %s52
    %s55 = sphi 0, %s54
    %s69 = sphi 0, %s55
    %s75 = sphi 0, %s77
    %s78 = sphi 0, %s75
    %s79 = sphi 0, %s78
    %s95 = sphi 0, %s79
    %s99 = sphi 0, %s99
    %s101 = sphi 0, %s99
    %s102 = sphi 0, %s101
    %s116 = sphi 0, %s102
    %s120 = sphi 0, %s120
    %s122 = sphi 0, %s120
    %s123 = sphi 0, %s122
    %s137 = sphi 0, %s123
    %s141 = sphi 0, %s141
    %s143 = sphi 0, %s141
    %s144 = sphi 0, %s143
    %s158 = sphi 0, %s144
    %s162 = sphi 0, %s162
    %s164 = sphi 0, %s162
    %s165 = sphi 0, %s164
    %s179 = sphi 0, %s165
    %s183 = sphi 0, %s183
    %s185 = sphi 0, %s183
    %s186 = sphi 0, %s185
    %s200 = sphi 0, %s186
    %s204 = sphi 0, %s204
    %s206 = sphi 0, %s204
    %s207 = sphi 0, %s206
    %s221 = sphi 0, %s207
    %s225 = sphi 0, %s225
    %s227 = sphi 0, %s225
    %s228 = sphi 0, %s227
    %s242 = sphi 0, %s228
    %s246 = sphi 0, %s246
    %s248 = sphi 0, %s246
    %s249 = sphi 0, %s248
    %s263 = sphi 0, %s249
    %s267 = sphi 0, %s267
    %s269 = sphi 0, %s267
    %s270 = sphi 0, %s269
    %s284 = sphi 0, %s270
    %s290 = sphi 0, %s292
    %s293 = sphi 0, %s290
    %s294 = sphi 0, %s293
    %s310 = sphi 0, %s294
  $region4: #{loconet_forward.3} parent=0 // loop_header_branch
    %21 = sbr.rel (%p19) target = $region8
  $region5: #{loconet_forward.3} parent=0 // loop_body
    %s23 = ssub.s32 %s18, 1
    %s24 = ssub.s32 %s18, 2
    %s25 = sadd.s32 %s18, 1
    %s26 = ssub.s32 %s18, %s25
    %p27 = scmp.eq.s32.totalorder %s26, 0
    %s29 = sadd.s32 %s28, 1
    %s30 = scalar_select %p27, %s28, %s29
    %p33 = pneg %p27
    %p34 = scmp.eq.s32.totalorder %s18, 1
    %p35 = por %p33, %p34
    %p36 = scmp.ne.s32.totalorder %s28, %s31
    %p37 = scmp.eq.s32.totalorder %s18, 0
    %p38 = por %p36, %p37
    %p39 = scmp.ne.s32.totalorder %s28, %s31
    %p40 = scmp.eq.s32.totalorder %s23, 1
    %p41 = por %p39, %p40
    %p42 = scmp.ne.s32.totalorder %s31, %s32
    %p43 = scmp.eq.s32.totalorder %s23, 0
    %p44 = por %p42, %p43
    %p45 = scmp.ne.s32.totalorder %s31, %s32
    %p46 = scmp.eq.s32.totalorder %s24, 1
    %p47 = por %p45, %p46
    %p49 = scmp.ne.s32.totalorder %s32, %s48
    %p50 = scmp.eq.s32.totalorder %s24, 0
    %p51 = por %p49, %p50
    %s53 = sadd.s32 %s52, 1
    %p56 = scmp.eq.s32.totalorder %s18, 1
    %p57 = scmp.ne.s32.totalorder %s52, %s54
    %p58 = scmp.eq.s32.totalorder %s18, 0
    %p59 = por %p57, %p58
    %p60 = scmp.ne.s32.totalorder %s52, %s54
    %p61 = scmp.eq.s32.totalorder %s23, 1
    %p62 = por %p60, %p61
    %p63 = scmp.ne.s32.totalorder %s54, %s55
    %p64 = scmp.eq.s32.totalorder %s23, 0
    %p65 = por %p63, %p64
    %p66 = scmp.ne.s32.totalorder %s54, %s55
    %p67 = scmp.eq.s32.totalorder %s24, 1
    %p68 = por %p66, %p67
    %p70 = scmp.ne.s32.totalorder %s55, %s69
    %p71 = scmp.eq.s32.totalorder %s24, 0
    %p72 = por %p70, %p71
    %s73 = ssub.s32 %s18, %s25
    %p74 = scmp.eq.s32.totalorder %s73, 0
    %s76 = sadd.s32 %s75, 1
    %s77 = scalar_select %p74, %s75, %s76
    %p80 = pneg %p74
    %p81 = scmp.eq.s32.totalorder %s18, 1
    %p82 = por %p80, %p81
    %p83 = scmp.ne.s32.totalorder %s75, %s78
    %p84 = scmp.eq.s32.totalorder %s18, 0
    %p85 = por %p83, %p84
    %p86 = scmp.ne.s32.totalorder %s75, %s78
    %p87 = scmp.eq.s32.totalorder %s23, 1
    %p88 = por %p86, %p87
    %p89 = scmp.ne.s32.totalorder %s78, %s79
    %p90 = scmp.eq.s32.totalorder %s23, 0
    %p91 = por %p89, %p90
    %p92 = scmp.ne.s32.totalorder %s78, %s79
    %p93 = scmp.eq.s32.totalorder %s24, 1
    %p94 = por %p92, %p93
    %p96 = scmp.ne.s32.totalorder %s79, %s95
    %p97 = scmp.eq.s32.totalorder %s24, 0
    %p98 = por %p96, %p97
    %s100 = sadd.s32 %s99, 1
    %p103 = scmp.eq.s32.totalorder %s18, 1
    %p104 = scmp.ne.s32.totalorder %s99, %s101
    %p105 = scmp.eq.s32.totalorder %s18, 0
    %p106 = por %p104, %p105
    %p107 = scmp.ne.s32.totalorder %s99, %s101
    %p108 = scmp.eq.s32.totalorder %s23, 1
    %p109 = por %p107, %p108
    %p110 = scmp.ne.s32.totalorder %s101, %s102
    %p111 = scmp.eq.s32.totalorder %s23, 0
    %p112 = por %p110, %p111
    %p113 = scmp.ne.s32.totalorder %s101, %s102
    %p114 = scmp.eq.s32.totalorder %s24, 1
    %p115 = por %p113, %p114
    %p117 = scmp.ne.s32.totalorder %s102, %s116
    %p118 = scmp.eq.s32.totalorder %s24, 0
    %p119 = por %p117, %p118
    %s121 = sadd.s32 %s120, 1
    %p124 = scmp.eq.s32.totalorder %s18, 1
    %p125 = scmp.ne.s32.totalorder %s120, %s122
    %p126 = scmp.eq.s32.totalorder %s18, 0
    %p127 = por %p125, %p126
    %p128 = scmp.ne.s32.totalorder %s120, %s122
    %p129 = scmp.eq.s32.totalorder %s23, 1
    %p130 = por %p128, %p129
    %p131 = scmp.ne.s32.totalorder %s122, %s123
    %p132 = scmp.eq.s32.totalorder %s23, 0
    %p133 = por %p131, %p132
    %p134 = scmp.ne.s32.totalorder %s122, %s123
    %p135 = scmp.eq.s32.totalorder %s24, 1
    %p136 = por %p134, %p135
    %p138 = scmp.ne.s32.totalorder %s123, %s137
    %p139 = scmp.eq.s32.totalorder %s24, 0
    %p140 = por %p138, %p139
    %s142 = sadd.s32 %s141, 1
    %p145 = scmp.eq.s32.totalorder %s18, 1
    %p146 = scmp.ne.s32.totalorder %s141, %s143
    %p147 = scmp.eq.s32.totalorder %s18, 0
    %p148 = por %p146, %p147
    %p149 = scmp.ne.s32.totalorder %s141, %s143
    %p150 = scmp.eq.s32.totalorder %s23, 1
    %p151 = por %p149, %p150
    %p152 = scmp.ne.s32.totalorder %s143, %s144
    %p153 = scmp.eq.s32.totalorder %s23, 0
    %p154 = por %p152, %p153
    %p155 = scmp.ne.s32.totalorder %s143, %s144
    %p156 = scmp.eq.s32.totalorder %s24, 1
    %p157 = por %p155, %p156
    %p159 = scmp.ne.s32.totalorder %s144, %s158
    %p160 = scmp.eq.s32.totalorder %s24, 0
    %p161 = por %p159, %p160
    %s163 = sadd.s32 %s162, 1
    %p166 = scmp.eq.s32.totalorder %s18, 1
    %p167 = scmp.ne.s32.totalorder %s162, %s164
    %p168 = scmp.eq.s32.totalorder %s18, 0
    %p169 = por %p167, %p168
    %p170 = scmp.ne.s32.totalorder %s162, %s164
    %p171 = scmp.eq.s32.totalorder %s23, 1
    %p172 = por %p170, %p171
    %p173 = scmp.ne.s32.totalorder %s164, %s165
    %p174 = scmp.eq.s32.totalorder %s23, 0
    %p175 = por %p173, %p174
    %p176 = scmp.ne.s32.totalorder %s164, %s165
    %p177 = scmp.eq.s32.totalorder %s24, 1
    %p178 = por %p176, %p177
    %p180 = scmp.ne.s32.totalorder %s165, %s179
    %p181 = scmp.eq.s32.totalorder %s24, 0
    %p182 = por %p180, %p181
    %s184 = sadd.s32 %s183, 1
    %p187 = scmp.eq.s32.totalorder %s18, 1
    %p188 = scmp.ne.s32.totalorder %s183, %s185
    %p189 = scmp.eq.s32.totalorder %s18, 0
    %p190 = por %p188, %p189
    %p191 = scmp.ne.s32.totalorder %s183, %s185
    %p192 = scmp.eq.s32.totalorder %s23, 1
    %p193 = por %p191, %p192
    %p194 = scmp.ne.s32.totalorder %s185, %s186
    %p195 = scmp.eq.s32.totalorder %s23, 0
    %p196 = por %p194, %p195
    %p197 = scmp.ne.s32.totalorder %s185, %s186
    %p198 = scmp.eq.s32.totalorder %s24, 1
    %p199 = por %p197, %p198
    %p201 = scmp.ne.s32.totalorder %s186, %s200
    %p202 = scmp.eq.s32.totalorder %s24, 0
    %p203 = por %p201, %p202
    %s205 = sadd.s32 %s204, 1
    %p208 = scmp.eq.s32.totalorder %s18, 1
    %p209 = scmp.ne.s32.totalorder %s204, %s206
    %p210 = scmp.eq.s32.totalorder %s18, 0
    %p211 = por %p209, %p210
    %p212 = scmp.ne.s32.totalorder %s204, %s206
    %p213 = scmp.eq.s32.totalorder %s23, 1
    %p214 = por %p212, %p213
    %p215 = scmp.ne.s32.totalorder %s206, %s207
    %p216 = scmp.eq.s32.totalorder %s23, 0
    %p217 = por %p215, %p216
    %p218 = scmp.ne.s32.totalorder %s206, %s207
    %p219 = scmp.eq.s32.totalorder %s24, 1
    %p220 = por %p218, %p219
    %p222 = scmp.ne.s32.totalorder %s207, %s221
    %p223 = scmp.eq.s32.totalorder %s24, 0
    %p224 = por %p222, %p223
    %s226 = sadd.s32 %s225, 1
    %p229 = scmp.eq.s32.totalorder %s18, 1
    %p230 = scmp.ne.s32.totalorder %s225, %s227
    %p231 = scmp.eq.s32.totalorder %s18, 0
    %p232 = por %p230, %p231
    %p233 = scmp.ne.s32.totalorder %s225, %s227
    %p234 = scmp.eq.s32.totalorder %s23, 1
    %p235 = por %p233, %p234
    %p236 = scmp.ne.s32.totalorder %s227, %s228
    %p237 = scmp.eq.s32.totalorder %s23, 0
    %p238 = por %p236, %p237
    %p239 = scmp.ne.s32.totalorder %s227, %s228
    %p240 = scmp.eq.s32.totalorder %s24, 1
    %p241 = por %p239, %p240
    %p243 = scmp.ne.s32.totalorder %s228, %s242
    %p244 = scmp.eq.s32.totalorder %s24, 0
    %p245 = por %p243, %p244
    %s247 = sadd.s32 %s246, 1
    %p250 = scmp.eq.s32.totalorder %s18, 1
    %p251 = scmp.ne.s32.totalorder %s246, %s248
    %p252 = scmp.eq.s32.totalorder %s18, 0
    %p253 = por %p251, %p252
    %p254 = scmp.ne.s32.totalorder %s246, %s248
    %p255 = scmp.eq.s32.totalorder %s23, 1
    %p256 = por %p254, %p255
    %p257 = scmp.ne.s32.totalorder %s248, %s249
    %p258 = scmp.eq.s32.totalorder %s23, 0
    %p259 = por %p257, %p258
    %p260 = scmp.ne.s32.totalorder %s248, %s249
    %p261 = scmp.eq.s32.totalorder %s24, 1
    %p262 = por %p260, %p261
    %p264 = scmp.ne.s32.totalorder %s249, %s263
    %p265 = scmp.eq.s32.totalorder %s24, 0
    %p266 = por %p264, %p265
    %s268 = sadd.s32 %s267, 1
    %p271 = scmp.eq.s32.totalorder %s18, 1
    %p272 = scmp.ne.s32.totalorder %s267, %s269
    %p273 = scmp.eq.s32.totalorder %s18, 0
    %p274 = por %p272, %p273
    %p275 = scmp.ne.s32.totalorder %s267, %s269
    %p276 = scmp.eq.s32.totalorder %s23, 1
    %p277 = por %p275, %p276
    %p278 = scmp.ne.s32.totalorder %s269, %s270
    %p279 = scmp.eq.s32.totalorder %s23, 0
    %p280 = por %p278, %p279
    %p281 = scmp.ne.s32.totalorder %s269, %s270
    %p282 = scmp.eq.s32.totalorder %s24, 1
    %p283 = por %p281, %p282
    %p285 = scmp.ne.s32.totalorder %s270, %s284
    %p286 = scmp.eq.s32.totalorder %s24, 0
    %p287 = por %p285, %p286
    %s288 = ssub.s32 %s18, %s25
    %p289 = scmp.eq.s32.totalorder %s288, 0
    %s291 = sadd.s32 %s290, 1
    %s292 = scalar_select %p289, %s290, %s291
    %p295 = pneg %p289
    %p296 = scmp.eq.s32.totalorder %s18, 1
    %p297 = por %p295, %p296
    %p298 = scmp.ne.s32.totalorder %s290, %s293
    %p299 = scmp.eq.s32.totalorder %s18, 0
    %p300 = por %p298, %p299
    %p301 = scmp.ne.s32.totalorder %s290, %s293
    %p302 = scmp.eq.s32.totalorder %s23, 1
    %p303 = por %p301, %p302
    %p304 = scmp.ne.s32.totalorder %s293, %s294
    %p305 = scmp.eq.s32.totalorder %s23, 0
    %p306 = por %p304, %p305
    %p307 = scmp.ne.s32.totalorder %s293, %s294
    %p308 = scmp.eq.s32.totalorder %s24, 1
    %p309 = por %p307, %p308
    %p311 = scmp.ne.s32.totalorder %s294, %s310
    %p312 = scmp.eq.s32.totalorder %s24, 0
    %p313 = por %p311, %p312
    %p314 = scmp.le.s32.totalorder 1, %s18
    %p315 = scmp.lt.s32.totalorder %s18, 3
    %p316 = pnand %p314, %p315
    %p317 = pneg %p316
    // Predicated region
    $region9: #{loconet_forward.3} parent=5 // pred_check
      _
    $region10: #{loconet_forward.3} parent=5 // pred_check_branch
      %319 = sbr.rel (%p316) target = $region12
    $region11: #{loconet_forward.3} parent=5 // pred_region
      %s320 = ssub.s32 %s18, 1
      // Predicated region
      $region13: #{loconet_forward.3} parent=11 // pred_check
        %p321 = pneg %p65
      $region14: #{loconet_forward.3} parent=11 // pred_check_branch
        %323 = sbr.rel (%p321) target = $region16
      $region15: #{loconet_forward.3} parent=11 // pred_region
        _
      $region16: #{loconet_forward.3} parent=11 // pred_fallthru
        _
      // Predicated region
      $region17: #{loconet_forward.3} parent=11 // pred_check
        %p324 = pneg %p112
      $region18: #{loconet_forward.3} parent=11 // pred_check_branch
        %326 = sbr.rel (%p324) target = $region20
      $region19: #{loconet_forward.3} parent=11 // pred_region
        _
      $region20: #{loconet_forward.3} parent=11 // pred_fallthru
        _
      // Predicated region
      $region21: #{loconet_forward.3} parent=11 // pred_check
        %p327 = pneg %p133
      $region22: #{loconet_forward.3} parent=11 // pred_check_branch
        %329 = sbr.rel (%p327) target = $region24
      $region23: #{loconet_forward.3} parent=11 // pred_region
        _
      $region24: #{loconet_forward.3} parent=11 // pred_fallthru
        _
      // Predicated region
      $region25: #{loconet_forward.3} parent=11 // pred_check
        %p330 = pneg %p154
      $region26: #{loconet_forward.3} parent=11 // pred_check_branch
        %332 = sbr.rel (%p330) target = $region28
      $region27: #{loconet_forward.3} parent=11 // pred_region
        _
      $region28: #{loconet_forward.3} parent=11 // pred_fallthru
        _
      // Predicated region
      $region29: #{loconet_forward.3} parent=11 // pred_check
        %p333 = pneg %p175
      $region30: #{loconet_forward.3} parent=11 // pred_check_branch
        %335 = sbr.rel (%p333) target = $region32
      $region31: #{loconet_forward.3} parent=11 // pred_region
        _
      $region32: #{loconet_forward.3} parent=11 // pred_fallthru
        _
      // Predicated region
      $region33: #{loconet_forward.3} parent=11 // pred_check
        %p336 = pneg %p196
      $region34: #{loconet_forward.3} parent=11 // pred_check_branch
        %338 = sbr.rel (%p336) target = $region36
      $region35: #{loconet_forward.3} parent=11 // pred_region
        _
      $region36: #{loconet_forward.3} parent=11 // pred_fallthru
        _
      // Predicated region
      $region37: #{loconet_forward.3} parent=11 // pred_check
        %p339 = pneg %p217
      $region38: #{loconet_forward.3} parent=11 // pred_check_branch
        %341 = sbr.rel (%p339) target = $region40
      $region39: #{loconet_forward.3} parent=11 // pred_region
        _
      $region40: #{loconet_forward.3} parent=11 // pred_fallthru
        _
      // Predicated region
      $region41: #{loconet_forward.3} parent=11 // pred_check
        %p342 = pneg %p238
      $region42: #{loconet_forward.3} parent=11 // pred_check_branch
        %344 = sbr.rel (%p342) target = $region44
      $region43: #{loconet_forward.3} parent=11 // pred_region
        _
      $region44: #{loconet_forward.3} parent=11 // pred_fallthru
        _
      // Predicated region
      $region45: #{loconet_forward.3} parent=11 // pred_check
        %p345 = pneg %p259
      $region46: #{loconet_forward.3} parent=11 // pred_check_branch
        %347 = sbr.rel (%p345) target = $region48
      $region47: #{loconet_forward.3} parent=11 // pred_region
        _
      $region48: #{loconet_forward.3} parent=11 // pred_fallthru
        _
      // Predicated region
      $region49: #{loconet_forward.3} parent=11 // pred_check
        %p348 = pneg %p280
      $region50: #{loconet_forward.3} parent=11 // pred_check_branch
        %350 = sbr.rel (%p348) target = $region52
      $region51: #{loconet_forward.3} parent=11 // pred_region
        _
      $region52: #{loconet_forward.3} parent=11 // pred_fallthru
        _
    $region12: #{loconet_forward.3} parent=5 // pred_fallthru
      _
    %p351 = scmp.lt.s32.totalorder %s18, 2
    // Predicated region
    $region53: #{loconet_forward.3} parent=5 // pred_check
      %p352 = pneg %p351
    $region54: #{loconet_forward.3} parent=5 // pred_check_branch
      %354 = sbr.rel (%p352) target = $region56
    $region55: #{loconet_forward.3} parent=5 // pred_region
      // Predicated region
      $region57: #{loconet_forward.3} parent=55 // pred_check
        %p355 = pneg %p38
      $region58: #{loconet_forward.3} parent=55 // pred_check_branch
        %357 = sbr.rel (%p355) target = $region60
      $region59: #{loconet_forward.3} parent=55 // pred_region
        %s358 = smul.u32 2, %s18
        %p359 = scmp.lt.s32.totalorder %s358, 3
        %s360 = scalar_select %p359, %s358, 3
        %s361 = smul.addr %s360, 2
        %s362 = smul.addr %s361, 4
        %s363 = scalar_lea.vmem %s0, %s362
        %s364 = smul.u32 2, %s18
      $region60: #{loconet_forward.3} parent=55 // pred_fallthru
        _
      // Predicated region
      $region61: #{loconet_forward.3} parent=55 // pred_check
        %p365 = pneg %p85
      $region62: #{loconet_forward.3} parent=55 // pred_check_branch
        %367 = sbr.rel (%p365) target = $region64
      $region63: #{loconet_forward.3} parent=55 // pred_region
        %s368 = smul.u32 2, %s18
        %p369 = scmp.lt.s32.totalorder %s368, 3
        %s370 = scalar_select %p369, %s368, 3
        %s371 = smul.addr %s370, 8
        %s372 = scalar_lea.vmem %s2, %s371
        %s373 = smul.u32 2, %s18
      $region64: #{loconet_forward.3} parent=55 // pred_fallthru
        _
    $region56: #{loconet_forward.3} parent=5 // pred_fallthru
      _
    %p374 = scmp.le.s32.totalorder 1, %s18
    %p375 = scmp.lt.s32.totalorder %s18, 3
    %p376 = pnand %p374, %p375
    %p377 = pneg %p376
    // Predicated region
    $region65: #{loconet_forward.3} parent=5 // pred_check
      _
    $region66: #{loconet_forward.3} parent=5 // pred_check_branch
      %379 = sbr.rel (%p376) target = $region68
    $region67: #{loconet_forward.3} parent=5 // pred_region
      %s380 = ssub.s32 %s18, 1
      %s381 = smul.u32 2, %s23
      %p382 = scmp.lt.s32.totalorder %s381, 3
      %s383 = scalar_select %p382, %s381, 3
      %s384 = smul.addr %s383, 2
      %s385 = smul.addr %s384, 4
      %s386 = scalar_lea.vmem %s0, %s385
      %p387 = pneg %p44
      %p388 = pneg %p41
      %p389 = pneg %p65
      %p390 = pneg %p62
      %s391 = smul.u32 2, %s23
      %p392 = scmp.lt.s32.totalorder %s391, 3
      %s393 = scalar_select %p392, %s391, 3
      %s394 = smul.addr %s393, 8
      %s395 = scalar_lea.vmem %s2, %s394
      %p396 = pneg %p91
      %p397 = pneg %p88
      %p398 = pneg %p112
      %p399 = pneg %p109
      %p400 = pneg %p133
      %p401 = pneg %p130
      %p402 = pneg %p154
      %p403 = pneg %p151
      %p404 = pneg %p175
      %p405 = pneg %p172
      %p406 = pneg %p196
      %p407 = pneg %p193
      %p408 = pneg %p217
      %p409 = pneg %p214
      %p410 = pneg %p238
      %p411 = pneg %p235
      %p412 = pneg %p259
      %p413 = pneg %p256
      %p414 = pneg %p280
      %p415 = pneg %p277
      %p416 = pneg %p306
      %p417 = pneg %p303
      %p418 = scmp.lt.s32.totalorder %s23, 1
      %s419 = scalar_select %p418, %s23, 1
      %s420 = scalar_lea.vmem %s12, %s419
      %s421 = smul.u32 2, %s23
      %p422 = scmp.lt.s32.totalorder %s421, 3
      %s423 = scalar_select %p422, %s421, 3
      %s424 = smul.addr %s423, 2
      %s425 = smul.addr %s424, 4
      %s426 = scalar_lea.vmem %s0, %s425
      %s427 = smul.u32 2, %s23
      %s428 = smul.u32 2, %s23
      %p429 = scmp.lt.s32.totalorder %s428, 3
      %s430 = scalar_select %p429, %s428, 3
      %s431 = smul.addr %s430, 8
      %s432 = scalar_lea.vmem %s2, %s431
      %s433 = smul.u32 2, %s23
      %p434 = scmp.lt.s32.totalorder %s23, 1
      %s435 = scalar_select %p434, %s23, 1
      %s436 = scalar_lea.vmem %s12, %s435
      %v438 = vld [vmem:[%s426] sm:$0xff]
      %v439 = vld [vmem:[%s426 + $0x8] sm:$0xff]
      %v440 = vld [vmem:[%s3] sm:$0xf]
      %v441 = vld [vmem:[%s3 + $0x4] sm:$0xf]
      %v442 = vld [vmem:[%s3 + $0x8] sm:$0xf]
      %v443 = vld [vmem:[%s3 + $0xc] sm:$0xf]
      %v444 = vld [vmem:[%s3 + $0x10] sm:$0xf]
      %v445 = vld [vmem:[%s3 + $0x14] sm:$0xf]
      %v446 = vld [vmem:[%s3 + $0x18] sm:$0xf]
      %v447 = vld [vmem:[%s3 + $0x1c] sm:$0xf]
      %v448 = vld [vmem:[%s3 + $0x20] sm:$0xf]
      %v449 = vld [vmem:[%s3 + $0x24] sm:$0xf]
      %v450 = vld [vmem:[%s3 + $0x28] sm:$0xf]
      %v451 = vld [vmem:[%s3 + $0x2c] sm:$0xf]
      %v452 = vld [vmem:[%s3 + $0x30] sm:$0xf]
      %v453 = vld [vmem:[%s3 + $0x34] sm:$0xf]
      %v454 = vld [vmem:[%s3 + $0x38] sm:$0xf]
      %v455 = vld [vmem:[%s3 + $0x3c] sm:$0xf]
      %v456 = vld [vmem:[%s3 + $0x40] sm:$0xf]
      %v457 = vld [vmem:[%s3 + $0x44] sm:$0xf]
      %v458 = vld [vmem:[%s3 + $0x48] sm:$0xf]
      %v459 = vld [vmem:[%s3 + $0x4c] sm:$0xf]
      %v460 = vld [vmem:[%s3 + $0x50] sm:$0xf]
      %v461 = vld [vmem:[%s3 + $0x54] sm:$0xf]
      %v462 = vld [vmem:[%s3 + $0x58] sm:$0xf]
      %v463 = vld [vmem:[%s3 + $0x5c] sm:$0xf]
      %v464 = vld [vmem:[%s3 + $0x60] sm:$0xf]
      %v465 = vld [vmem:[%s3 + $0x64] sm:$0xf]
      %v466 = vld [vmem:[%s3 + $0x68] sm:$0xf]
      %v467 = vld [vmem:[%s3 + $0x6c] sm:$0xf]
      %v468 = vld [vmem:[%s3 + $0x70] sm:$0xf]
      %v469 = vld [vmem:[%s3 + $0x74] sm:$0xf]
      %v470 = vld [vmem:[%s3 + $0x78] sm:$0xf]
      %v471 = vld [vmem:[%s3 + $0x7c] sm:$0xf]
      %v472 = vld [vmem:[%s4] sm:$0x1]
      %v474 = vlaneseq
      %v475 = vshrl.u32 %v474, 7
      %v476 = vsub.s32 0, %v475
      %v477 = vrot.slane %v472, %v476
      %v481 = vunpack.c.l.b16 %v438
      %v482 = vunpack.c.h.b16 %v438
      %v483 = vunpack.c.l.b16 %v439
      %v484 = vunpack.c.h.b16 %v439
      %v485 = vpack.c.b16 %v483, %v481
      %v486 = vpack.c.b16 %v484, %v482
      %v521 = vunpack.c.l.b16 %v440
      %v522 = vunpack.c.l.b16 %v441
      %v523 = vunpack.c.l.b16 %v442
      %v524 = vunpack.c.l.b16 %v443
      %v525 = vunpack.c.l.b16 %v444
      %v526 = vunpack.c.l.b16 %v445
      %v527 = vunpack.c.l.b16 %v446
      %v528 = vunpack.c.l.b16 %v447
      %v529 = vunpack.c.l.b16 %v448
      %v530 = vunpack.c.l.b16 %v449
      %v531 = vunpack.c.l.b16 %v450
      %v532 = vunpack.c.l.b16 %v451
      %v533 = vunpack.c.l.b16 %v452
      %v534 = vunpack.c.l.b16 %v453
      %v535 = vunpack.c.l.b16 %v454
      %v536 = vunpack.c.l.b16 %v455
      %v537 = vunpack.c.l.b16 %v456
      %v538 = vunpack.c.l.b16 %v457
      %v539 = vunpack.c.l.b16 %v458
      %v540 = vunpack.c.l.b16 %v459
      %v541 = vunpack.c.l.b16 %v460
      %v542 = vunpack.c.l.b16 %v461
      %v543 = vunpack.c.l.b16 %v462
      %v544 = vunpack.c.l.b16 %v463
      %v545 = vunpack.c.l.b16 %v464
      %v546 = vunpack.c.l.b16 %v465
      %v547 = vunpack.c.l.b16 %v466
      %v548 = vunpack.c.l.b16 %v467
      %v549 = vunpack.c.l.b16 %v468
      %v550 = vunpack.c.l.b16 %v469
      %v551 = vunpack.c.l.b16 %v470
      %v552 = vunpack.c.l.b16 %v471
      %v553 = vpack.c.b16 %v522, %v521
      %v554 = vpack.c.b16 %v524, %v523
      %v555 = vpack.c.b16 %v526, %v525
      %v556 = vpack.c.b16 %v528, %v527
      %v557 = vpack.c.b16 %v530, %v529
      %v558 = vpack.c.b16 %v532, %v531
      %v559 = vpack.c.b16 %v534, %v533
      %v560 = vpack.c.b16 %v536, %v535
      %v561 = vpack.c.b16 %v538, %v537
      %v562 = vpack.c.b16 %v540, %v539
      %v563 = vpack.c.b16 %v542, %v541
      %v564 = vpack.c.b16 %v544, %v543
      %v565 = vpack.c.b16 %v546, %v545
      %v566 = vpack.c.b16 %v548, %v547
      %v567 = vpack.c.b16 %v550, %v549
      %v568 = vpack.c.b16 %v552, %v551
      %585 = vmatprep.subr.bf16.mxu0 0
      %586 = vmatpush1.bf16.msra.mxu0 %v553
      %587 = vmatprep.subr.bf16.mxu0 0
      %588 = vmatpush1.bf16.msra.mxu0 %v554
      %589 = vmatprep.subr.bf16.mxu0 0
      %590 = vmatpush1.bf16.msra.mxu0 %v555
      %591 = vmatprep.subr.bf16.mxu0 0
      %592 = vmatpush1.bf16.msra.mxu0 %v556
      %593 = vmatprep.subr.bf16.mxu0 0
      %594 = vmatpush1.bf16.msra.mxu0 %v557
      %595 = vmatprep.subr.bf16.mxu0 0
      %596 = vmatpush1.bf16.msra.mxu0 %v558
      %597 = vmatprep.subr.bf16.mxu0 0
      %598 = vmatpush1.bf16.msra.mxu0 %v559
      %599 = vmatprep.subr.bf16.mxu0 0
      %600 = vmatpush1.bf16.msra.mxu0 %v560
      %601 = vmatprep.subr.bf16.mxu0 0
      %602 = vmatpush1.bf16.msra.mxu0 %v561
      %603 = vmatprep.subr.bf16.mxu0 0
      %604 = vmatpush1.bf16.msra.mxu0 %v562
      %605 = vmatprep.subr.bf16.mxu0 0
      %606 = vmatpush1.bf16.msra.mxu0 %v563
      %607 = vmatprep.subr.bf16.mxu0 0
      %608 = vmatpush1.bf16.msra.mxu0 %v564
      %609 = vmatprep.subr.bf16.mxu0 0
      %610 = vmatpush1.bf16.msra.mxu0 %v565
      %611 = vmatprep.subr.bf16.mxu0 0
      %612 = vmatpush1.bf16.msra.mxu0 %v566
      %613 = vmatprep.subr.bf16.mxu0 0
      %614 = vmatpush1.bf16.msra.mxu0 %v567
      %615 = vmatprep.subr.bf16.mxu0 0
      %616 = vmatpush1.bf16.msra.mxu0 %v568
      %617 = vmatprep.mubr.bf16.mxu0 %v486
      %618 = vmatmul.mubr.bf16.gmra.mrb[0].mxu0 %v485
      %v619 = vpop.f32.mrb[0].mxu0
      %v620 = vadd.f32 %v477, %v619
      %v621 = vpop.f32.mrb[0].mxu0
      %v622 = vpop.f32.mrb[0].mxu0
      %v623 = vadd.f32 %v477, %v622
      %v624 = vpop.f32.mrb[0].mxu0
      %625 = vdwg.mxu0
      %v626 = vpack.c.bf16 %v623, %v620
      %v627 = vld [vmem:[%s5] sm:$0xff]
      %v628 = vld [vmem:[%s5 + $0x8] sm:$0xf]
      %v629 = vld [vmem:[%s5 + $0xc] sm:$0xff]
      %v630 = vld [vmem:[%s5 + $0x14] sm:$0xf]
      %v631 = vld [vmem:[%s5 + $0x18] sm:$0xff]
      %v632 = vld [vmem:[%s5 + $0x20] sm:$0xf]
      %v633 = vld [vmem:[%s5 + $0x24] sm:$0xff]
      %v634 = vld [vmem:[%s5 + $0x2c] sm:$0xf]
      %v635 = vld [vmem:[%s5 + $0x30] sm:$0xff]
      %v636 = vld [vmem:[%s5 + $0x38] sm:$0xf]
      %v637 = vld [vmem:[%s5 + $0x3c] sm:$0xff]
      %v638 = vld [vmem:[%s5 + $0x44] sm:$0xf]
      %v639 = vld [vmem:[%s5 + $0x48] sm:$0xff]
      %v640 = vld [vmem:[%s5 + $0x50] sm:$0xf]
      %v641 = vld [vmem:[%s5 + $0x54] sm:$0xff]
      %v642 = vld [vmem:[%s5 + $0x5c] sm:$0xf]
      %v643 = vld [vmem:[%s5 + $0x60] sm:$0xff]
      %v644 = vld [vmem:[%s5 + $0x68] sm:$0xf]
      %v645 = vld [vmem:[%s5 + $0x6c] sm:$0xff]
      %v646 = vld [vmem:[%s5 + $0x74] sm:$0xf]
      %v647 = vld [vmem:[%s5 + $0x78] sm:$0xff]
      %v648 = vld [vmem:[%s5 + $0x80] sm:$0xf]
      %v649 = vld [vmem:[%s5 + $0x84] sm:$0xff]
      %v650 = vld [vmem:[%s5 + $0x8c] sm:$0xf]
      %v651 = vld [vmem:[%s5 + $0x90] sm:$0xff]
      %v652 = vld [vmem:[%s5 + $0x98] sm:$0xf]
      %v653 = vld [vmem:[%s5 + $0x9c] sm:$0xff]
      %v654 = vld [vmem:[%s5 + $0xa4] sm:$0xf]
      %v655 = vld [vmem:[%s5 + $0xa8] sm:$0xff]
      %v656 = vld [vmem:[%s5 + $0xb0] sm:$0xf]
      %v657 = vld [vmem:[%s5 + $0xb4] sm:$0xff]
      %v658 = vld [vmem:[%s5 + $0xbc] sm:$0xf]
      %v691 = vunpack.c.l.b16 %v627
      %v692 = vunpack.c.h.b16 %v627
      %v693 = vunpack.c.l.b16 %v628
      %v694 = vunpack.c.l.b16 %v629
      %v695 = vunpack.c.h.b16 %v629
      %v696 = vunpack.c.l.b16 %v630
      %v697 = vunpack.c.l.b16 %v631
      %v698 = vunpack.c.h.b16 %v631
      %v699 = vunpack.c.l.b16 %v632
      %v700 = vunpack.c.l.b16 %v633
      %v701 = vunpack.c.h.b16 %v633
      %v702 = vunpack.c.l.b16 %v634
      %v703 = vunpack.c.l.b16 %v635
      %v704 = vunpack.c.h.b16 %v635
      %v705 = vunpack.c.l.b16 %v636
      %v706 = vunpack.c.l.b16 %v637
      %v707 = vunpack.c.h.b16 %v637
      %v708 = vunpack.c.l.b16 %v638
      %v709 = vunpack.c.l.b16 %v639
      %v710 = vunpack.c.h.b16 %v639
      %v711 = vunpack.c.l.b16 %v640
      %v712 = vunpack.c.l.b16 %v641
      %v713 = vunpack.c.h.b16 %v641
      %v714 = vunpack.c.l.b16 %v642
      %v715 = vunpack.c.l.b16 %v643
      %v716 = vunpack.c.h.b16 %v643
      %v717 = vunpack.c.l.b16 %v644
      %v718 = vunpack.c.l.b16 %v645
      %v719 = vunpack.c.h.b16 %v645
      %v720 = vunpack.c.l.b16 %v646
      %v721 = vunpack.c.l.b16 %v647
      %v722 = vunpack.c.h.b16 %v647
      %v723 = vunpack.c.l.b16 %v648
      %v724 = vunpack.c.l.b16 %v649
      %v725 = vunpack.c.h.b16 %v649
      %v726 = vunpack.c.l.b16 %v650
      %v727 = vunpack.c.l.b16 %v651
      %v728 = vunpack.c.h.b16 %v651
      %v729 = vunpack.c.l.b16 %v652
      %v730 = vunpack.c.l.b16 %v653
      %v731 = vunpack.c.h.b16 %v653
      %v732 = vunpack.c.l.b16 %v654
      %v733 = vunpack.c.l.b16 %v655
      %v734 = vunpack.c.h.b16 %v655
      %v735 = vunpack.c.l.b16 %v656
      %v736 = vunpack.c.l.b16 %v657
      %v737 = vunpack.c.h.b16 %v657
      %v738 = vunpack.c.l.b16 %v658
      %v739 = vpack.c.b16 %v694, %v691
      %v740 = vpack.c.b16 %v695, %v692
      %v741 = vpack.c.b16 %v696, %v693
      %v742 = vpack.c.b16 %v700, %v697
      %v743 = vpack.c.b16 %v701, %v698
      %v744 = vpack.c.b16 %v702, %v699
      %v745 = vpack.c.b16 %v706, %v703
      %v746 = vpack.c.b16 %v707, %v704
      %v747 = vpack.c.b16 %v708, %v705
      %v748 = vpack.c.b16 %v712, %v709
      %v749 = vpack.c.b16 %v713, %v710
      %v750 = vpack.c.b16 %v714, %v711
      %v751 = vpack.c.b16 %v718, %v715
      %v752 = vpack.c.b16 %v719, %v716
      %v753 = vpack.c.b16 %v720, %v717
      %v754 = vpack.c.b16 %v724, %v721
      %v755 = vpack.c.b16 %v725, %v722
      %v756 = vpack.c.b16 %v726, %v723
      %v757 = vpack.c.b16 %v730, %v727
      %v758 = vpack.c.b16 %v731, %v728
      %v759 = vpack.c.b16 %v732, %v729
      %v760 = vpack.c.b16 %v736, %v733
      %v761 = vpack.c.b16 %v737, %v734
      %v762 = vpack.c.b16 %v738, %v735
      %787 = vmatprep.subr.bf16.mxu0 %v740
      %788 = vmatpush1.bf16.msra.mxu0 %v739
      %789 = vmatprep.subr.bf16.mxu0 %v743
      %790 = vmatpush1.bf16.msra.mxu0 %v742
      %791 = vmatprep.subr.bf16.mxu0 %v746
      %792 = vmatpush1.bf16.msra.mxu0 %v745
      %793 = vmatprep.subr.bf16.mxu0 %v749
      %794 = vmatpush1.bf16.msra.mxu0 %v748
      %795 = vmatprep.subr.bf16.mxu0 %v752
      %796 = vmatpush1.bf16.msra.mxu0 %v751
      %797 = vmatprep.subr.bf16.mxu0 %v755
      %798 = vmatpush1.bf16.msra.mxu0 %v754
      %799 = vmatprep.subr.bf16.mxu0 %v758
      %800 = vmatpush1.bf16.msra.mxu0 %v757
      %801 = vmatprep.subr.bf16.mxu0 %v761
      %802 = vmatpush1.bf16.msra.mxu0 %v760
      %803 = vmatprep.subr.bf16.mxu0 0
      %804 = vmatpush1.bf16.msra.mxu0 0
      %805 = vmatprep.subr.bf16.mxu0 0
      %806 = vmatpush1.bf16.msra.mxu0 0
      %807 = vmatprep.subr.bf16.mxu0 0
      %808 = vmatpush1.bf16.msra.mxu0 0
      %809 = vmatprep.subr.bf16.mxu0 0
      %810 = vmatpush1.bf16.msra.mxu0 0
      %811 = vmatprep.subr.bf16.mxu0 0
      %812 = vmatpush1.bf16.msra.mxu0 0
      %813 = vmatprep.subr.bf16.mxu0 0
      %814 = vmatpush1.bf16.msra.mxu0 0
      %815 = vmatprep.subr.bf16.mxu0 0
      %816 = vmatpush1.bf16.msra.mxu0 0
      %817 = vmatprep.subr.bf16.mxu0 0
      %818 = vmatpush1.bf16.msra.mxu0 0
      %819 = vmatprep.mubr.bf16.mxu0 0
      %820 = vmatmul.mubr.bf16.gmra.mrb[0].mxu0 %v626
      %v821 = vpop.f32.mrb[0].mxu0
      %v822 = vadd.f32 0.0, %v821
      %v823 = vpop.f32.mrb[0].mxu0
      %v824 = vadd.f32 0.0, %v823
      %v825 = vpop.f32.mrb[0].mxu0
      %v826 = vadd.f32 0.0, %v825
      %v827 = vpop.f32.mrb[0].mxu0
      %v828 = vadd.f32 0.0, %v827
      %829 = vdwg.mxu0
      %830 = vmatprep.subr.bf16.mxu0 0
      %831 = vmatpush1.bf16.msra.mxu0 %v741
      %832 = vmatprep.subr.bf16.mxu0 0
      %833 = vmatpush1.bf16.msra.mxu0 %v744
      %834 = vmatprep.subr.bf16.mxu0 0
      %835 = vmatpush1.bf16.msra.mxu0 %v747
      %836 = vmatprep.subr.bf16.mxu0 0
      %837 = vmatpush1.bf16.msra.mxu0 %v750
      %838 = vmatprep.subr.bf16.mxu0 0
      %839 = vmatpush1.bf16.msra.mxu0 %v753
      %840 = vmatprep.subr.bf16.mxu0 0
      %841 = vmatpush1.bf16.msra.mxu0 %v756
      %842 = vmatprep.subr.bf16.mxu0 0
      %843 = vmatpush1.bf16.msra.mxu0 %v759
      %844 = vmatprep.subr.bf16.mxu0 0
      %845 = vmatpush1.bf16.msra.mxu0 %v762
      %846 = vmatprep.subr.bf16.mxu0 0
      %847 = vmatpush1.bf16.msra.mxu0 0
      %848 = vmatprep.subr.bf16.mxu0 0
      %849 = vmatpush1.bf16.msra.mxu0 0
      %850 = vmatprep.subr.bf16.mxu0 0
      %851 = vmatpush1.bf16.msra.mxu0 0
      %852 = vmatprep.subr.bf16.mxu0 0
      %853 = vmatpush1.bf16.msra.mxu0 0
      %854 = vmatprep.subr.bf16.mxu0 0
      %855 = vmatpush1.bf16.msra.mxu0 0
      %856 = vmatprep.subr.bf16.mxu0 0
      %857 = vmatpush1.bf16.msra.mxu0 0
      %858 = vmatprep.subr.bf16.mxu0 0
      %859 = vmatpush1.bf16.msra.mxu0 0
      %860 = vmatprep.subr.bf16.mxu0 0
      %861 = vmatpush1.bf16.msra.mxu0 0
      %862 = vmatprep.mubr.bf16.mxu0 0
      %863 = vmatmul.mubr.bf16.gmra.mrb[0].mxu0 %v626
      %v864 = vpop.f32.mrb[0].mxu0
      %v865 = vadd.f32 0.0, %v864
      %v866 = vpop.f32.mrb[0].mxu0
      %v867 = vpop.f32.mrb[0].mxu0
      %v868 = vadd.f32 0.0, %v867
      %v869 = vpop.f32.mrb[0].mxu0
      %870 = vdwg.mxu0
      %v871 = vld [vmem:[%s1] sm:$0xff]
      %v872 = vld [vmem:[%s1 + $0x8] sm:$0xf]
      %v873 = vpack.c.bf16 %v822, %v822
      %v874 = vpack.c.bf16 %v824, %v824
      %v875 = vpack.c.bf16 %v865, %v865
      %876 = vmatprep.subr.bf16.mxu0 0
      %877 = vmatpush1.bf16.xpose.msra.mxu0 %v874
      %878 = vmatprep.subr.bf16.mxu0 0
      %879 = vmatpush1.bf16.xpose.msra.mxu0 0
      %880 = vmatprep.subr.bf16.mxu0 0
      %881 = vmatpush1.bf16.xpose.msra.mxu0 0
      %882 = vmatprep.subr.bf16.mxu0 0
      %883 = vmatpush1.bf16.xpose.msra.mxu0 0
      %884 = vmatprep.subr.bf16.mxu0 0
      %885 = vmatpush1.bf16.xpose.msra.mxu0 0
      %886 = vmatprep.subr.bf16.mxu0 0
      %887 = vmatpush1.bf16.xpose.msra.mxu0 0
      %888 = vmatprep.subr.bf16.mxu0 0
      %889 = vmatpush1.bf16.xpose.msra.mxu0 0
      %890 = vmatprep.subr.bf16.mxu0 0
      %891 = vmatpush1.bf16.xpose.msra.mxu0 0
      %892 = vmatprep.subr.bf16.mxu0 0
      %893 = vmatpush1.bf16.xpose.msra.mxu0 0
      %894 = vmatprep.subr.bf16.mxu0 0
      %895 = vmatpush1.bf16.xpose.msra.mxu0 0
      %896 = vmatprep.subr.bf16.mxu0 0
      %897 = vmatpush1.bf16.xpose.msra.mxu0 0
      %898 = vmatprep.subr.bf16.mxu0 0
      %899 = vmatpush1.bf16.xpose.msra.mxu0 0
      %900 = vmatprep.subr.bf16.mxu0 0
      %901 = vmatpush1.bf16.xpose.msra.mxu0 0
      %902 = vmatprep.subr.bf16.mxu0 0
      %903 = vmatpush1.bf16.xpose.msra.mxu0 0
      %904 = vmatprep.subr.bf16.mxu0 0
      %905 = vmatpush1.bf16.xpose.msra.mxu0 0
      %906 = vmatprep.subr.bf16.mxu0 0
      %907 = vmatpush1.bf16.xpose.msra.mxu0 0
      %908 = vmatprep.mubr.bf16.mxu0 0
      %909 = vmatmul.mubr.bf16.gmra.mrb[0].mxu0 %v871
      %v910 = vpop.f32.mrb[0].mxu0
      %v911 = vadd.f32 0.0, %v910
      %v912 = vpop.f32.mrb[0].mxu0
      %v913 = vpop.f32.mrb[0].mxu0
      %v914 = vpop.f32.mrb[0].mxu0
      %915 = vdwg.mxu0
      %vm916 = vcmask 64512
      %v917 = vsel %vm916, %v911, -inf
      %918 = vmax.xlane.f32.xlu0 %v917
      %v919 = vpop.xlane.xlu0 %918
      %v920 = vsub.f32 %v911, %v919
      %v921 = vmul.f32 %v920, 1.442695
      %v922 = vpow.pop %v921
      %v923 = vsel %vm916, %v922, 0.0
      %924 = vadd.xlane.f32.xlu0 %v923
      %v925 = vpop.xlane.xlu0 %924
      %v926 = vrcp.pop %v925
      %v927 = vmul.f32 %v922, %v926
      %v928 = vpack.c.bf16 %v927, %v927
      %v930 = vsel %vm916, %v928, 0
      %vm932 = vcmask 1043456
      %v934 = vsel %vm932, %v875, 0
      %936 = vmatprep.subr.bf16.mxu0 0
      %937 = vmatpush1.bf16.msra.mxu0 %v934
      %938 = vmatprep.subr.bf16.mxu0 0
      %939 = vmatpush1.bf16.msra.mxu0 0
      %940 = vmatprep.subr.bf16.mxu0 0
      %941 = vmatpush1.bf16.msra.mxu0 0
      %942 = vmatprep.subr.bf16.mxu0 0
      %943 = vmatpush1.bf16.msra.mxu0 0
      %944 = vmatprep.subr.bf16.mxu0 0
      %945 = vmatpush1.bf16.msra.mxu0 0
      %946 = vmatprep.subr.bf16.mxu0 0
      %947 = vmatpush1.bf16.msra.mxu0 0
      %948 = vmatprep.subr.bf16.mxu0 0
      %949 = vmatpush1.bf16.msra.mxu0 0
      %950 = vmatprep.subr.bf16.mxu0 0
      %951 = vmatpush1.bf16.msra.mxu0 0
      %952 = vmatprep.subr.bf16.mxu0 0
      %953 = vmatpush1.bf16.msra.mxu0 0
      %954 = vmatprep.subr.bf16.mxu0 0
      %955 = vmatpush1.bf16.msra.mxu0 0
      %956 = vmatprep.subr.bf16.mxu0 0
      %957 = vmatpush1.bf16.msra.mxu0 0
      %958 = vmatprep.subr.bf16.mxu0 0
      %959 = vmatpush1.bf16.msra.mxu0 0
      %960 = vmatprep.subr.bf16.mxu0 0
      %961 = vmatpush1.bf16.msra.mxu0 0
      %962 = vmatprep.subr.bf16.mxu0 0
      %963 = vmatpush1.bf16.msra.mxu0 0
      %964 = vmatprep.subr.bf16.mxu0 0
      %965 = vmatpush1.bf16.msra.mxu0 0
      %966 = vmatprep.subr.bf16.mxu0 0
      %967 = vmatpush1.bf16.msra.mxu0 0
      %968 = vmatprep.mubr.bf16.mxu0 0
      %969 = vmatmul.mubr.bf16.gmra.mrb[0].mxu0 %v930
      %v970 = vpop.f32.mrb[0].mxu0
      %v971 = vadd.f32 0.0, %v970
      %v972 = vpop.f32.mrb[0].mxu0
      %v973 = vpop.f32.mrb[0].mxu0
      %v974 = vpop.f32.mrb[0].mxu0
      %975 = vdwg.mxu0
      %v977 = vunpack.c.h.b16 %v871
      %v978 = vpack.c.b16 %v977, %v977
      %980 = vmatprep.subr.bf16.mxu0 0
      %981 = vmatpush1.bf16.xpose.msra.mxu0 %v978
      %982 = vmatprep.subr.bf16.mxu0 0
      %983 = vmatpush1.bf16.xpose.msra.mxu0 0
      %984 = vmatprep.subr.bf16.mxu0 0
      %985 = vmatpush1.bf16.xpose.msra.mxu0 0
      %986 = vmatprep.subr.bf16.mxu0 0
      %987 = vmatpush1.bf16.xpose.msra.mxu0 0
      %988 = vmatprep.subr.bf16.mxu0 0
      %989 = vmatpush1.bf16.xpose.msra.mxu0 0
      %990 = vmatprep.subr.bf16.mxu0 0
      %991 = vmatpush1.bf16.xpose.msra.mxu0 0
      %992 = vmatprep.subr.bf16.mxu0 0
      %993 = vmatpush1.bf16.xpose.msra.mxu0 0
      %994 = vmatprep.subr.bf16.mxu0 0
      %995 = vmatpush1.bf16.xpose.msra.mxu0 0
      %996 = vmatprep.subr.bf16.mxu0 0
      %997 = vmatpush1.bf16.xpose.msra.mxu0 0
      %998 = vmatprep.subr.bf16.mxu0 0
      %999 = vmatpush1.bf16.xpose.msra.mxu0 0
      %1000 = vmatprep.subr.bf16.mxu0 0
      %1001 = vmatpush1.bf16.xpose.msra.mxu0 0
      %1002 = vmatprep.subr.bf16.mxu0 0
      %1003 = vmatpush1.bf16.xpose.msra.mxu0 0
      %1004 = vmatprep.subr.bf16.mxu0 0
      %1005 = vmatpush1.bf16.xpose.msra.mxu0 0
      %1006 = vmatprep.subr.bf16.mxu0 0
      %1007 = vmatpush1.bf16.xpose.msra.mxu0 0
      %1008 = vmatprep.subr.bf16.mxu0 0
      %1009 = vmatpush1.bf16.xpose.msra.mxu0 0
      %1010 = vmatprep.subr.bf16.mxu0 0
      %1011 = vmatpush1.bf16.xpose.msra.mxu0 0
      %1012 = vmatprep.mubr.bf16.mxu0 0
      %1013 = vmatmul.mubr.bf16.gmra.mrb[0].mxu0 %v873
      %v1014 = vpop.f32.mrb[0].mxu0
      %v1015 = vadd.f32 0.0, %v1014
      %v1016 = vpop.f32.mrb[0].mxu0
      %v1017 = vpop.f32.mrb[0].mxu0
      %v1018 = vpop.f32.mrb[0].mxu0
      %1019 = vdwg.mxu0
      %v1020 = vsel %vm916, %v1015, -inf
      %1021 = vmax.xlane.f32.xlu0 %v1020
      %v1022 = vpop.xlane.xlu0 %1021
      %v1023 = vsub.f32 %v1015, %v1022
      %v1024 = vmul.f32 %v1023, 1.442695
      %v1025 = vpow.pop %v1024
      %v1026 = vsel %vm916, %v1025, 0.0
      %1027 = vadd.xlane.f32.xlu0 %v1026
      %v1028 = vpop.xlane.xlu0 %1027
      %v1029 = vrcp.pop %v1028
      %v1030 = vmul.f32 %v1025, %v1029
      %v1031 = vpack.c.bf16 %v1030, %v1030
      %v1033 = vsel %vm916, %v1031, 0
      %v1036 = vsel %vm932, %v872, 0
      %1038 = vmatprep.subr.bf16.mxu0 0
      %1039 = vmatpush1.bf16.msra.mxu0 %v1036
      %1040 = vmatprep.subr.bf16.mxu0 0
      %1041 = vmatpush1.bf16.msra.mxu0 0
      %1042 = vmatprep.subr.bf16.mxu0 0
      %1043 = vmatpush1.bf16.msra.mxu0 0
      %1044 = vmatprep.subr.bf16.mxu0 0
      %1045 = vmatpush1.bf16.msra.mxu0 0
      %1046 = vmatprep.subr.bf16.mxu0 0
      %1047 = vmatpush1.bf16.msra.mxu0 0
      %1048 = vmatprep.subr.bf16.mxu0 0
      %1049 = vmatpush1.bf16.msra.mxu0 0
      %1050 = vmatprep.subr.bf16.mxu0 0
      %1051 = vmatpush1.bf16.msra.mxu0 0
      %1052 = vmatprep.subr.bf16.mxu0 0
      %1053 = vmatpush1.bf16.msra.mxu0 0
      %1054 = vmatprep.subr.bf16.mxu0 0
      %1055 = vmatpush1.bf16.msra.mxu0 0
      %1056 = vmatprep.subr.bf16.mxu0 0
      %1057 = vmatpush1.bf16.msra.mxu0 0
      %1058 = vmatprep.subr.bf16.mxu0 0
      %1059 = vmatpush1.bf16.msra.mxu0 0
      %1060 = vmatprep.subr.bf16.mxu0 0
      %1061 = vmatpush1.bf16.msra.mxu0 0
      %1062 = vmatprep.subr.bf16.mxu0 0
      %1063 = vmatpush1.bf16.msra.mxu0 0
      %1064 = vmatprep.subr.bf16.mxu0 0
      %1065 = vmatpush1.bf16.msra.mxu0 0
      %1066 = vmatprep.subr.bf16.mxu0 0
      %1067 = vmatpush1.bf16.msra.mxu0 0
      %1068 = vmatprep.subr.bf16.mxu0 0
      %1069 = vmatpush1.bf16.msra.mxu0 0
      %1070 = vmatprep.mubr.bf16.mxu0 0
      %1071 = vmatmul.mubr.bf16.gmra.mrb[0].mxu0 %v1033
      %v1072 = vpop.f32.mrb[0].mxu0
      %v1073 = vadd.f32 0.0, %v1072
      %v1074 = vpop.f32.mrb[0].mxu0
      %v1075 = vpop.f32.mrb[0].mxu0
      %v1076 = vpop.f32.mrb[0].mxu0
      %1077 = vdwg.mxu0
      %1078 = vst [vmem:[#allocation2] sm:$0xff] %v971
      %1079 = vst [vmem:[#allocation2 + $0x8] sm:$0xff] %v1073
      %v1080 = vpack.c.bf16 %v826, %v826
      %v1081 = vpack.c.bf16 %v828, %v828
      %v1082 = vpack.c.bf16 %v868, %v868
      %1083 = vmatprep.subr.bf16.mxu0 0
      %1084 = vmatpush1.bf16.xpose.msra.mxu0 %v1081
      %1085 = vmatprep.subr.bf16.mxu0 0
      %1086 = vmatpush1.bf16.xpose.msra.mxu0 0
      %1087 = vmatprep.subr.bf16.mxu0 0
      %1088 = vmatpush1.bf16.xpose.msra.mxu0 0
      %1089 = vmatprep.subr.bf16.mxu0 0
      %1090 = vmatpush1.bf16.xpose.msra.mxu0 0
      %1091 = vmatprep.subr.bf16.mxu0 0
      %1092 = vmatpush1.bf16.xpose.msra.mxu0 0
      %1093 = vmatprep.subr.bf16.mxu0 0
      %1094 = vmatpush1.bf16.xpose.msra.mxu0 0
      %1095 = vmatprep.subr.bf16.mxu0 0
      %1096 = vmatpush1.bf16.xpose.msra.mxu0 0
      %1097 = vmatprep.subr.bf16.mxu0 0
      %1098 = vmatpush1.bf16.xpose.msra.mxu0 0
      %1099 = vmatprep.subr.bf16.mxu0 0
      %1100 = vmatpush1.bf16.xpose.msra.mxu0 0
      %1101 = vmatprep.subr.bf16.mxu0 0
      %1102 = vmatpush1.bf16.xpose.msra.mxu0 0
      %1103 = vmatprep.subr.bf16.mxu0 0
      %1104 = vmatpush1.bf16.xpose.msra.mxu0 0
      %1105 = vmatprep.subr.bf16.mxu0 0
      %1106 = vmatpush1.bf16.xpose.msra.mxu0 0
      %1107 = vmatprep.subr.bf16.mxu0 0
      %1108 = vmatpush1.bf16.xpose.msra.mxu0 0
      %1109 = vmatprep.subr.bf16.mxu0 0
      %1110 = vmatpush1.bf16.xpose.msra.mxu0 0
      %1111 = vmatprep.subr.bf16.mxu0 0
      %1112 = vmatpush1.bf16.xpose.msra.mxu0 0
      %1113 = vmatprep.subr.bf16.mxu0 0
      %1114 = vmatpush1.bf16.xpose.msra.mxu0 0
      %1115 = vmatprep.mubr.bf16.mxu0 0
      %1116 = vmatmul.mubr.bf16.gmra.mrb[0].mxu0 %v871
      %v1117 = vpop.f32.mrb[0].mxu0
      %v1118 = vadd.f32 0.0, %v1117
      %v1119 = vpop.f32.mrb[0].mxu0
      %v1120 = vpop.f32.mrb[0].mxu0
      %v1121 = vpop.f32.mrb[0].mxu0
      %1122 = vdwg.mxu0
      %v1123 = vsel %vm916, %v1118, -inf
      %1124 = vmax.xlane.f32.xlu0 %v1123
      %v1125 = vpop.xlane.xlu0 %1124
      %v1126 = vsub.f32 %v1118, %v1125
      %v1127 = vmul.f32 %v1126, 1.442695
      %v1128 = vpow.pop %v1127
      %v1129 = vsel %vm916, %v1128, 0.0
      %1130 = vadd.xlane.f32.xlu0 %v1129
      %v1131 = vpop.xlane.xlu0 %1130
      %v1132 = vrcp.pop %v1131
      %v1133 = vmul.f32 %v1128, %v1132
      %v1134 = vpack.c.bf16 %v1133, %v1133
      %v1136 = vsel %vm916, %v1134, 0
      %v1139 = vsel %vm932, %v1082, 0
      %1141 = vmatprep.subr.bf16.mxu0 0
      %1142 = vmatpush1.bf16.msra.mxu0 %v1139
      %1143 = vmatprep.subr.bf16.mxu0 0
      %1144 = vmatpush1.bf16.msra.mxu0 0
      %1145 = vmatprep.subr.bf16.mxu0 0
      %1146 = vmatpush1.bf16.msra.mxu0 0
      %1147 = vmatprep.subr.bf16.mxu0 0
      %1148 = vmatpush1.bf16.msra.mxu0 0
      %1149 = vmatprep.subr.bf16.mxu0 0
      %1150 = vmatpush1.bf16.msra.mxu0 0
      %1151 = vmatprep.subr.bf16.mxu0 0
      %1152 = vmatpush1.bf16.msra.mxu0 0
      %1153 = vmatprep.subr.bf16.mxu0 0
      %1154 = vmatpush1.bf16.msra.mxu0 0
      %1155 = vmatprep.subr.bf16.mxu0 0
      %1156 = vmatpush1.bf16.msra.mxu0 0
      %1157 = vmatprep.subr.bf16.mxu0 0
      %1158 = vmatpush1.bf16.msra.mxu0 0
      %1159 = vmatprep.subr.bf16.mxu0 0
      %1160 = vmatpush1.bf16.msra.mxu0 0
      %1161 = vmatprep.subr.bf16.mxu0 0
      %1162 = vmatpush1.bf16.msra.mxu0 0
      %1163 = vmatprep.subr.bf16.mxu0 0
      %1164 = vmatpush1.bf16.msra.mxu0 0
      %1165 = vmatprep.subr.bf16.mxu0 0
      %1166 = vmatpush1.bf16.msra.mxu0 0
      %1167 = vmatprep.subr.bf16.mxu0 0
      %1168 = vmatpush1.bf16.msra.mxu0 0
      %1169 = vmatprep.subr.bf16.mxu0 0
      %1170 = vmatpush1.bf16.msra.mxu0 0
      %1171 = vmatprep.subr.bf16.mxu0 0
      %1172 = vmatpush1.bf16.msra.mxu0 0
      %1173 = vmatprep.mubr.bf16.mxu0 0
      %1174 = vmatmul.mubr.bf16.gmra.mrb[0].mxu0 %v1136
      %v1175 = vpop.f32.mrb[0].mxu0
      %v1176 = vadd.f32 0.0, %v1175
      %v1177 = vpop.f32.mrb[0].mxu0
      %v1178 = vpop.f32.mrb[0].mxu0
      %v1179 = vpop.f32.mrb[0].mxu0
      %1180 = vdwg.mxu0
      %1181 = vmatprep.subr.bf16.mxu0 0
      %1182 = vmatpush1.bf16.xpose.msra.mxu0 %v978
      %1183 = vmatprep.subr.bf16.mxu0 0
      %1184 = vmatpush1.bf16.xpose.msra.mxu0 0
      %1185 = vmatprep.subr.bf16.mxu0 0
      %1186 = vmatpush1.bf16.xpose.msra.mxu0 0
      %1187 = vmatprep.subr.bf16.mxu0 0
      %1188 = vmatpush1.bf16.xpose.msra.mxu0 0
      %1189 = vmatprep.subr.bf16.mxu0 0
      %1190 = vmatpush1.bf16.xpose.msra.mxu0 0
      %1191 = vmatprep.subr.bf16.mxu0 0
      %1192 = vmatpush1.bf16.xpose.msra.mxu0 0
      %1193 = vmatprep.subr.bf16.mxu0 0
      %1194 = vmatpush1.bf16.xpose.msra.mxu0 0
      %1195 = vmatprep.subr.bf16.mxu0 0
      %1196 = vmatpush1.bf16.xpose.msra.mxu0 0
      %1197 = vmatprep.subr.bf16.mxu0 0
      %1198 = vmatpush1.bf16.xpose.msra.mxu0 0
      %1199 = vmatprep.subr.bf16.mxu0 0
      %1200 = vmatpush1.bf16.xpose.msra.mxu0 0
      %1201 = vmatprep.subr.bf16.mxu0 0
      %1202 = vmatpush1.bf16.xpose.msra.mxu0 0
      %1203 = vmatprep.subr.bf16.mxu0 0
      %1204 = vmatpush1.bf16.xpose.msra.mxu0 0
      %1205 = vmatprep.subr.bf16.mxu0 0
      %1206 = vmatpush1.bf16.xpose.msra.mxu0 0
      %1207 = vmatprep.subr.bf16.mxu0 0
      %1208 = vmatpush1.bf16.xpose.msra.mxu0 0
      %1209 = vmatprep.subr.bf16.mxu0 0
      %1210 = vmatpush1.bf16.xpose.msra.mxu0 0
      %1211 = vmatprep.subr.bf16.mxu0 0
      %1212 = vmatpush1.bf16.xpose.msra.mxu0 0
      %1213 = vmatprep.mubr.bf16.mxu0 0
      %1214 = vmatmul.mubr.bf16.gmra.mrb[0].mxu0 %v1080
      %v1215 = vpop.f32.mrb[0].mxu0
      %v1216 = vadd.f32 0.0, %v1215
      %v1217 = vpop.f32.mrb[0].mxu0
      %v1218 = vpop.f32.mrb[0].mxu0
      %v1219 = vpop.f32.mrb[0].mxu0
      %1220 = vdwg.mxu0
      %v1221 = vsel %vm916, %v1216, -inf
      %1222 = vmax.xlane.f32.xlu0 %v1221
      %v1223 = vpop.xlane.xlu0 %1222
      %v1224 = vsub.f32 %v1216, %v1223
      %v1225 = vmul.f32 %v1224, 1.442695
      %v1226 = vpow.pop %v1225
      %v1227 = vsel %vm916, %v1226, 0.0
      %1228 = vadd.xlane.f32.xlu0 %v1227
      %v1229 = vpop.xlane.xlu0 %1228
      %v1230 = vrcp.pop %v1229
      %v1231 = vmul.f32 %v1226, %v1230
      %v1232 = vpack.c.bf16 %v1231, %v1231
      %v1234 = vsel %vm916, %v1232, 0
      %1236 = vmatprep.subr.bf16.mxu0 0
      %1237 = vmatpush1.bf16.msra.mxu0 %v1036
      %1238 = vmatprep.subr.bf16.mxu0 0
      %1239 = vmatpush1.bf16.msra.mxu0 0
      %1240 = vmatprep.subr.bf16.mxu0 0
      %1241 = vmatpush1.bf16.msra.mxu0 0
      %1242 = vmatprep.subr.bf16.mxu0 0
      %1243 = vmatpush1.bf16.msra.mxu0 0
      %1244 = vmatprep.subr.bf16.mxu0 0
      %1245 = vmatpush1.bf16.msra.mxu0 0
      %1246 = vmatprep.subr.bf16.mxu0 0
      %1247 = vmatpush1.bf16.msra.mxu0 0
      %1248 = vmatprep.subr.bf16.mxu0 0
      %1249 = vmatpush1.bf16.msra.mxu0 0
      %1250 = vmatprep.subr.bf16.mxu0 0
      %1251 = vmatpush1.bf16.msra.mxu0 0
      %1252 = vmatprep.subr.bf16.mxu0 0
      %1253 = vmatpush1.bf16.msra.mxu0 0
      %1254 = vmatprep.subr.bf16.mxu0 0
      %1255 = vmatpush1.bf16.msra.mxu0 0
      %1256 = vmatprep.subr.bf16.mxu0 0
      %1257 = vmatpush1.bf16.msra.mxu0 0
      %1258 = vmatprep.subr.bf16.mxu0 0
      %1259 = vmatpush1.bf16.msra.mxu0 0
      %1260 = vmatprep.subr.bf16.mxu0 0
      %1261 = vmatpush1.bf16.msra.mxu0 0
      %1262 = vmatprep.subr.bf16.mxu0 0
      %1263 = vmatpush1.bf16.msra.mxu0 0
      %1264 = vmatprep.subr.bf16.mxu0 0
      %1265 = vmatpush1.bf16.msra.mxu0 0
      %1266 = vmatprep.subr.bf16.mxu0 0
      %1267 = vmatpush1.bf16.msra.mxu0 0
      %1268 = vmatprep.mubr.bf16.mxu0 0
      %1269 = vmatmul.mubr.bf16.gmra.mrb[0].mxu0 %v1234
      %v1270 = vpop.f32.mrb[0].mxu0
      %v1271 = vadd.f32 0.0, %v1270
      %v1272 = vpop.f32.mrb[0].mxu0
      %v1273 = vpop.f32.mrb[0].mxu0
      %v1274 = vpop.f32.mrb[0].mxu0
      %1275 = vdwg.mxu0
      %1276 = vst [vmem:[#allocation2 + $0x10] sm:$0xff] %v1176
      %1277 = vst [vmem:[#allocation2 + $0x18] sm:$0xff] %v1271
      %v1278 = vld [vmem:[#allocation2] sm:$0xff]
      %v1279 = vld [vmem:[#allocation2 + $0x8] sm:$0xff]
      %v1280 = vld [vmem:[#allocation2 + $0x10] sm:$0xff]
      %v1281 = vld [vmem:[#allocation2 + $0x18] sm:$0xff]
      %v1282 = vpack.c.bf16 %v1280, %v1278
      %v1283 = vpack.c.bf16 %v1281, %v1279
      %v1284 = vld [vmem:[%s6] sm:$0xff]
      %v1285 = vld [vmem:[%s6 + $0x8] sm:$0xff]
      %v1286 = vld [vmem:[%s6 + $0x10] sm:$0xff]
      %v1287 = vld [vmem:[%s6 + $0x18] sm:$0xff]
      %v1288 = vld [vmem:[%s6 + $0x20] sm:$0xff]
      %v1289 = vld [vmem:[%s6 + $0x28] sm:$0xff]
      %v1290 = vld [vmem:[%s6 + $0x30] sm:$0xff]
      %v1291 = vld [vmem:[%s6 + $0x38] sm:$0xff]
      %v1292 = vld [vmem:[%s6 + $0x40] sm:$0xff]
      %v1293 = vld [vmem:[%s6 + $0x48] sm:$0xff]
      %v1294 = vld [vmem:[%s6 + $0x50] sm:$0xff]
      %v1295 = vld [vmem:[%s6 + $0x58] sm:$0xff]
      %v1296 = vld [vmem:[%s6 + $0x60] sm:$0xff]
      %v1297 = vld [vmem:[%s6 + $0x68] sm:$0xff]
      %v1298 = vld [vmem:[%s6 + $0x70] sm:$0xff]
      %v1299 = vld [vmem:[%s6 + $0x78] sm:$0xff]
      %v1300 = vld [vmem:[%s7] sm:$0xff]
      %v1301 = vld [vmem:[%s7 + $0x8] sm:$0xff]
      %v1302 = vld [vmem:[%s7 + $0x10] sm:$0xff]
      %v1303 = vld [vmem:[%s7 + $0x18] sm:$0xff]
      %v1304 = vld [vmem:[%s7 + $0x20] sm:$0xff]
      %v1305 = vld [vmem:[%s7 + $0x28] sm:$0xff]
      %v1306 = vld [vmem:[%s7 + $0x30] sm:$0xff]
      %v1307 = vld [vmem:[%s7 + $0x38] sm:$0xff]
      %v1308 = vld [vmem:[%s7 + $0x40] sm:$0xff]
      %v1309 = vld [vmem:[%s7 + $0x48] sm:$0xff]
      %v1310 = vld [vmem:[%s7 + $0x50] sm:$0xff]
      %v1311 = vld [vmem:[%s7 + $0x58] sm:$0xff]
      %v1312 = vld [vmem:[%s7 + $0x60] sm:$0xff]
      %v1313 = vld [vmem:[%s7 + $0x68] sm:$0xff]
      %v1314 = vld [vmem:[%s7 + $0x70] sm:$0xff]
      %v1315 = vld [vmem:[%s7 + $0x78] sm:$0xff]
      %v1332 = vunpack.c.l.b16 %v1300
      %v1333 = vunpack.c.h.b16 %v1300
      %v1334 = vunpack.c.l.b16 %v1301
      %v1335 = vunpack.c.h.b16 %v1301
      %v1336 = vunpack.c.l.b16 %v1302
      %v1337 = vunpack.c.h.b16 %v1302
      %v1338 = vunpack.c.l.b16 %v1303
      %v1339 = vunpack.c.h.b16 %v1303
      %v1340 = vunpack.c.l.b16 %v1304
      %v1341 = vunpack.c.h.b16 %v1304
      %v1342 = vunpack.c.l.b16 %v1305
      %v1343 = vunpack.c.h.b16 %v1305
      %v1344 = vunpack.c.l.b16 %v1306
      %v1345 = vunpack.c.h.b16 %v1306
      %v1346 = vunpack.c.l.b16 %v1307
      %v1347 = vunpack.c.h.b16 %v1307
      %v1348 = vunpack.c.l.b16 %v1308
      %v1349 = vunpack.c.h.b16 %v1308
      %v1350 = vunpack.c.l.b16 %v1309
      %v1351 = vunpack.c.h.b16 %v1309
      %v1352 = vunpack.c.l.b16 %v1310
      %v1353 = vunpack.c.h.b16 %v1310
      %v1354 = vunpack.c.l.b16 %v1311
      %v1355 = vunpack.c.h.b16 %v1311
      %v1356 = vunpack.c.l.b16 %v1312
      %v1357 = vunpack.c.h.b16 %v1312
      %v1358 = vunpack.c.l.b16 %v1313
      %v1359 = vunpack.c.h.b16 %v1313
      %v1360 = vunpack.c.l.b16 %v1314
      %v1361 = vunpack.c.h.b16 %v1314
      %v1362 = vunpack.c.l.b16 %v1315
      %v1363 = vunpack.c.h.b16 %v1315
      %v1364 = vpack.c.b16 %v1334, %v1332
      %v1365 = vpack.c.b16 %v1335, %v1333
      %v1366 = vpack.c.b16 %v1338, %v1336
      %v1367 = vpack.c.b16 %v1339, %v1337
      %v1368 = vpack.c.b16 %v1342, %v1340
      %v1369 = vpack.c.b16 %v1343, %v1341
      %v1370 = vpack.c.b16 %v1346, %v1344
      %v1371 = vpack.c.b16 %v1347, %v1345
      %v1372 = vpack.c.b16 %v1350, %v1348
      %v1373 = vpack.c.b16 %v1351, %v1349
      %v1374 = vpack.c.b16 %v1354, %v1352
      %v1375 = vpack.c.b16 %v1355, %v1353
      %v1376 = vpack.c.b16 %v1358, %v1356
      %v1377 = vpack.c.b16 %v1359, %v1357
      %v1378 = vpack.c.b16 %v1362, %v1360
      %v1379 = vpack.c.b16 %v1363, %v1361
      %1396 = vmatprep.subr.bf16.mxu0 %v1365
      %1397 = vmatpush1.bf16.msra.mxu0 %v1364
      %1398 = vmatprep.subr.bf16.mxu0 %v1367
      %1399 = vmatpush1.bf16.msra.mxu0 %v1366
      %1400 = vmatprep.subr.bf16.mxu0 %v1369
      %1401 = vmatpush1.bf16.msra.mxu0 %v1368
      %1402 = vmatprep.subr.bf16.mxu0 %v1371
      %1403 = vmatpush1.bf16.msra.mxu0 %v1370
      %1404 = vmatprep.subr.bf16.mxu0 %v1373
      %1405 = vmatpush1.bf16.msra.mxu0 %v1372
      %1406 = vmatprep.subr.bf16.mxu0 %v1375
      %1407 = vmatpush1.bf16.msra.mxu0 %v1374
      %1408 = vmatprep.subr.bf16.mxu0 %v1377
      %1409 = vmatpush1.bf16.msra.mxu0 %v1376
      %1410 = vmatprep.subr.bf16.mxu0 %v1379
      %1411 = vmatpush1.bf16.msra.mxu0 %v1378
      %1412 = vmatprep.subr.bf16.mxu0 0
      %1413 = vmatpush1.bf16.msra.mxu0 0
      %1414 = vmatprep.subr.bf16.mxu0 0
      %1415 = vmatpush1.bf16.msra.mxu0 0
      %1416 = vmatprep.subr.bf16.mxu0 0
      %1417 = vmatpush1.bf16.msra.mxu0 0
      %1418 = vmatprep.subr.bf16.mxu0 0
      %1419 = vmatpush1.bf16.msra.mxu0 0
      %1420 = vmatprep.subr.bf16.mxu0 0
      %1421 = vmatpush1.bf16.msra.mxu0 0
      %1422 = vmatprep.subr.bf16.mxu0 0
      %1423 = vmatpush1.bf16.msra.mxu0 0
      %1424 = vmatprep.subr.bf16.mxu0 0
      %1425 = vmatpush1.bf16.msra.mxu0 0
      %1426 = vmatprep.subr.bf16.mxu0 0
      %1427 = vmatpush1.bf16.msra.mxu0 0
      %1428 = vmatprep.mubr.bf16.mxu0 0
      %1429 = vmatmul.mubr.bf16.gmra.mrb[0].mxu0 %v1283
      %v1430 = vpop.f32.mrb[0].mxu0
      %v1431 = vadd.f32 0.0, %v1430
      %v1432 = vpop.f32.mrb[0].mxu0
      %v1433 = vadd.f32 0.0, %v1432
      %v1434 = vpop.f32.mrb[0].mxu0
      %v1435 = vadd.f32 0.0, %v1434
      %v1436 = vpop.f32.mrb[0].mxu0
      %v1437 = vadd.f32 0.0, %v1436
      %1438 = vdwg.mxu0
      %v1455 = vunpack.c.l.b16 %v1284
      %v1456 = vunpack.c.h.b16 %v1284
      %v1457 = vunpack.c.l.b16 %v1285
      %v1458 = vunpack.c.h.b16 %v1285
      %v1459 = vunpack.c.l.b16 %v1286
      %v1460 = vunpack.c.h.b16 %v1286
      %v1461 = vunpack.c.l.b16 %v1287
      %v1462 = vunpack.c.h.b16 %v1287
      %v1463 = vunpack.c.l.b16 %v1288
      %v1464 = vunpack.c.h.b16 %v1288
      %v1465 = vunpack.c.l.b16 %v1289
      %v1466 = vunpack.c.h.b16 %v1289
      %v1467 = vunpack.c.l.b16 %v1290
      %v1468 = vunpack.c.h.b16 %v1290
      %v1469 = vunpack.c.l.b16 %v1291
      %v1470 = vunpack.c.h.b16 %v1291
      %v1471 = vunpack.c.l.b16 %v1292
      %v1472 = vunpack.c.h.b16 %v1292
      %v1473 = vunpack.c.l.b16 %v1293
      %v1474 = vunpack.c.h.b16 %v1293
      %v1475 = vunpack.c.l.b16 %v1294
      %v1476 = vunpack.c.h.b16 %v1294
      %v1477 = vunpack.c.l.b16 %v1295
      %v1478 = vunpack.c.h.b16 %v1295
      %v1479 = vunpack.c.l.b16 %v1296
      %v1480 = vunpack.c.h.b16 %v1296
      %v1481 = vunpack.c.l.b16 %v1297
      %v1482 = vunpack.c.h.b16 %v1297
      %v1483 = vunpack.c.l.b16 %v1298
      %v1484 = vunpack.c.h.b16 %v1298
      %v1485 = vunpack.c.l.b16 %v1299
      %v1486 = vunpack.c.h.b16 %v1299
      %v1487 = vpack.c.b16 %v1457, %v1455
      %v1488 = vpack.c.b16 %v1458, %v1456
      %v1489 = vpack.c.b16 %v1461, %v1459
      %v1490 = vpack.c.b16 %v1462, %v1460
      %v1491 = vpack.c.b16 %v1465, %v1463
      %v1492 = vpack.c.b16 %v1466, %v1464
      %v1493 = vpack.c.b16 %v1469, %v1467
      %v1494 = vpack.c.b16 %v1470, %v1468
      %v1495 = vpack.c.b16 %v1473, %v1471
      %v1496 = vpack.c.b16 %v1474, %v1472
      %v1497 = vpack.c.b16 %v1477, %v1475
      %v1498 = vpack.c.b16 %v1478, %v1476
      %v1499 = vpack.c.b16 %v1481, %v1479
      %v1500 = vpack.c.b16 %v1482, %v1480
      %v1501 = vpack.c.b16 %v1485, %v1483
      %v1502 = vpack.c.b16 %v1486, %v1484
      %1519 = vmatprep.subr.bf16.mxu0 %v1488
      %1520 = vmatpush1.bf16.msra.mxu0 %v1487
      %1521 = vmatprep.subr.bf16.mxu0 %v1490
      %1522 = vmatpush1.bf16.msra.mxu0 %v1489
      %1523 = vmatprep.subr.bf16.mxu0 %v1492
      %1524 = vmatpush1.bf16.msra.mxu0 %v1491
      %1525 = vmatprep.subr.bf16.mxu0 %v1494
      %1526 = vmatpush1.bf16.msra.mxu0 %v1493
      %1527 = vmatprep.subr.bf16.mxu0 %v1496
      %1528 = vmatpush1.bf16.msra.mxu0 %v1495
      %1529 = vmatprep.subr.bf16.mxu0 %v1498
      %1530 = vmatpush1.bf16.msra.mxu0 %v1497
      %1531 = vmatprep.subr.bf16.mxu0 %v1500
      %1532 = vmatpush1.bf16.msra.mxu0 %v1499
      %1533 = vmatprep.subr.bf16.mxu0 %v1502
      %1534 = vmatpush1.bf16.msra.mxu0 %v1501
      %1535 = vmatprep.subr.bf16.mxu0 0
      %1536 = vmatpush1.bf16.msra.mxu0 0
      %1537 = vmatprep.subr.bf16.mxu0 0
      %1538 = vmatpush1.bf16.msra.mxu0 0
      %1539 = vmatprep.subr.bf16.mxu0 0
      %1540 = vmatpush1.bf16.msra.mxu0 0
      %1541 = vmatprep.subr.bf16.mxu0 0
      %1542 = vmatpush1.bf16.msra.mxu0 0
      %1543 = vmatprep.subr.bf16.mxu0 0
      %1544 = vmatpush1.bf16.msra.mxu0 0
      %1545 = vmatprep.subr.bf16.mxu0 0
      %1546 = vmatpush1.bf16.msra.mxu0 0
      %1547 = vmatprep.subr.bf16.mxu0 0
      %1548 = vmatpush1.bf16.msra.mxu0 0
      %1549 = vmatprep.subr.bf16.mxu0 0
      %1550 = vmatpush1.bf16.msra.mxu0 0
      %1551 = vmatprep.mubr.bf16.mxu0 0
      %1552 = vmatmul.mubr.bf16.gmra.mrb[0].mxu0 %v1282
      %v1553 = vpop.f32.mrb[0].mxu0
      %v1554 = vadd.f32 %v1431, %v1553
      %v1555 = vpop.f32.mrb[0].mxu0
      %v1556 = vadd.f32 %v1433, %v1555
      %v1557 = vpop.f32.mrb[0].mxu0
      %v1558 = vadd.f32 %v1435, %v1557
      %v1559 = vpop.f32.mrb[0].mxu0
      %v1560 = vadd.f32 %v1437, %v1559
      %1561 = vdwg.mxu0
      %v1562 = vld [vmem:[%s8] sm:$0x3]
      %v1564 = vlaneseq
      %v1565 = vshrl.u32 %v1564, 7
      %v1566 = vsub.s32 0, %v1565
      %v1567 = vrot.slane %v1562, %v1566
      %v1568 = vlaneseq
      %v1569 = vshrl.u32 %v1568, 7
      %v1570 = vsub.s32 1, %v1569
      %v1571 = vrot.slane %v1562, %v1570
      %v1574 = vadd.f32 %v1554, %v1567
      %v1575 = vadd.f32 %v1556, %v1571
      %v1576 = vadd.f32 %v1558, %v1567
      %v1577 = vadd.f32 %v1560, %v1571
      %v1578 = vmax.f32 %v1574, 0.0
      %v1579 = vmax.f32 %v1575, 0.0
      %v1580 = vmax.f32 %v1576, 0.0
      %v1581 = vmax.f32 %v1577, 0.0
      %v1582 = vpack.c.bf16 %v1580, %v1578
      %v1583 = vpack.c.bf16 %v1581, %v1579
      %v1584 = vld [vmem:[%s9] sm:$0xf]
      %v1585 = vld [vmem:[%s9 + $0x4] sm:$0xf]
      %v1586 = vld [vmem:[%s9 + $0x8] sm:$0xf]
      %v1587 = vld [vmem:[%s9 + $0xc] sm:$0xf]
      %v1588 = vld [vmem:[%s9 + $0x10] sm:$0xf]
      %v1589 = vld [vmem:[%s9 + $0x14] sm:$0xf]
      %v1590 = vld [vmem:[%s9 + $0x18] sm:$0xf]
      %v1591 = vld [vmem:[%s9 + $0x1c] sm:$0xf]
      %v1592 = vld [vmem:[%s9 + $0x20] sm:$0xf]
      %v1593 = vld [vmem:[%s9 + $0x24] sm:$0xf]
      %v1594 = vld [vmem:[%s9 + $0x28] sm:$0xf]
      %v1595 = vld [vmem:[%s9 + $0x2c] sm:$0xf]
      %v1596 = vld [vmem:[%s9 + $0x30] sm:$0xf]
      %v1597 = vld [vmem:[%s9 + $0x34] sm:$0xf]
      %v1598 = vld [vmem:[%s9 + $0x38] sm:$0xf]
      %v1599 = vld [vmem:[%s9 + $0x3c] sm:$0xf]
      %v1600 = vld [vmem:[%s9 + $0x40] sm:$0xf]
      %v1601 = vld [vmem:[%s9 + $0x44] sm:$0xf]
      %v1602 = vld [vmem:[%s9 + $0x48] sm:$0xf]
      %v1603 = vld [vmem:[%s9 + $0x4c] sm:$0xf]
      %v1604 = vld [vmem:[%s9 + $0x50] sm:$0xf]
      %v1605 = vld [vmem:[%s9 + $0x54] sm:$0xf]
      %v1606 = vld [vmem:[%s9 + $0x58] sm:$0xf]
      %v1607 = vld [vmem:[%s9 + $0x5c] sm:$0xf]
      %v1608 = vld [vmem:[%s9 + $0x60] sm:$0xf]
      %v1609 = vld [vmem:[%s9 + $0x64] sm:$0xf]
      %v1610 = vld [vmem:[%s9 + $0x68] sm:$0xf]
      %v1611 = vld [vmem:[%s9 + $0x6c] sm:$0xf]
      %v1612 = vld [vmem:[%s9 + $0x70] sm:$0xf]
      %v1613 = vld [vmem:[%s9 + $0x74] sm:$0xf]
      %v1614 = vld [vmem:[%s9 + $0x78] sm:$0xf]
      %v1615 = vld [vmem:[%s9 + $0x7c] sm:$0xf]
      %v1616 = vld [vmem:[%s10] sm:$0xf]
      %v1617 = vld [vmem:[%s10 + $0x4] sm:$0xf]
      %v1618 = vld [vmem:[%s10 + $0x8] sm:$0xf]
      %v1619 = vld [vmem:[%s10 + $0xc] sm:$0xf]
      %v1620 = vld [vmem:[%s10 + $0x10] sm:$0xf]
      %v1621 = vld [vmem:[%s10 + $0x14] sm:$0xf]
      %v1622 = vld [vmem:[%s10 + $0x18] sm:$0xf]
      %v1623 = vld [vmem:[%s10 + $0x1c] sm:$0xf]
      %v1624 = vld [vmem:[%s10 + $0x20] sm:$0xf]
      %v1625 = vld [vmem:[%s10 + $0x24] sm:$0xf]
      %v1626 = vld [vmem:[%s10 + $0x28] sm:$0xf]
      %v1627 = vld [vmem:[%s10 + $0x2c] sm:$0xf]
      %v1628 = vld [vmem:[%s10 + $0x30] sm:$0xf]
      %v1629 = vld [vmem:[%s10 + $0x34] sm:$0xf]
      %v1630 = vld [vmem:[%s10 + $0x38] sm:$0xf]
      %v1631 = vld [vmem:[%s10 + $0x3c] sm:$0xf]
      %v1632 = vld [vmem:[%s10 + $0x40] sm:$0xf]
      %v1633 = vld [vmem:[%s10 + $0x44] sm:$0xf]
      %v1634 = vld [vmem:[%s10 + $0x48] sm:$0xf]
      %v1635 = vld [vmem:[%s10 + $0x4c] sm:$0xf]
      %v1636 = vld [vmem:[%s10 + $0x50] sm:$0xf]
      %v1637 = vld [vmem:[%s10 + $0x54] sm:$0xf]
      %v1638 = vld [vmem:[%s10 + $0x58] sm:$0xf]
      %v1639 = vld [vmem:[%s10 + $0x5c] sm:$0xf]
      %v1640 = vld [vmem:[%s10 + $0x60] sm:$0xf]
      %v1641 = vld [vmem:[%s10 + $0x64] sm:$0xf]
      %v1642 = vld [vmem:[%s10 + $0x68] sm:$0xf]
      %v1643 = vld [vmem:[%s10 + $0x6c] sm:$0xf]
      %v1644 = vld [vmem:[%s10 + $0x70] sm:$0xf]
      %v1645 = vld [vmem:[%s10 + $0x74] sm:$0xf]
      %v1646 = vld [vmem:[%s10 + $0x78] sm:$0xf]
      %v1647 = vld [vmem:[%s10 + $0x7c] sm:$0xf]
      %v1680 = vunpack.c.l.b16 %v1616
      %v1681 = vunpack.c.l.b16 %v1617
      %v1682 = vunpack.c.l.b16 %v1618
      %v1683 = vunpack.c.l.b16 %v1619
      %v1684 = vunpack.c.l.b16 %v1620
      %v1685 = vunpack.c.l.b16 %v1621
      %v1686 = vunpack.c.l.b16 %v1622
      %v1687 = vunpack.c.l.b16 %v1623
      %v1688 = vunpack.c.l.b16 %v1624
      %v1689 = vunpack.c.l.b16 %v1625
      %v1690 = vunpack.c.l.b16 %v1626
      %v1691 = vunpack.c.l.b16 %v1627
      %v1692 = vunpack.c.l.b16 %v1628
      %v1693 = vunpack.c.l.b16 %v1629
      %v1694 = vunpack.c.l.b16 %v1630
      %v1695 = vunpack.c.l.b16 %v1631
      %v1696 = vunpack.c.l.b16 %v1632
      %v1697 = vunpack.c.l.b16 %v1633
      %v1698 = vunpack.c.l.b16 %v1634
      %v1699 = vunpack.c.l.b16 %v1635
      %v1700 = vunpack.c.l.b16 %v1636
      %v1701 = vunpack.c.l.b16 %v1637
      %v1702 = vunpack.c.l.b16 %v1638
      %v1703 = vunpack.c.l.b16 %v1639
      %v1704 = vunpack.c.l.b16 %v1640
      %v1705 = vunpack.c.l.b16 %v1641
      %v1706 = vunpack.c.l.b16 %v1642
      %v1707 = vunpack.c.l.b16 %v1643
      %v1708 = vunpack.c.l.b16 %v1644
      %v1709 = vunpack.c.l.b16 %v1645
      %v1710 = vunpack.c.l.b16 %v1646
      %v1711 = vunpack.c.l.b16 %v1647
      %v1712 = vpack.c.b16 %v1681, %v1680
      %v1713 = vpack.c.b16 %v1683, %v1682
      %v1714 = vpack.c.b16 %v1685, %v1684
      %v1715 = vpack.c.b16 %v1687, %v1686
      %v1716 = vpack.c.b16 %v1689, %v1688
      %v1717 = vpack.c.b16 %v1691, %v1690
      %v1718 = vpack.c.b16 %v1693, %v1692
      %v1719 = vpack.c.b16 %v1695, %v1694
      %v1720 = vpack.c.b16 %v1697, %v1696
      %v1721 = vpack.c.b16 %v1699, %v1698
      %v1722 = vpack.c.b16 %v1701, %v1700
      %v1723 = vpack.c.b16 %v1703, %v1702
      %v1724 = vpack.c.b16 %v1705, %v1704
      %v1725 = vpack.c.b16 %v1707, %v1706
      %v1726 = vpack.c.b16 %v1709, %v1708
      %v1727 = vpack.c.b16 %v1711, %v1710
      %1744 = vmatprep.subr.bf16.mxu0 0
      %1745 = vmatpush1.bf16.msra.mxu0 %v1712
      %1746 = vmatprep.subr.bf16.mxu0 0
      %1747 = vmatpush1.bf16.msra.mxu0 %v1713
      %1748 = vmatprep.subr.bf16.mxu0 0
      %1749 = vmatpush1.bf16.msra.mxu0 %v1714
      %1750 = vmatprep.subr.bf16.mxu0 0
      %1751 = vmatpush1.bf16.msra.mxu0 %v1715
      %1752 = vmatprep.subr.bf16.mxu0 0
      %1753 = vmatpush1.bf16.msra.mxu0 %v1716
      %1754 = vmatprep.subr.bf16.mxu0 0
      %1755 = vmatpush1.bf16.msra.mxu0 %v1717
      %1756 = vmatprep.subr.bf16.mxu0 0
      %1757 = vmatpush1.bf16.msra.mxu0 %v1718
      %1758 = vmatprep.subr.bf16.mxu0 0
      %1759 = vmatpush1.bf16.msra.mxu0 %v1719
      %1760 = vmatprep.subr.bf16.mxu0 0
      %1761 = vmatpush1.bf16.msra.mxu0 %v1720
      %1762 = vmatprep.subr.bf16.mxu0 0
      %1763 = vmatpush1.bf16.msra.mxu0 %v1721
      %1764 = vmatprep.subr.bf16.mxu0 0
      %1765 = vmatpush1.bf16.msra.mxu0 %v1722
      %1766 = vmatprep.subr.bf16.mxu0 0
      %1767 = vmatpush1.bf16.msra.mxu0 %v1723
      %1768 = vmatprep.subr.bf16.mxu0 0
      %1769 = vmatpush1.bf16.msra.mxu0 %v1724
      %1770 = vmatprep.subr.bf16.mxu0 0
      %1771 = vmatpush1.bf16.msra.mxu0 %v1725
      %1772 = vmatprep.subr.bf16.mxu0 0
      %1773 = vmatpush1.bf16.msra.mxu0 %v1726
      %1774 = vmatprep.subr.bf16.mxu0 0
      %1775 = vmatpush1.bf16.msra.mxu0 %v1727
      %1776 = vmatprep.mubr.bf16.mxu0 %v1283
      %1777 = vmatmul.mubr.bf16.gmra.mrb[0].mxu0 %v1282
      %v1778 = vpop.f32.mrb[0].mxu0
      %v1779 = vadd.f32 0.0, %v1778
      %v1780 = vpop.f32.mrb[0].mxu0
      %v1781 = vpop.f32.mrb[0].mxu0
      %v1782 = vadd.f32 0.0, %v1781
      %v1783 = vpop.f32.mrb[0].mxu0
      %1784 = vdwg.mxu0
      %v1817 = vunpack.c.l.b16 %v1584
      %v1818 = vunpack.c.l.b16 %v1585
      %v1819 = vunpack.c.l.b16 %v1586
      %v1820 = vunpack.c.l.b16 %v1587
      %v1821 = vunpack.c.l.b16 %v1588
      %v1822 = vunpack.c.l.b16 %v1589
      %v1823 = vunpack.c.l.b16 %v1590
      %v1824 = vunpack.c.l.b16 %v1591
      %v1825 = vunpack.c.l.b16 %v1592
      %v1826 = vunpack.c.l.b16 %v1593
      %v1827 = vunpack.c.l.b16 %v1594
      %v1828 = vunpack.c.l.b16 %v1595
      %v1829 = vunpack.c.l.b16 %v1596
      %v1830 = vunpack.c.l.b16 %v1597
      %v1831 = vunpack.c.l.b16 %v1598
      %v1832 = vunpack.c.l.b16 %v1599
      %v1833 = vunpack.c.l.b16 %v1600
      %v1834 = vunpack.c.l.b16 %v1601
      %v1835 = vunpack.c.l.b16 %v1602
      %v1836 = vunpack.c.l.b16 %v1603
      %v1837 = vunpack.c.l.b16 %v1604
      %v1838 = vunpack.c.l.b16 %v1605
      %v1839 = vunpack.c.l.b16 %v1606
      %v1840 = vunpack.c.l.b16 %v1607
      %v1841 = vunpack.c.l.b16 %v1608
      %v1842 = vunpack.c.l.b16 %v1609
      %v1843 = vunpack.c.l.b16 %v1610
      %v1844 = vunpack.c.l.b16 %v1611
      %v1845 = vunpack.c.l.b16 %v1612
      %v1846 = vunpack.c.l.b16 %v1613
      %v1847 = vunpack.c.l.b16 %v1614
      %v1848 = vunpack.c.l.b16 %v1615
      %v1849 = vpack.c.b16 %v1818, %v1817
      %v1850 = vpack.c.b16 %v1820, %v1819
      %v1851 = vpack.c.b16 %v1822, %v1821
      %v1852 = vpack.c.b16 %v1824, %v1823
      %v1853 = vpack.c.b16 %v1826, %v1825
      %v1854 = vpack.c.b16 %v1828, %v1827
      %v1855 = vpack.c.b16 %v1830, %v1829
      %v1856 = vpack.c.b16 %v1832, %v1831
      %v1857 = vpack.c.b16 %v1834, %v1833
      %v1858 = vpack.c.b16 %v1836, %v1835
      %v1859 = vpack.c.b16 %v1838, %v1837
      %v1860 = vpack.c.b16 %v1840, %v1839
      %v1861 = vpack.c.b16 %v1842, %v1841
      %v1862 = vpack.c.b16 %v1844, %v1843
      %v1863 = vpack.c.b16 %v1846, %v1845
      %v1864 = vpack.c.b16 %v1848, %v1847
      %1881 = vmatprep.subr.bf16.mxu0 0
      %1882 = vmatpush1.bf16.msra.mxu0 %v1849
      %1883 = vmatprep.subr.bf16.mxu0 0
      %1884 = vmatpush1.bf16.msra.mxu0 %v1850
      %1885 = vmatprep.subr.bf16.mxu0 0
      %1886 = vmatpush1.bf16.msra.mxu0 %v1851
      %1887 = vmatprep.subr.bf16.mxu0 0
      %1888 = vmatpush1.bf16.msra.mxu0 %v1852
      %1889 = vmatprep.subr.bf16.mxu0 0
      %1890 = vmatpush1.bf16.msra.mxu0 %v1853
      %1891 = vmatprep.subr.bf16.mxu0 0
      %1892 = vmatpush1.bf16.msra.mxu0 %v1854
      %1893 = vmatprep.subr.bf16.mxu0 0
      %1894 = vmatpush1.bf16.msra.mxu0 %v1855
      %1895 = vmatprep.subr.bf16.mxu0 0
      %1896 = vmatpush1.bf16.msra.mxu0 %v1856
      %1897 = vmatprep.subr.bf16.mxu0 0
      %1898 = vmatpush1.bf16.msra.mxu0 %v1857
      %1899 = vmatprep.subr.bf16.mxu0 0
      %1900 = vmatpush1.bf16.msra.mxu0 %v1858
      %1901 = vmatprep.subr.bf16.mxu0 0
      %1902 = vmatpush1.bf16.msra.mxu0 %v1859
      %1903 = vmatprep.subr.bf16.mxu0 0
      %1904 = vmatpush1.bf16.msra.mxu0 %v1860
      %1905 = vmatprep.subr.bf16.mxu0 0
      %1906 = vmatpush1.bf16.msra.mxu0 %v1861
      %1907 = vmatprep.subr.bf16.mxu0 0
      %1908 = vmatpush1.bf16.msra.mxu0 %v1862
      %1909 = vmatprep.subr.bf16.mxu0 0
      %1910 = vmatpush1.bf16.msra.mxu0 %v1863
      %1911 = vmatprep.subr.bf16.mxu0 0
      %1912 = vmatpush1.bf16.msra.mxu0 %v1864
      %1913 = vmatprep.mubr.bf16.mxu0 %v1583
      %1914 = vmatmul.mubr.bf16.gmra.mrb[0].mxu0 %v1582
      %v1915 = vpop.f32.mrb[0].mxu0
      %v1916 = vadd.f32 %v1779, %v1915
      %v1917 = vpop.f32.mrb[0].mxu0
      %v1918 = vpop.f32.mrb[0].mxu0
      %v1919 = vadd.f32 %v1782, %v1918
      %v1920 = vpop.f32.mrb[0].mxu0
      %1921 = vdwg.mxu0
      %v1922 = vld [vmem:[%s11] sm:$0x1]
      %v1924 = vlaneseq
      %v1925 = vshrl.u32 %v1924, 7
      %v1926 = vsub.s32 0, %v1925
      %v1927 = vrot.slane %v1922, %v1926
      %v1929 = vadd.f32 %v1916, %v1927
      %v1930 = vadd.f32 %v1919, %v1927
      %v1931 = vld [vmem:[%s432] sm:$0xff]
      %v1932 = vld [vmem:[%s432 + $0x8] sm:$0xff]
      %1935 = vrot.lane.b32.xlu0 %v1929, 127
      %v1936 = vpop.permute.xlu0 %1935
      %1937 = vrot.lane.b32.xlu0 %v1930, 127
      %v1938 = vpop.permute.xlu0 %1937
      %v1941 = vmax.f32 %v1929, %v1936
      %v1942 = vmax.f32 %v1930, %v1938
      %v1943 = vsub.f32 %v1929, %v1941
      %v1944 = vsub.f32 %v1930, %v1942
      %v1945 = vmul.f32 %v1943, 1.442695
      %v1946 = vpow.pop %v1945
      %v1947 = vmul.f32 %v1944, 1.442695
      %v1948 = vpow.pop %v1947
      %1951 = vrot.lane.b32.xlu0 %v1941, 1
      %v1952 = vpop.permute.xlu0 %1951
      %1953 = vrot.lane.b32.xlu0 %v1942, 1
      %v1954 = vpop.permute.xlu0 %1953
      %v1957 = vsub.f32 %v1929, %v1952
      %v1958 = vsub.f32 %v1930, %v1954
      %v1959 = vmul.f32 %v1957, 1.442695
      %v1960 = vpow.pop %v1959
      %v1961 = vmul.f32 %v1958, 1.442695
      %v1962 = vpow.pop %v1961
      %1965 = vrot.lane.b32.xlu0 %v1960, 127
      %v1966 = vpop.permute.xlu0 %1965
      %1967 = vrot.lane.b32.xlu0 %v1962, 127
      %v1968 = vpop.permute.xlu0 %1967
      %v1971 = vadd.f32 %v1946, %v1966
      %v1972 = vadd.f32 %v1948, %v1968
      %v1973 = vlog2.pop %v1971
      %v1974 = vmul.f32 %v1973, 0.6931472
      %v1975 = vlog2.pop %v1972
      %v1976 = vmul.f32 %v1975, 0.6931472
      %v1977 = vadd.f32 %v1941, %v1974
      %v1978 = vadd.f32 %v1942, %v1976
      %vm1979 = vcmp.gt.f32.partialorder %v1931, 0.5
      %vm1980 = vcmp.gt.f32.partialorder %v1932, 0.5
      %v1981 = vsel %vm1979, %v1936, %v1929
      %v1982 = vsel %vm1980, %v1938, %v1930
      %v1983 = vsub.f32 %v1977, %v1981
      %v1984 = vsub.f32 %v1978, %v1982
      %1987 = vrot.lane.b32.xlu0 %v1931, 127
      %v1988 = vpop.permute.xlu0 %1987
      %1989 = vrot.lane.b32.xlu0 %v1932, 127
      %v1990 = vpop.permute.xlu0 %1989
      %v1993 = vmul.f32 %v1983, %v1988
      %v1994 = vmul.f32 %v1984, %v1990
      %vm1995 = vcmask 7168
      %v1996 = vsel %vm1995, %v1993, 0.0
      %v1997 = vsel %vm1995, %v1994, 0.0
      %v1998 = vadd.f32 %v1996, %v1997
      %1999 = vadd.xlane.f32.xlu0 %v1998
      %v2000 = vpop.xlane.xlu0 %1999
      %v2001 = vrot.slane %v2000, 4
      %v2002 = vadd.f32 %v2000, %v2001
      %v2003 = vrot.slane %v2002, 2
      %v2004 = vadd.f32 %v2002, %v2003
      %v2005 = vrot.slane %v2004, 1
      %v2006 = vadd.f32 %v2004, %v2005
      %s2007 = vtos %v2006
      %2008 = vrot.lane.b32.xlu0 %v1929, 1
      %v2009 = vpop.permute.xlu0 %2008
      %2010 = vrot.lane.b32.xlu0 %v1930, 1
      %v2011 = vpop.permute.xlu0 %2010
      %vm2014 = vcmp.gt.f32.partialorder %v1929, %v2009
      %vm2015 = vcmp.gt.f32.partialorder %v1930, %v2011
      %v2016 = vsel %vm2014, 1, 0
      %v2017 = vsel %vm2015, 1, 0
      %v2018 = vcvt.s32.f32 %v2016
      %v2019 = vcvt.s32.f32 %v2017
      %2020 = vrot.lane.b32.xlu0 %v1931, 1
      %v2021 = vpop.permute.xlu0 %2020
      %2022 = vrot.lane.b32.xlu0 %v1932, 1
      %v2023 = vpop.permute.xlu0 %2022
      %vm2026 = vcmp.eq.f32.partialorder %v2018, %v2021
      %vm2027 = vcmp.eq.f32.partialorder %v2019, %v2023
      %v2028 = vsel %vm2026, 1, 0
      %v2029 = vsel %vm2027, 1, 0
      %v2030 = vcvt.s32.f32 %v2028
      %v2031 = vcvt.s32.f32 %v2029
      %v2032 = vmul.f32 %v2030, %v1931
      %v2033 = vmul.f32 %v2031, %v1932
      %2036 = vrot.lane.b32.xlu0 %v2032, 127
      %v2037 = vpop.permute.xlu0 %2036
      %2038 = vrot.lane.b32.xlu0 %v2033, 127
      %v2039 = vpop.permute.xlu0 %2038
      %v2042 = vsel %vm1995, %v2037, 0.0
      %v2043 = vsel %vm1995, %v2039, 0.0
      %v2044 = vadd.f32 %v2042, %v2043
      %2045 = vadd.xlane.f32.xlu0 %v2044
      %v2046 = vpop.xlane.xlu0 %2045
      %v2047 = vrot.slane %v2046, 4
      %v2048 = vadd.f32 %v2046, %v2047
      %v2049 = vrot.slane %v2048, 2
      %v2050 = vadd.f32 %v2048, %v2049
      %v2051 = vrot.slane %v2050, 1
      %v2052 = vadd.f32 %v2050, %v2051
      %s2053 = vtos %v2052
      %2054 = vrot.lane.b32.xlu0 %v1929, 125
      %v2055 = vpop.permute.xlu0 %2054
      %2056 = vrot.lane.b32.xlu0 %v1930, 125
      %v2057 = vpop.permute.xlu0 %2056
      %2060 = vrot.lane.b32.xlu0 %v1929, 126
      %v2061 = vpop.permute.xlu0 %2060
      %2062 = vrot.lane.b32.xlu0 %v1930, 126
      %v2063 = vpop.permute.xlu0 %2062
      %v2066 = vsel %vm1979, %v2055, %v2061
      %v2067 = vsel %vm1980, %v2057, %v2063
      %2070 = vrot.lane.b32.xlu0 %v2066, 2
      %v2071 = vpop.permute.xlu0 %2070
      %2072 = vrot.lane.b32.xlu0 %v2067, 2
      %v2073 = vpop.permute.xlu0 %2072
      %v2076 = vsub.f32 %v1977, %v2071
      %v2077 = vsub.f32 %v1978, %v2073
      %v2078 = vmul.f32 %v2076, %v2021
      %v2079 = vmul.f32 %v2077, %v2023
      %2082 = vrot.lane.b32.xlu0 %v2078, 126
      %v2083 = vpop.permute.xlu0 %2082
      %2084 = vrot.lane.b32.xlu0 %v2079, 126
      %v2085 = vpop.permute.xlu0 %2084
      %v2088 = vsel %vm1995, %v2083, 0.0
      %v2089 = vsel %vm1995, %v2085, 0.0
      %v2090 = vadd.f32 %v2088, %v2089
      %2091 = vadd.xlane.f32.xlu0 %v2090
      %v2092 = vpop.xlane.xlu0 %2091
      %v2093 = vrot.slane %v2092, 4
      %v2094 = vadd.f32 %v2092, %v2093
      %v2095 = vrot.slane %v2094, 2
      %v2096 = vadd.f32 %v2094, %v2095
      %v2097 = vrot.slane %v2096, 1
      %v2098 = vadd.f32 %v2096, %v2097
      %s2099 = vtos %v2098
      %2100 = vrot.lane.b32.xlu0 %v1929, 123
      %v2101 = vpop.permute.xlu0 %2100
      %2102 = vrot.lane.b32.xlu0 %v1930, 123
      %v2103 = vpop.permute.xlu0 %2102
      %2106 = vrot.lane.b32.xlu0 %v1929, 124
      %v2107 = vpop.permute.xlu0 %2106
      %2108 = vrot.lane.b32.xlu0 %v1930, 124
      %v2109 = vpop.permute.xlu0 %2108
      %v2112 = vsel %vm1979, %v2101, %v2107
      %v2113 = vsel %vm1980, %v2103, %v2109
      %2116 = vrot.lane.b32.xlu0 %v2112, 4
      %v2117 = vpop.permute.xlu0 %2116
      %2118 = vrot.lane.b32.xlu0 %v2113, 4
      %v2119 = vpop.permute.xlu0 %2118
      %v2122 = vsub.f32 %v1977, %v2117
      %v2123 = vsub.f32 %v1978, %v2119
      %2124 = vrot.lane.b32.xlu0 %v1931, 3
      %v2125 = vpop.permute.xlu0 %2124
      %2126 = vrot.lane.b32.xlu0 %v1932, 3
      %v2127 = vpop.permute.xlu0 %2126
      %v2130 = vmul.f32 %v2122, %v2125
      %v2131 = vmul.f32 %v2123, %v2127
      %2134 = vrot.lane.b32.xlu0 %v2130, 124
      %v2135 = vpop.permute.xlu0 %2134
      %2136 = vrot.lane.b32.xlu0 %v2131, 124
      %v2137 = vpop.permute.xlu0 %2136
      %v2140 = vsel %vm1995, %v2135, 0.0
      %v2141 = vsel %vm1995, %v2137, 0.0
      %v2142 = vadd.f32 %v2140, %v2141
      %2143 = vadd.xlane.f32.xlu0 %v2142
      %v2144 = vpop.xlane.xlu0 %2143
      %v2145 = vrot.slane %v2144, 4
      %v2146 = vadd.f32 %v2144, %v2145
      %v2147 = vrot.slane %v2146, 2
      %v2148 = vadd.f32 %v2146, %v2147
      %v2149 = vrot.slane %v2148, 1
      %v2150 = vadd.f32 %v2148, %v2149
      %s2151 = vtos %v2150
      %v2152 = vsel %vm1995, %v1988, 0.0
      %v2153 = vsel %vm1995, %v1990, 0.0
      %v2154 = vadd.f32 %v2152, %v2153
      %2155 = vadd.xlane.f32.xlu0 %v2154
      %v2156 = vpop.xlane.xlu0 %2155
      %v2157 = vrot.slane %v2156, 4
      %v2158 = vadd.f32 %v2156, %v2157
      %v2159 = vrot.slane %v2158, 2
      %v2160 = vadd.f32 %v2158, %v2159
      %v2161 = vrot.slane %v2160, 1
      %v2162 = vadd.f32 %v2160, %v2161
      %s2163 = vtos %v2162
      %v2164 = vlaneseq
      %v2165 = vand.u32 %v2164, 127
      %vm2166 = vcmp.eq.s32.totalorder %v2165, 0
      %v2167 = vstv %s2007
      %v2168 = vsel %vm2166, %v2167, 0.0
      %vm2169 = vcmp.eq.s32.totalorder %v2165, 1
      %v2170 = vstv %s2099
      %v2171 = vsel %vm2169, %v2170, %v2168
      %vm2172 = vcmp.eq.s32.totalorder %v2165, 2
      %v2173 = vstv %s2151
      %v2174 = vsel %vm2172, %v2173, %v2171
      %vm2175 = vcmp.eq.s32.totalorder %v2165, 3
      %v2176 = vstv %s2053
      %v2177 = vsel %vm2175, %v2176, %v2174
      %vm2178 = vcmp.eq.s32.totalorder %v2165, 4
      %v2179 = vstv %s2163
      %v2180 = vsel %vm2178, %v2179, %v2177
      %2181 = vst [vmem:[%s436] sm:$0x1] %v2180
      %p2182 = scmp.lt.s32.totalorder %s23, 1
      %s2183 = scalar_select %p2182, %s23, 1
      %s2184 = scalar_lea.vmem %s12, %s2183
      // Predicated region
      $region69: #{loconet_forward.3} parent=67 // pred_check
        %p2185 = pneg %p303
      $region70: #{loconet_forward.3} parent=67 // pred_check_branch
        %2187 = sbr.rel (%p2185) target = $region72
      $region71: #{loconet_forward.3} parent=67 // pred_region
        _
      $region72: #{loconet_forward.3} parent=67 // pred_fallthru
        _
    $region68: #{loconet_forward.3} parent=5 // pred_fallthru
      _
    %p2188 = scmp.le.s32.totalorder 2, %s18
    // Predicated region
    $region73: #{loconet_forward.3} parent=5 // pred_check
      %p2189 = pneg %p2188
    $region74: #{loconet_forward.3} parent=5 // pred_check_branch
      %2191 = sbr.rel (%p2189) target = $region76
    $region75: #{loconet_forward.3} parent=5 // pred_region
      %s2192 = ssub.s32 %s18, 2
      // Predicated region
      $region77: #{loconet_forward.3} parent=75 // pred_check
        %p2193 = pneg %p309
      $region78: #{loconet_forward.3} parent=75 // pred_check_branch
        %2195 = sbr.rel (%p2193) target = $region80
      $region79: #{loconet_forward.3} parent=75 // pred_region
        %p2196 = scmp.lt.s32.totalorder %s24, 1
        %s2197 = scalar_select %p2196, %s24, 1
        %s2198 = scalar_lea.vmem %s12, %s2197
      $region80: #{loconet_forward.3} parent=75 // pred_fallthru
        _
    $region76: #{loconet_forward.3} parent=5 // pred_fallthru
      _
  $region6: #{loconet_forward.3} parent=0 // loop_footer
    %s22 = sadd.s32 1, %s18
  $region7: #{loconet_forward.3} parent=0 // loop_footer_branch
    %17 = sbr.rel target = $region3
  $region8: #{loconet_forward.3} parent=0 // loop_exit
    _

</llo_original>
